<compile_context>
chip_gen: v6e
topology: v6e:2x2x1
jax: 0.10.0
libtpu: 0.0.40
codegen_flags: <defaults>
</compile_context>

<pallas_src>
import functools

import numpy as np
import jax
import jax.numpy as jnp
from jax.experimental import pallas as pl
from jax.experimental.pallas import tpu as pltpu


def _dilated_conv_kernel(x_ref, w_ref, b_ref, m_ref, o_ref, *, dilations, img_w, lanes):
    """Fused multi-dilation grouped 3x3 conv (stride 1) for one batch-block.

    x_ref: (1, C, lanes)     input; channels on sublanes, flattened (nb*H*W) on lanes
    w_ref: (9, S, C, C)      per-(tap, split) channel-mixing blocks (zero outside
                             split s's channels / its conv group)  -- grid-invariant
    b_ref: (C, 1)            bias                                   -- grid-invariant
    m_ref: (9, S, 1, lanes)  0/1 boundary-validity masks (zero-pad + kills roll wrap)
    o_ref: (1, C, lanes)     output (lane-dense full-width store)
    """
    x = x_ref[0].astype(jnp.float32)                     # (C, lanes)
    C = x.shape[0]
    acc = jnp.zeros((C, lanes), jnp.float32)             # f32 accumulator

    for kh in range(3):
        for kw in range(3):
            t = kh * 3 + kw
            for s, d in enumerate(dilations):
                shift = (kh - 1) * d * img_w + (kw - 1) * d
                # shifted[p] = x[p + shift]; wrapped lanes are zeroed by the mask.
                rolled = x if shift == 0 else pltpu.roll(x, shift=(-shift) % lanes, axis=1)
                if kh == 1 and kw == 1:
                    piece = rolled                        # center tap: always valid
                else:
                    piece = rolled * m_ref[t, s]          # (1, lanes) boundary mask
                # Accumulated per-tap dot: no (9C, lanes) stack is materialized,
                # and the next tap's roll/mask-mul overlaps this vmatmul push.
                acc = acc + jnp.dot(w_ref[t, s], piece,
                                    preferred_element_type=jnp.float32)

    o_ref[0] = (acc + b_ref[...]).astype(o_ref.dtype)


def _build_tap_weights(params, num_splits, temp, group_width):
    """W[t, s]: (C, C) mixing block for tap t / split s.

    Nonzero only where both the output and input channel lie in split s and in
    the same conv group -- this encodes the split/group selection that the old
    per-channel mask used to do."""
    C = num_splits * temp
    gw = group_width
    Wt = np.zeros((9, num_splits, C, C), np.float32)
    bf = np.zeros((C, 1), np.float32)
    for s in range(num_splits):
        w_s = np.asarray(params[s][0], np.float32)        # (temp, gw, 3, 3) OIHW grouped
        b_s = np.asarray(params[s][1], np.float32)        # (temp,)
        base = s * temp
        bf[base:base + temp, 0] = b_s
        for oc_local in range(temp):
            g = oc_local // gw
            for j in range(gw):
                ic_local = g * gw + j
                for kh in range(3):
                    for kw in range(3):
                        t = kh * 3 + kw
                        Wt[t, s, base + oc_local, base + ic_local] = w_s[oc_local, j, kh, kw]
    return Wt, bf


def _build_boundary_masks(dilations, H, W, nb):
    """(9, S, 1, nb*H*W) 0/1 masks: 1 where tap (t, dilation d_s) stays inside its image."""
    S = len(dilations)
    HW = H * W
    h = np.arange(HW) // W
    w = np.arange(HW) % W
    masks = np.zeros((9, S, 1, nb * HW), np.float32)
    for t in range(9):
        kh, kw = t // 3, t % 3
        for s, d in enumerate(dilations):
            dh, dw = (kh - 1) * d, (kw - 1) * d
            valid = ((h + dh >= 0) & (h + dh < H) &
                     (w + dw >= 0) & (w + dw < W)).astype(np.float32)   # (HW,)
            masks[t, s, 0] = np.tile(valid, nb)           # same mask per folded image
    return masks


def _auto_images_per_step(N, HW):
    """How many images to fold onto the lane axis per grid step."""
    if N <= 1:
        return 1
    try:
        kind = jax.devices()[0].device_kind.lower()
    except Exception:
        return 1
    # Chips where a "parallel" grid axis spans >=2 TensorCores per device
    # (v4 / v5p megacore, v7x dual-TC): keep one image per step so all cores work.
    if any(tag in kind for tag in ("v4", "v5p", "v7", "7x")):
        return 1
    # Single-TC chips (v5e, v6e): fold the batch into lanes (one grid step),
    # capped so the folded lane extent stays modest.
    nb = min(N, max(1, 8192 // HW))
    while N % nb:
        nb -= 1
    return nb


def dilated_conv_forward(x, params, dilations, group_width, stride, images_per_step=None):
    """DilatedConv.forward: per-split dilated grouped 3x3 conv, fused in one kernel."""
    N, C, H, W = x.shape
    S = len(dilations)
    assert C % S == 0
    temp = C // S
    assert temp % group_width == 0
    HW = H * W

    nb = images_per_step if images_per_step is not None else _auto_images_per_step(N, HW)
    assert N % nb == 0
    steps = N // nb
    lanes = nb * HW

    Wt, bf = _build_tap_weights(params, S, temp, group_width)
    masks = _build_boundary_masks(dilations, H, W, nb)

    x3 = x.reshape(N, C, HW)                              # free for contiguous NCHW
    if nb > 1:
        # Fold nb images onto the lane axis: (steps, C, nb*HW).  Roll wrap across
        # image boundaries is zeroed by the boundary masks (see invariant above).
        x3 = (x3.reshape(steps, nb, C, HW)
                 .transpose(0, 2, 1, 3)
                 .reshape(steps, C, lanes))

    kernel = functools.partial(_dilated_conv_kernel, dilations=tuple(dilations),
                               img_w=W, lanes=lanes)
    out = pl.pallas_call(
        kernel,
        out_shape=jax.ShapeDtypeStruct((steps, C, lanes), x.dtype),
        grid=(steps,),
        in_specs=[
            pl.BlockSpec((1, C, lanes), lambda n: (n, 0, 0)),
            pl.BlockSpec((9, S, C, C), lambda n: (0, 0, 0, 0)),   # grid-invariant
            pl.BlockSpec((C, 1), lambda n: (0, 0)),               # grid-invariant
            pl.BlockSpec((9, S, 1, lanes), lambda n: (0, 0, 0, 0)),  # grid-invariant
        ],
        out_specs=pl.BlockSpec((1, C, lanes), lambda n: (n, 0, 0)),
        compiler_params=pltpu.CompilerParams(
            dimension_semantics=("parallel",)),           # multi-TC chips: 1 image / TC
    )(x3, jnp.asarray(Wt), jnp.asarray(bf), jnp.asarray(masks))

    if nb > 1:
        out = (out.reshape(steps, C, nb, HW)
                  .transpose(0, 2, 1, 3)
                  .reshape(N, C, H, W))
    else:
        out = out.reshape(N, C, H, W)

    if stride != 1:
        # Exact because the module always uses padding == dilation with a 3x3
        # kernel: strided output[oh, ow] == stride-1 output[oh*stride, ow*stride].
        # TODO(synk): subsample inside the kernel (strided selection / row-tiled
        # accumulation) so only the kept rows are computed and written back.
        out = out[:, :, ::stride, ::stride]
    return out


def _reference(x, params, dilations, group_width, stride):
    """Pure-JAX reference (lax.conv_general_dilated)."""
    num_splits = len(dilations)
    splits = jnp.split(x, num_splits, axis=1)
    outs = []
    for i, d in enumerate(dilations):
        w_i, b_i = params[i]
        C = splits[i].shape[1]
        o = jax.lax.conv_general_dilated(
            splits[i], w_i,
            window_strides=(stride, stride),
            padding=((d, d), (d, d)),
            rhs_dilation=(d, d),
            dimension_numbers=("NCHW", "OIHW", "NCHW"),
            feature_group_count=C // group_width)
        o = o + b_i[None, :, None, None]
        outs.append(o)
    return jnp.concatenate(outs, axis=1)


if __name__ == "__main__":
    # Module config: DilatedConv(w=8, dilations=(1, 2), group_width=2, stride=1, bias=True)
    w_total = 8
    dilations = (1, 2)
    group_width = 2
    stride = 1
    bias = True

    num_splits = len(dilations)
    assert w_total % num_splits == 0
    temp = w_total // num_splits
    assert temp % group_width == 0

    N, H, W = 2, 16, 16

    key = jax.random.PRNGKey(0)
    keys = jax.random.split(key, 2 * num_splits + 1)
    x = jax.random.normal(keys[0], (N, w_total, H, W), jnp.float32)

    # Deterministic Conv2d-style init: U(-1/sqrt(fan_in), 1/sqrt(fan_in)).
    fan_in = group_width * 3 * 3
    bound = 1.0 / np.sqrt(fan_in)
    params = []
    for i in range(num_splits):
        wk, bk = keys[1 + 2 * i], keys[2 + 2 * i]
        w_i = jax.random.uniform(wk, (temp, group_width, 3, 3),
                                 jnp.float32, -bound, bound)
        if bias:
            b_i = jax.random.uniform(bk, (temp,), jnp.float32, -bound, bound)
        else:
            b_i = jnp.zeros((temp,), jnp.float32)
        params.append((w_i, b_i))

    out = dilated_conv_forward(x, params, dilations, group_width, stride)
    out = jax.block_until_ready(out)

    ref = _reference(x, params, dilations, group_width, stride)
    if not np.allclose(np.asarray(out), np.asarray(ref), atol=1e-4, rtol=1e-4):
        raise AssertionError("Pallas DilatedConv does not match reference")
    print("KERNEL_OK")
</pallas_src>

<mosaic_0001>
module attributes {stable_mosaic.version = 11 : i64} {
  func.func @_dilated_conv_kernel(%arg0: i32, %arg1: memref<1x8x512xf32, #tpu.memory_space<vmem>>, %arg2: memref<9x2x8x8xf32, #tpu.memory_space<vmem>>, %arg3: memref<8x1xf32, #tpu.memory_space<vmem>>, %arg4: memref<9x2x1x512xf32, #tpu.memory_space<vmem>>, %arg5: memref<1x8x512xf32, #tpu.memory_space<vmem>>) attributes {dimension_semantics = [#tpu.dimension_semantics<parallel>], iteration_bounds = array<i64: 1>, scalar_prefetch = 0 : i64, scratch_operands = 0 : i64, tpu.core_type = #tpu.core_type<tc>, window_params = [{transform_indices = @transform_0, window_bounds = array<i64: 1, 8, 512>}, {pipeline_mode = #tpu.pipeline_mode<synchronous>, transform_indices = @transform_1, window_bounds = array<i64: 9, 2, 8, 8>}, {pipeline_mode = #tpu.pipeline_mode<synchronous>, transform_indices = @transform_2, window_bounds = array<i64: 8, 1>}, {pipeline_mode = #tpu.pipeline_mode<synchronous>, transform_indices = @transform_3, window_bounds = array<i64: 9, 2, 1, 512>}, {transform_indices = @transform_4, window_bounds = array<i64: 1, 8, 512>}]} {
    %c0 = arith.constant 0 : index
    %c0_0 = arith.constant 0 : index
    %c0_1 = arith.constant 0 : index
    %0 = vector.load %arg1[%c0, %c0_0, %c0_1] : memref<1x8x512xf32, #tpu.memory_space<vmem>>, vector<1x8x512xf32>
    %1 = vector.shape_cast %0 : vector<1x8x512xf32> to vector<8x512xf32>
    %cst = arith.constant 0.000000e+00 : f32
    %2 = vector.broadcast %cst : f32 to vector<8x512xf32>
    %c17_i32 = arith.constant 17 : i32
    %3 = tpu.dynamic_rotate %1 by %c17_i32 dim 1 : vector<8x512xf32>, i32 -> vector<8x512xf32>
    %c0_2 = arith.constant 0 : index
    %c0_3 = arith.constant 0 : index
    %c0_4 = arith.constant 0 : index
    %c0_5 = arith.constant 0 : index
    %4 = vector.load %arg4[%c0_2, %c0_3, %c0_4, %c0_5] : memref<9x2x1x512xf32, #tpu.memory_space<vmem>>, vector<1x1x1x512xf32>
    %5 = vector.shape_cast %4 : vector<1x1x1x512xf32> to vector<1x512xf32>
    %6 = vector.broadcast %5 : vector<1x512xf32> to vector<8x512xf32>
    %7 = arith.mulf %3, %6 : vector<8x512xf32>
    %c0_6 = arith.constant 0 : index
    %c0_7 = arith.constant 0 : index
    %c0_8 = arith.constant 0 : index
    %c0_9 = arith.constant 0 : index
    %8 = vector.load %arg2[%c0_6, %c0_7, %c0_8, %c0_9] : memref<9x2x8x8xf32, #tpu.memory_space<vmem>>, vector<1x1x8x8xf32>
    %9 = vector.shape_cast %8 : vector<1x1x8x8xf32> to vector<8x8xf32>
    %cst_10 = arith.constant dense<0.000000e+00> : vector<8x512xf32>
    %10 = tpu.matmul %9, %7, %cst_10 {dimension_numbers = #tpu.dot_dimension_numbers<[1], [0], [0], [1], [0, 0, 1, 1], [], []>} : vector<8x8xf32>, vector<8x512xf32>, vector<8x512xf32> -> vector<8x512xf32>
    %11 = arith.addf %2, %10 : vector<8x512xf32>
    %c34_i32 = arith.constant 34 : i32
    %12 = tpu.dynamic_rotate %1 by %c34_i32 dim 1 : vector<8x512xf32>, i32 -> vector<8x512xf32>
    %c0_11 = arith.constant 0 : index
    %c1 = arith.constant 1 : index
    %c0_12 = arith.constant 0 : index
    %c0_13 = arith.constant 0 : index
    %13 = vector.load %arg4[%c0_11, %c1, %c0_12, %c0_13] : memref<9x2x1x512xf32, #tpu.memory_space<vmem>>, vector<1x1x1x512xf32>
    %14 = vector.shape_cast %13 : vector<1x1x1x512xf32> to vector<1x512xf32>
    %15 = vector.broadcast %14 : vector<1x512xf32> to vector<8x512xf32>
    %16 = arith.mulf %12, %15 : vector<8x512xf32>
    %c0_14 = arith.constant 0 : index
    %c1_15 = arith.constant 1 : index
    %c0_16 = arith.constant 0 : index
    %c0_17 = arith.constant 0 : index
    %17 = vector.load %arg2[%c0_14, %c1_15, %c0_16, %c0_17] : memref<9x2x8x8xf32, #tpu.memory_space<vmem>>, vector<1x1x8x8xf32>
    %18 = vector.shape_cast %17 : vector<1x1x8x8xf32> to vector<8x8xf32>
    %cst_18 = arith.constant dense<0.000000e+00> : vector<8x512xf32>
    %19 = tpu.matmul %18, %16, %cst_18 {dimension_numbers = #tpu.dot_dimension_numbers<[1], [0], [0], [1], [0, 0, 1, 1], [], []>} : vector<8x8xf32>, vector<8x512xf32>, vector<8x512xf32> -> vector<8x512xf32>
    %20 = arith.addf %11, %19 : vector<8x512xf32>
    %c16_i32 = arith.constant 16 : i32
    %21 = tpu.dynamic_rotate %1 by %c16_i32 dim 1 : vector<8x512xf32>, i32 -> vector<8x512xf32>
    %c1_19 = arith.constant 1 : index
    %c0_20 = arith.constant 0 : index
    %c0_21 = arith.constant 0 : index
    %c0_22 = arith.constant 0 : index
    %22 = vector.load %arg4[%c1_19, %c0_20, %c0_21, %c0_22] : memref<9x2x1x512xf32, #tpu.memory_space<vmem>>, vector<1x1x1x512xf32>
    %23 = vector.shape_cast %22 : vector<1x1x1x512xf32> to vector<1x512xf32>
    %24 = vector.broadcast %23 : vector<1x512xf32> to vector<8x512xf32>
    %25 = arith.mulf %21, %24 : vector<8x512xf32>
    %c1_23 = arith.constant 1 : index
    %c0_24 = arith.constant 0 : index
    %c0_25 = arith.constant 0 : index
    %c0_26 = arith.constant 0 : index
    %26 = vector.load %arg2[%c1_23, %c0_24, %c0_25, %c0_26] : memref<9x2x8x8xf32, #tpu.memory_space<vmem>>, vector<1x1x8x8xf32>
    %27 = vector.shape_cast %26 : vector<1x1x8x8xf32> to vector<8x8xf32>
    %cst_27 = arith.constant dense<0.000000e+00> : vector<8x512xf32>
    %28 = tpu.matmul %27, %25, %cst_27 {dimension_numbers = #tpu.dot_dimension_numbers<[1], [0], [0], [1], [0, 0, 1, 1], [], []>} : vector<8x8xf32>, vector<8x512xf32>, vector<8x512xf32> -> vector<8x512xf32>
    %29 = arith.addf %20, %28 : vector<8x512xf32>
    %c32_i32 = arith.constant 32 : i32
    %30 = tpu.dynamic_rotate %1 by %c32_i32 dim 1 : vector<8x512xf32>, i32 -> vector<8x512xf32>
    %c1_28 = arith.constant 1 : index
    %c1_29 = arith.constant 1 : index
    %c0_30 = arith.constant 0 : index
    %c0_31 = arith.constant 0 : index
    %31 = vector.load %arg4[%c1_28, %c1_29, %c0_30, %c0_31] : memref<9x2x1x512xf32, #tpu.memory_space<vmem>>, vector<1x1x1x512xf32>
    %32 = vector.shape_cast %31 : vector<1x1x1x512xf32> to vector<1x512xf32>
    %33 = vector.broadcast %32 : vector<1x512xf32> to vector<8x512xf32>
    %34 = arith.mulf %30, %33 : vector<8x512xf32>
    %c1_32 = arith.constant 1 : index
    %c1_33 = arith.constant 1 : index
    %c0_34 = arith.constant 0 : index
    %c0_35 = arith.constant 0 : index
    %35 = vector.load %arg2[%c1_32, %c1_33, %c0_34, %c0_35] : memref<9x2x8x8xf32, #tpu.memory_space<vmem>>, vector<1x1x8x8xf32>
    %36 = vector.shape_cast %35 : vector<1x1x8x8xf32> to vector<8x8xf32>
    %cst_36 = arith.constant dense<0.000000e+00> : vector<8x512xf32>
    %37 = tpu.matmul %36, %34, %cst_36 {dimension_numbers = #tpu.dot_dimension_numbers<[1], [0], [0], [1], [0, 0, 1, 1], [], []>} : vector<8x8xf32>, vector<8x512xf32>, vector<8x512xf32> -> vector<8x512xf32>
    %38 = arith.addf %29, %37 : vector<8x512xf32>
    %c15_i32 = arith.constant 15 : i32
    %39 = tpu.dynamic_rotate %1 by %c15_i32 dim 1 : vector<8x512xf32>, i32 -> vector<8x512xf32>
    %c2 = arith.constant 2 : index
    %c0_37 = arith.constant 0 : index
    %c0_38 = arith.constant 0 : index
    %c0_39 = arith.constant 0 : index
    %40 = vector.load %arg4[%c2, %c0_37, %c0_38, %c0_39] : memref<9x2x1x512xf32, #tpu.memory_space<vmem>>, vector<1x1x1x512xf32>
    %41 = vector.shape_cast %40 : vector<1x1x1x512xf32> to vector<1x512xf32>
    %42 = vector.broadcast %41 : vector<1x512xf32> to vector<8x512xf32>
    %43 = arith.mulf %39, %42 : vector<8x512xf32>
    %c2_40 = arith.constant 2 : index
    %c0_41 = arith.constant 0 : index
    %c0_42 = arith.constant 0 : index
    %c0_43 = arith.constant 0 : index
    %44 = vector.load %arg2[%c2_40, %c0_41, %c0_42, %c0_43] : memref<9x2x8x8xf32, #tpu.memory_space<vmem>>, vector<1x1x8x8xf32>
    %45 = vector.shape_cast %44 : vector<1x1x8x8xf32> to vector<8x8xf32>
    %cst_44 = arith.constant dense<0.000000e+00> : vector<8x512xf32>
    %46 = tpu.matmul %45, %43, %cst_44 {dimension_numbers = #tpu.dot_dimension_numbers<[1], [0], [0], [1], [0, 0, 1, 1], [], []>} : vector<8x8xf32>, vector<8x512xf32>, vector<8x512xf32> -> vector<8x512xf32>
    %47 = arith.addf %38, %46 : vector<8x512xf32>
    %c30_i32 = arith.constant 30 : i32
    %48 = tpu.dynamic_rotate %1 by %c30_i32 dim 1 : vector<8x512xf32>, i32 -> vector<8x512xf32>
    %c2_45 = arith.constant 2 : index
    %c1_46 = arith.constant 1 : index
    %c0_47 = arith.constant 0 : index
    %c0_48 = arith.constant 0 : index
    %49 = vector.load %arg4[%c2_45, %c1_46, %c0_47, %c0_48] : memref<9x2x1x512xf32, #tpu.memory_space<vmem>>, vector<1x1x1x512xf32>
    %50 = vector.shape_cast %49 : vector<1x1x1x512xf32> to vector<1x512xf32>
    %51 = vector.broadcast %50 : vector<1x512xf32> to vector<8x512xf32>
    %52 = arith.mulf %48, %51 : vector<8x512xf32>
    %c2_49 = arith.constant 2 : index
    %c1_50 = arith.constant 1 : index
    %c0_51 = arith.constant 0 : index
    %c0_52 = arith.constant 0 : index
    %53 = vector.load %arg2[%c2_49, %c1_50, %c0_51, %c0_52] : memref<9x2x8x8xf32, #tpu.memory_space<vmem>>, vector<1x1x8x8xf32>
    %54 = vector.shape_cast %53 : vector<1x1x8x8xf32> to vector<8x8xf32>
    %cst_53 = arith.constant dense<0.000000e+00> : vector<8x512xf32>
    %55 = tpu.matmul %54, %52, %cst_53 {dimension_numbers = #tpu.dot_dimension_numbers<[1], [0], [0], [1], [0, 0, 1, 1], [], []>} : vector<8x8xf32>, vector<8x512xf32>, vector<8x512xf32> -> vector<8x512xf32>
    %56 = arith.addf %47, %55 : vector<8x512xf32>
    %c1_i32 = arith.constant 1 : i32
    %57 = tpu.dynamic_rotate %1 by %c1_i32 dim 1 : vector<8x512xf32>, i32 -> vector<8x512xf32>
    %c3 = arith.constant 3 : index
    %c0_54 = arith.constant 0 : index
    %c0_55 = arith.constant 0 : index
    %c0_56 = arith.constant 0 : index
    %58 = vector.load %arg4[%c3, %c0_54, %c0_55, %c0_56] : memref<9x2x1x512xf32, #tpu.memory_space<vmem>>, vector<1x1x1x512xf32>
    %59 = vector.shape_cast %58 : vector<1x1x1x512xf32> to vector<1x512xf32>
    %60 = vector.broadcast %59 : vector<1x512xf32> to vector<8x512xf32>
    %61 = arith.mulf %57, %60 : vector<8x512xf32>
    %c3_57 = arith.constant 3 : index
    %c0_58 = arith.constant 0 : index
    %c0_59 = arith.constant 0 : index
    %c0_60 = arith.constant 0 : index
    %62 = vector.load %arg2[%c3_57, %c0_58, %c0_59, %c0_60] : memref<9x2x8x8xf32, #tpu.memory_space<vmem>>, vector<1x1x8x8xf32>
    %63 = vector.shape_cast %62 : vector<1x1x8x8xf32> to vector<8x8xf32>
    %cst_61 = arith.constant dense<0.000000e+00> : vector<8x512xf32>
    %64 = tpu.matmul %63, %61, %cst_61 {dimension_numbers = #tpu.dot_dimension_numbers<[1], [0], [0], [1], [0, 0, 1, 1], [], []>} : vector<8x8xf32>, vector<8x512xf32>, vector<8x512xf32> -> vector<8x512xf32>
    %65 = arith.addf %56, %64 : vector<8x512xf32>
    %c2_i32 = arith.constant 2 : i32
    %66 = tpu.dynamic_rotate %1 by %c2_i32 dim 1 : vector<8x512xf32>, i32 -> vector<8x512xf32>
    %c3_62 = arith.constant 3 : index
    %c1_63 = arith.constant 1 : index
    %c0_64 = arith.constant 0 : index
    %c0_65 = arith.constant 0 : index
    %67 = vector.load %arg4[%c3_62, %c1_63, %c0_64, %c0_65] : memref<9x2x1x512xf32, #tpu.memory_space<vmem>>, vector<1x1x1x512xf32>
    %68 = vector.shape_cast %67 : vector<1x1x1x512xf32> to vector<1x512xf32>
    %69 = vector.broadcast %68 : vector<1x512xf32> to vector<8x512xf32>
    %70 = arith.mulf %66, %69 : vector<8x512xf32>
    %c3_66 = arith.constant 3 : index
    %c1_67 = arith.constant 1 : index
    %c0_68 = arith.constant 0 : index
    %c0_69 = arith.constant 0 : index
    %71 = vector.load %arg2[%c3_66, %c1_67, %c0_68, %c0_69] : memref<9x2x8x8xf32, #tpu.memory_space<vmem>>, vector<1x1x8x8xf32>
    %72 = vector.shape_cast %71 : vector<1x1x8x8xf32> to vector<8x8xf32>
    %cst_70 = arith.constant dense<0.000000e+00> : vector<8x512xf32>
    %73 = tpu.matmul %72, %70, %cst_70 {dimension_numbers = #tpu.dot_dimension_numbers<[1], [0], [0], [1], [0, 0, 1, 1], [], []>} : vector<8x8xf32>, vector<8x512xf32>, vector<8x512xf32> -> vector<8x512xf32>
    %74 = arith.addf %65, %73 : vector<8x512xf32>
    %c4 = arith.constant 4 : index
    %c0_71 = arith.constant 0 : index
    %c0_72 = arith.constant 0 : index
    %c0_73 = arith.constant 0 : index
    %75 = vector.load %arg2[%c4, %c0_71, %c0_72, %c0_73] : memref<9x2x8x8xf32, #tpu.memory_space<vmem>>, vector<1x1x8x8xf32>
    %76 = vector.shape_cast %75 : vector<1x1x8x8xf32> to vector<8x8xf32>
    %cst_74 = arith.constant dense<0.000000e+00> : vector<8x512xf32>
    %77 = tpu.matmul %76, %1, %cst_74 {dimension_numbers = #tpu.dot_dimension_numbers<[1], [0], [0], [1], [0, 0, 1, 1], [], []>} : vector<8x8xf32>, vector<8x512xf32>, vector<8x512xf32> -> vector<8x512xf32>
    %78 = arith.addf %74, %77 : vector<8x512xf32>
    %c4_75 = arith.constant 4 : index
    %c1_76 = arith.constant 1 : index
    %c0_77 = arith.constant 0 : index
    %c0_78 = arith.constant 0 : index
    %79 = vector.load %arg2[%c4_75, %c1_76, %c0_77, %c0_78] : memref<9x2x8x8xf32, #tpu.memory_space<vmem>>, vector<1x1x8x8xf32>
    %80 = vector.shape_cast %79 : vector<1x1x8x8xf32> to vector<8x8xf32>
    %cst_79 = arith.constant dense<0.000000e+00> : vector<8x512xf32>
    %81 = tpu.matmul %80, %1, %cst_79 {dimension_numbers = #tpu.dot_dimension_numbers<[1], [0], [0], [1], [0, 0, 1, 1], [], []>} : vector<8x8xf32>, vector<8x512xf32>, vector<8x512xf32> -> vector<8x512xf32>
    %82 = arith.addf %78, %81 : vector<8x512xf32>
    %c511_i32 = arith.constant 511 : i32
    %83 = tpu.dynamic_rotate %1 by %c511_i32 dim 1 : vector<8x512xf32>, i32 -> vector<8x512xf32>
    %c5 = arith.constant 5 : index
    %c0_80 = arith.constant 0 : index
    %c0_81 = arith.constant 0 : index
    %c0_82 = arith.constant 0 : index
    %84 = vector.load %arg4[%c5, %c0_80, %c0_81, %c0_82] : memref<9x2x1x512xf32, #tpu.memory_space<vmem>>, vector<1x1x1x512xf32>
    %85 = vector.shape_cast %84 : vector<1x1x1x512xf32> to vector<1x512xf32>
    %86 = vector.broadcast %85 : vector<1x512xf32> to vector<8x512xf32>
    %87 = arith.mulf %83, %86 : vector<8x512xf32>
    %c5_83 = arith.constant 5 : index
    %c0_84 = arith.constant 0 : index
    %c0_85 = arith.constant 0 : index
    %c0_86 = arith.constant 0 : index
    %88 = vector.load %arg2[%c5_83, %c0_84, %c0_85, %c0_86] : memref<9x2x8x8xf32, #tpu.memory_space<vmem>>, vector<1x1x8x8xf32>
    %89 = vector.shape_cast %88 : vector<1x1x8x8xf32> to vector<8x8xf32>
    %cst_87 = arith.constant dense<0.000000e+00> : vector<8x512xf32>
    %90 = tpu.matmul %89, %87, %cst_87 {dimension_numbers = #tpu.dot_dimension_numbers<[1], [0], [0], [1], [0, 0, 1, 1], [], []>} : vector<8x8xf32>, vector<8x512xf32>, vector<8x512xf32> -> vector<8x512xf32>
    %91 = arith.addf %82, %90 : vector<8x512xf32>
    %c510_i32 = arith.constant 510 : i32
    %92 = tpu.dynamic_rotate %1 by %c510_i32 dim 1 : vector<8x512xf32>, i32 -> vector<8x512xf32>
    %c5_88 = arith.constant 5 : index
    %c1_89 = arith.constant 1 : index
    %c0_90 = arith.constant 0 : index
    %c0_91 = arith.constant 0 : index
    %93 = vector.load %arg4[%c5_88, %c1_89, %c0_90, %c0_91] : memref<9x2x1x512xf32, #tpu.memory_space<vmem>>, vector<1x1x1x512xf32>
    %94 = vector.shape_cast %93 : vector<1x1x1x512xf32> to vector<1x512xf32>
    %95 = vector.broadcast %94 : vector<1x512xf32> to vector<8x512xf32>
    %96 = arith.mulf %92, %95 : vector<8x512xf32>
    %c5_92 = arith.constant 5 : index
    %c1_93 = arith.constant 1 : index
    %c0_94 = arith.constant 0 : index
    %c0_95 = arith.constant 0 : index
    %97 = vector.load %arg2[%c5_92, %c1_93, %c0_94, %c0_95] : memref<9x2x8x8xf32, #tpu.memory_space<vmem>>, vector<1x1x8x8xf32>
    %98 = vector.shape_cast %97 : vector<1x1x8x8xf32> to vector<8x8xf32>
    %cst_96 = arith.constant dense<0.000000e+00> : vector<8x512xf32>
    %99 = tpu.matmul %98, %96, %cst_96 {dimension_numbers = #tpu.dot_dimension_numbers<[1], [0], [0], [1], [0, 0, 1, 1], [], []>} : vector<8x8xf32>, vector<8x512xf32>, vector<8x512xf32> -> vector<8x512xf32>
    %100 = arith.addf %91, %99 : vector<8x512xf32>
    %c497_i32 = arith.constant 497 : i32
    %101 = tpu.dynamic_rotate %1 by %c497_i32 dim 1 : vector<8x512xf32>, i32 -> vector<8x512xf32>
    %c6 = arith.constant 6 : index
    %c0_97 = arith.constant 0 : index
    %c0_98 = arith.constant 0 : index
    %c0_99 = arith.constant 0 : index
    %102 = vector.load %arg4[%c6, %c0_97, %c0_98, %c0_99] : memref<9x2x1x512xf32, #tpu.memory_space<vmem>>, vector<1x1x1x512xf32>
    %103 = vector.shape_cast %102 : vector<1x1x1x512xf32> to vector<1x512xf32>
    %104 = vector.broadcast %103 : vector<1x512xf32> to vector<8x512xf32>
    %105 = arith.mulf %101, %104 : vector<8x512xf32>
    %c6_100 = arith.constant 6 : index
    %c0_101 = arith.constant 0 : index
    %c0_102 = arith.constant 0 : index
    %c0_103 = arith.constant 0 : index
    %106 = vector.load %arg2[%c6_100, %c0_101, %c0_102, %c0_103] : memref<9x2x8x8xf32, #tpu.memory_space<vmem>>, vector<1x1x8x8xf32>
    %107 = vector.shape_cast %106 : vector<1x1x8x8xf32> to vector<8x8xf32>
    %cst_104 = arith.constant dense<0.000000e+00> : vector<8x512xf32>
    %108 = tpu.matmul %107, %105, %cst_104 {dimension_numbers = #tpu.dot_dimension_numbers<[1], [0], [0], [1], [0, 0, 1, 1], [], []>} : vector<8x8xf32>, vector<8x512xf32>, vector<8x512xf32> -> vector<8x512xf32>
    %109 = arith.addf %100, %108 : vector<8x512xf32>
    %c482_i32 = arith.constant 482 : i32
    %110 = tpu.dynamic_rotate %1 by %c482_i32 dim 1 : vector<8x512xf32>, i32 -> vector<8x512xf32>
    %c6_105 = arith.constant 6 : index
    %c1_106 = arith.constant 1 : index
    %c0_107 = arith.constant 0 : index
    %c0_108 = arith.constant 0 : index
    %111 = vector.load %arg4[%c6_105, %c1_106, %c0_107, %c0_108] : memref<9x2x1x512xf32, #tpu.memory_space<vmem>>, vector<1x1x1x512xf32>
    %112 = vector.shape_cast %111 : vector<1x1x1x512xf32> to vector<1x512xf32>
    %113 = vector.broadcast %112 : vector<1x512xf32> to vector<8x512xf32>
    %114 = arith.mulf %110, %113 : vector<8x512xf32>
    %c6_109 = arith.constant 6 : index
    %c1_110 = arith.constant 1 : index
    %c0_111 = arith.constant 0 : index
    %c0_112 = arith.constant 0 : index
    %115 = vector.load %arg2[%c6_109, %c1_110, %c0_111, %c0_112] : memref<9x2x8x8xf32, #tpu.memory_space<vmem>>, vector<1x1x8x8xf32>
    %116 = vector.shape_cast %115 : vector<1x1x8x8xf32> to vector<8x8xf32>
    %cst_113 = arith.constant dense<0.000000e+00> : vector<8x512xf32>
    %117 = tpu.matmul %116, %114, %cst_113 {dimension_numbers = #tpu.dot_dimension_numbers<[1], [0], [0], [1], [0, 0, 1, 1], [], []>} : vector<8x8xf32>, vector<8x512xf32>, vector<8x512xf32> -> vector<8x512xf32>
    %118 = arith.addf %109, %117 : vector<8x512xf32>
    %c496_i32 = arith.constant 496 : i32
    %119 = tpu.dynamic_rotate %1 by %c496_i32 dim 1 : vector<8x512xf32>, i32 -> vector<8x512xf32>
    %c7 = arith.constant 7 : index
    %c0_114 = arith.constant 0 : index
    %c0_115 = arith.constant 0 : index
    %c0_116 = arith.constant 0 : index
    %120 = vector.load %arg4[%c7, %c0_114, %c0_115, %c0_116] : memref<9x2x1x512xf32, #tpu.memory_space<vmem>>, vector<1x1x1x512xf32>
    %121 = vector.shape_cast %120 : vector<1x1x1x512xf32> to vector<1x512xf32>
    %122 = vector.broadcast %121 : vector<1x512xf32> to vector<8x512xf32>
    %123 = arith.mulf %119, %122 : vector<8x512xf32>
    %c7_117 = arith.constant 7 : index
    %c0_118 = arith.constant 0 : index
    %c0_119 = arith.constant 0 : index
    %c0_120 = arith.constant 0 : index
    %124 = vector.load %arg2[%c7_117, %c0_118, %c0_119, %c0_120] : memref<9x2x8x8xf32, #tpu.memory_space<vmem>>, vector<1x1x8x8xf32>
    %125 = vector.shape_cast %124 : vector<1x1x8x8xf32> to vector<8x8xf32>
    %cst_121 = arith.constant dense<0.000000e+00> : vector<8x512xf32>
    %126 = tpu.matmul %125, %123, %cst_121 {dimension_numbers = #tpu.dot_dimension_numbers<[1], [0], [0], [1], [0, 0, 1, 1], [], []>} : vector<8x8xf32>, vector<8x512xf32>, vector<8x512xf32> -> vector<8x512xf32>
    %127 = arith.addf %118, %126 : vector<8x512xf32>
    %c480_i32 = arith.constant 480 : i32
    %128 = tpu.dynamic_rotate %1 by %c480_i32 dim 1 : vector<8x512xf32>, i32 -> vector<8x512xf32>
    %c7_122 = arith.constant 7 : index
    %c1_123 = arith.constant 1 : index
    %c0_124 = arith.constant 0 : index
    %c0_125 = arith.constant 0 : index
    %129 = vector.load %arg4[%c7_122, %c1_123, %c0_124, %c0_125] : memref<9x2x1x512xf32, #tpu.memory_space<vmem>>, vector<1x1x1x512xf32>
    %130 = vector.shape_cast %129 : vector<1x1x1x512xf32> to vector<1x512xf32>
    %131 = vector.broadcast %130 : vector<1x512xf32> to vector<8x512xf32>
    %132 = arith.mulf %128, %131 : vector<8x512xf32>
    %c7_126 = arith.constant 7 : index
    %c1_127 = arith.constant 1 : index
    %c0_128 = arith.constant 0 : index
    %c0_129 = arith.constant 0 : index
    %133 = vector.load %arg2[%c7_126, %c1_127, %c0_128, %c0_129] : memref<9x2x8x8xf32, #tpu.memory_space<vmem>>, vector<1x1x8x8xf32>
    %134 = vector.shape_cast %133 : vector<1x1x8x8xf32> to vector<8x8xf32>
    %cst_130 = arith.constant dense<0.000000e+00> : vector<8x512xf32>
    %135 = tpu.matmul %134, %132, %cst_130 {dimension_numbers = #tpu.dot_dimension_numbers<[1], [0], [0], [1], [0, 0, 1, 1], [], []>} : vector<8x8xf32>, vector<8x512xf32>, vector<8x512xf32> -> vector<8x512xf32>
    %136 = arith.addf %127, %135 : vector<8x512xf32>
    %c495_i32 = arith.constant 495 : i32
    %137 = tpu.dynamic_rotate %1 by %c495_i32 dim 1 : vector<8x512xf32>, i32 -> vector<8x512xf32>
    %c8 = arith.constant 8 : index
    %c0_131 = arith.constant 0 : index
    %c0_132 = arith.constant 0 : index
    %c0_133 = arith.constant 0 : index
    %138 = vector.load %arg4[%c8, %c0_131, %c0_132, %c0_133] : memref<9x2x1x512xf32, #tpu.memory_space<vmem>>, vector<1x1x1x512xf32>
    %139 = vector.shape_cast %138 : vector<1x1x1x512xf32> to vector<1x512xf32>
    %140 = vector.broadcast %139 : vector<1x512xf32> to vector<8x512xf32>
    %141 = arith.mulf %137, %140 : vector<8x512xf32>
    %c8_134 = arith.constant 8 : index
    %c0_135 = arith.constant 0 : index
    %c0_136 = arith.constant 0 : index
    %c0_137 = arith.constant 0 : index
    %142 = vector.load %arg2[%c8_134, %c0_135, %c0_136, %c0_137] : memref<9x2x8x8xf32, #tpu.memory_space<vmem>>, vector<1x1x8x8xf32>
    %143 = vector.shape_cast %142 : vector<1x1x8x8xf32> to vector<8x8xf32>
    %cst_138 = arith.constant dense<0.000000e+00> : vector<8x512xf32>
    %144 = tpu.matmul %143, %141, %cst_138 {dimension_numbers = #tpu.dot_dimension_numbers<[1], [0], [0], [1], [0, 0, 1, 1], [], []>} : vector<8x8xf32>, vector<8x512xf32>, vector<8x512xf32> -> vector<8x512xf32>
    %145 = arith.addf %136, %144 : vector<8x512xf32>
    %c478_i32 = arith.constant 478 : i32
    %146 = tpu.dynamic_rotate %1 by %c478_i32 dim 1 : vector<8x512xf32>, i32 -> vector<8x512xf32>
    %c8_139 = arith.constant 8 : index
    %c1_140 = arith.constant 1 : index
    %c0_141 = arith.constant 0 : index
    %c0_142 = arith.constant 0 : index
    %147 = vector.load %arg4[%c8_139, %c1_140, %c0_141, %c0_142] : memref<9x2x1x512xf32, #tpu.memory_space<vmem>>, vector<1x1x1x512xf32>
    %148 = vector.shape_cast %147 : vector<1x1x1x512xf32> to vector<1x512xf32>
    %149 = vector.broadcast %148 : vector<1x512xf32> to vector<8x512xf32>
    %150 = arith.mulf %146, %149 : vector<8x512xf32>
    %c8_143 = arith.constant 8 : index
    %c1_144 = arith.constant 1 : index
    %c0_145 = arith.constant 0 : index
    %c0_146 = arith.constant 0 : index
    %151 = vector.load %arg2[%c8_143, %c1_144, %c0_145, %c0_146] : memref<9x2x8x8xf32, #tpu.memory_space<vmem>>, vector<1x1x8x8xf32>
    %152 = vector.shape_cast %151 : vector<1x1x8x8xf32> to vector<8x8xf32>
    %cst_147 = arith.constant dense<0.000000e+00> : vector<8x512xf32>
    %153 = tpu.matmul %152, %150, %cst_147 {dimension_numbers = #tpu.dot_dimension_numbers<[1], [0], [0], [1], [0, 0, 1, 1], [], []>} : vector<8x8xf32>, vector<8x512xf32>, vector<8x512xf32> -> vector<8x512xf32>
    %154 = arith.addf %145, %153 : vector<8x512xf32>
    %c0_148 = arith.constant 0 : index
    %c0_149 = arith.constant 0 : index
    %155 = vector.load %arg3[%c0_148, %c0_149] : memref<8x1xf32, #tpu.memory_space<vmem>>, vector<8x1xf32>
    %156 = vector.broadcast %155 : vector<8x1xf32> to vector<8x512xf32>
    %157 = arith.addf %154, %156 : vector<8x512xf32>
    %c0_150 = arith.constant 0 : index
    %c0_151 = arith.constant 0 : index
    %c0_152 = arith.constant 0 : index
    %158 = vector.load %arg5[%c0_150, %c0_151, %c0_152] : memref<1x8x512xf32, #tpu.memory_space<vmem>>, vector<1x8x512xf32>
    %159 = vector.shape_cast %158 : vector<1x8x512xf32> to vector<8x512xf32>
    %160 = vector.shape_cast %157 : vector<8x512xf32> to vector<1x8x512xf32>
    tpu.vector_store %arg5[%c0_150, %c0_151, %c0_152], %160 {strides = array<i32>} : memref<1x8x512xf32, #tpu.memory_space<vmem>>, vector<1x8x512xf32>,
    return
  }
  func.func @transform_0(%arg0: i32) -> (i32, i32, i32) {
    %c0_i32 = arith.constant 0 : i32
    %c0_i32_0 = arith.constant 0 : i32
    %c0_i32_1 = arith.constant 0 : i32
    return %arg0, %c0_i32, %c0_i32_0 : i32, i32, i32
  }
  func.func @transform_1(%arg0: i32) -> (i32, i32, i32, i32) {
    %c0_i32 = arith.constant 0 : i32
    %c0_i32_0 = arith.constant 0 : i32
    %c0_i32_1 = arith.constant 0 : i32
    %c0_i32_2 = arith.constant 0 : i32
    %c0_i32_3 = arith.constant 0 : i32
    return %c0_i32, %c0_i32_0, %c0_i32_1, %c0_i32_2 : i32, i32, i32, i32
  }
  func.func @transform_2(%arg0: i32) -> (i32, i32) {
    %c0_i32 = arith.constant 0 : i32
    %c0_i32_0 = arith.constant 0 : i32
    %c0_i32_1 = arith.constant 0 : i32
    return %c0_i32, %c0_i32_0 : i32, i32
  }
  func.func @transform_3(%arg0: i32) -> (i32, i32, i32, i32) {
    %c0_i32 = arith.constant 0 : i32
    %c0_i32_0 = arith.constant 0 : i32
    %c0_i32_1 = arith.constant 0 : i32
    %c0_i32_2 = arith.constant 0 : i32
    %c0_i32_3 = arith.constant 0 : i32
    return %c0_i32, %c0_i32_0, %c0_i32_1, %c0_i32_2 : i32, i32, i32, i32
  }
  func.func @transform_4(%arg0: i32) -> (i32, i32, i32) {
    %c0_i32 = arith.constant 0 : i32
    %c0_i32_0 = arith.constant 0 : i32
    %c0_i32_1 = arith.constant 0 : i32
    return %arg0, %c0_i32, %c0_i32_0 : i32, i32, i32
  }
}

</mosaic_0001>

<llo_original>
// kernel: tpu_custom_call.1
$region0: #{tpu_custom_call.1}
  #allocation0 [shape = 'u32[]', space=smem, size = 0x4, offset = 0x4, fixed_abs, tag = 'smem constant byte address 0x4 - core index']
  #allocation1 [shape = 'u32[144,128]{1,0:T(1,128)}', space=vmem, size = 0x12000, scoped, tag = 'internal scratch']
  %s0 = inlined_call_operand.vmem [shape: f32[1,8,512], index: 0, kind: input, shape index: {}]
  %s1 = inlined_call_operand.vmem [shape: f32[9,2,8,8], index: 1, kind: input, shape index: {}]
  %s2 = inlined_call_operand.vmem [shape: f32[8,1], index: 2, kind: input, shape index: {}]
  %s3 = inlined_call_operand.vmem [shape: f32[9,2,1,512], index: 3, kind: input, shape index: {}]
  %s4 = inlined_call_operand.hbm [shape: f32[1,8,512], index: 4, kind: output, shape index: {}]
  %s5 = sld [smem:[#allocation0]]
  $region26: #{tpu_custom_call.1} parent=0
    _
  %s7 = ssub.s32 1, %s5
  %s8 = scalar_select 0, %s7, %s5
  $region1: #{tpu_custom_call.1} parent=0
    #allocation2 [shape = 'u8[16384]{0}', space=vmem, size = 0x4000, scoped, tag = 'output window, operand 0, single buffered']
    #allocation3 [shape = 's32[1]{0}', space=sflag, size = 0x4, scoped, tag = 'scoped memory for tpu_custom_call.1']
    %9 = vsyncpa [#allocation3], 0
    // Predicated region
    $region2: #{tpu_custom_call.1} parent=1 // pred_check
      _
    $region3: #{tpu_custom_call.1} parent=1 // pred_check_branch
      %11 = sbr.rel (0) target = $region5
    $region4: #{tpu_custom_call.1} parent=1 // pred_region
      _
    $region5: #{tpu_custom_call.1} parent=1 // pred_fallthru
      _
    // Predicated region
    $region6: #{tpu_custom_call.1} parent=1 // pred_check
      _
    $region7: #{tpu_custom_call.1} parent=1 // pred_check_branch
      %13 = sbr.rel (0) target = $region9
    $region8: #{tpu_custom_call.1} parent=1 // pred_region
      _
    $region9: #{tpu_custom_call.1} parent=1 // pred_fallthru
      _
    // Predicated region
    $region10: #{tpu_custom_call.1} parent=1 // pred_check
      _
    $region11: #{tpu_custom_call.1} parent=1 // pred_check_branch
      %15 = sbr.rel (0) target = $region13
    $region12: #{tpu_custom_call.1} parent=1 // pred_region
      _
    $region13: #{tpu_custom_call.1} parent=1 // pred_fallthru
      _
    // Predicated region
    $region14: #{tpu_custom_call.1} parent=1 // pred_check
      _
    $region15: #{tpu_custom_call.1} parent=1 // pred_check_branch
      %17 = sbr.rel (0) target = $region17
    $region16: #{tpu_custom_call.1} parent=1 // pred_region
      _
    $region17: #{tpu_custom_call.1} parent=1 // pred_fallthru
      _
    %v18 = vld [vmem:[%s0] sm:$0xff]
    %v19 = vld [vmem:[%s0 + $0x8] sm:$0xff]
    %v20 = vld [vmem:[%s0 + $0x10] sm:$0xff]
    %v21 = vld [vmem:[%s0 + $0x18] sm:$0xff]
    %22 = vrot.lane.b32.xlu0 %v18, 17
    %v23 = vpop.permute.xlu0 %22
    %24 = vrot.lane.b32.xlu0 %v19, 17
    %v25 = vpop.permute.xlu0 %24
    %26 = vrot.lane.b32.xlu0 %v20, 17
    %v27 = vpop.permute.xlu0 %26
    %28 = vrot.lane.b32.xlu0 %v21, 17
    %v29 = vpop.permute.xlu0 %28
    %v30 = vlaneseq
    %v31 = vand.u32 %v30, 127
    %vm32 = vcmp.lt.s32.totalorder %v31, 17
    %v33 = vsel %vm32, %v27, %v29
    %v34 = vsel %vm32, %v25, %v27
    %v35 = vsel %vm32, %v23, %v25
    %v36 = vsel %vm32, %v29, %v23
    %v37 = vld [vmem:[%s3] sm:$0xf]
    %v39 = vlaneseq
    %v40 = vshrl.u32 %v39, 7
    %v41 = vsub.s32 0, %v40
    %v42 = vrot.slane %v37, %v41
    %v43 = vlaneseq
    %v44 = vshrl.u32 %v43, 7
    %v45 = vsub.s32 1, %v44
    %v46 = vrot.slane %v37, %v45
    %v47 = vlaneseq
    %v48 = vshrl.u32 %v47, 7
    %v49 = vsub.s32 2, %v48
    %v50 = vrot.slane %v37, %v49
    %v51 = vlaneseq
    %v52 = vshrl.u32 %v51, 7
    %v53 = vsub.s32 3, %v52
    %v54 = vrot.slane %v37, %v53
    %v59 = vmul.f32 %v36, %v42
    %v60 = vmul.f32 %v35, %v46
    %v61 = vmul.f32 %v34, %v50
    %v62 = vmul.f32 %v33, %v54
    %v63 = vld [vmem:[%s1] sm:$0xff]
    %64 = vrot.lane.b32.xlu0 %v18, 34
    %v65 = vpop.permute.xlu0 %64
    %66 = vrot.lane.b32.xlu0 %v19, 34
    %v67 = vpop.permute.xlu0 %66
    %68 = vrot.lane.b32.xlu0 %v20, 34
    %v69 = vpop.permute.xlu0 %68
    %70 = vrot.lane.b32.xlu0 %v21, 34
    %v71 = vpop.permute.xlu0 %70
    %vm72 = vcmp.lt.s32.totalorder %v31, 34
    %v73 = vsel %vm72, %v69, %v71
    %v74 = vsel %vm72, %v67, %v69
    %v75 = vsel %vm72, %v65, %v67
    %v76 = vsel %vm72, %v71, %v65
    %s77 = scalar_lea.vmem %s3, 4
    %v78 = vld [vmem:[%s77] sm:$0xf]
    %v80 = vlaneseq
    %v81 = vshrl.u32 %v80, 7
    %v82 = vsub.s32 0, %v81
    %v83 = vrot.slane %v78, %v82
    %v84 = vlaneseq
    %v85 = vshrl.u32 %v84, 7
    %v86 = vsub.s32 1, %v85
    %v87 = vrot.slane %v78, %v86
    %v88 = vlaneseq
    %v89 = vshrl.u32 %v88, 7
    %v90 = vsub.s32 2, %v89
    %v91 = vrot.slane %v78, %v90
    %v92 = vlaneseq
    %v93 = vshrl.u32 %v92, 7
    %v94 = vsub.s32 3, %v93
    %v95 = vrot.slane %v78, %v94
    %v100 = vmul.f32 %v76, %v83
    %v101 = vmul.f32 %v75, %v87
    %v102 = vmul.f32 %v74, %v91
    %v103 = vmul.f32 %v73, %v95
    %s104 = scalar_lea.vmem %s1, 8
    %v105 = vld [vmem:[%s104] sm:$0xff]
    %vm106 = vcmask 64512
    %v108 = vsel %vm106, %v105, 0
    %110 = vmatprep.subr.mxu0 0.0
    %111 = vmatpush1.msra.mxu0 0.0
    %112 = vmatprep.subr.mxu0 0.0
    %113 = vmatpush1.msra.mxu0 0.0
    %114 = vmatprep.subr.mxu0 0.0
    %115 = vmatpush1.msra.mxu0 0.0
    %116 = vmatprep.subr.mxu0 0.0
    %117 = vmatpush1.msra.mxu0 0.0
    %118 = vmatprep.subr.mxu0 0.0
    %119 = vmatpush1.msra.mxu0 0.0
    %120 = vmatprep.subr.mxu0 0.0
    %121 = vmatpush1.msra.mxu0 0.0
    %122 = vmatprep.subr.mxu0 0.0
    %123 = vmatpush1.msra.mxu0 0.0
    %124 = vmatprep.subr.mxu0 0.0
    %125 = vmatpush1.msra.mxu0 0.0
    %126 = vmatprep.subr.mxu0 0.0
    %127 = vmatpush1.msra.mxu0 0.0
    %128 = vmatprep.subr.mxu0 0.0
    %129 = vmatpush1.msra.mxu0 0.0
    %130 = vmatprep.subr.mxu0 0.0
    %131 = vmatpush1.msra.mxu0 0.0
    %132 = vmatprep.subr.mxu0 0.0
    %133 = vmatpush1.msra.mxu0 0.0
    %134 = vmatprep.subr.mxu0 0.0
    %135 = vmatpush1.msra.mxu0 0.0
    %136 = vmatprep.subr.mxu0 0.0
    %137 = vmatpush1.msra.mxu0 0.0
    %138 = vmatprep.subr.mxu0 0.0
    %139 = vmatpush1.msra.mxu0 0.0
    %140 = vmatprep.subr.mxu0 %v101
    %141 = vmatpush1.msra.mxu0 %v100
    %142 = vmatprep.subr.mxu0 0.0
    %143 = vmatpush2.msra.mxu0 0.0
    %144 = vmatprep.subr.mxu0 0.0
    %145 = vmatpush2.msra.mxu0 0.0
    %146 = vmatprep.subr.mxu0 0.0
    %147 = vmatpush2.msra.mxu0 0.0
    %148 = vmatprep.subr.mxu0 0.0
    %149 = vmatpush2.msra.mxu0 0.0
    %150 = vmatprep.subr.mxu0 0.0
    %151 = vmatpush2.msra.mxu0 0.0
    %152 = vmatprep.subr.mxu0 0.0
    %153 = vmatpush2.msra.mxu0 0.0
    %154 = vmatprep.subr.mxu0 0.0
    %155 = vmatpush2.msra.mxu0 0.0
    %156 = vmatprep.subr.mxu0 0.0
    %157 = vmatpush2.msra.mxu0 0.0
    %158 = vmatprep.subr.mxu0 0.0
    %159 = vmatpush2.msra.mxu0 0.0
    %160 = vmatprep.subr.mxu0 0.0
    %161 = vmatpush2.msra.mxu0 0.0
    %162 = vmatprep.subr.mxu0 0.0
    %163 = vmatpush2.msra.mxu0 0.0
    %164 = vmatprep.subr.mxu0 0.0
    %165 = vmatpush2.msra.mxu0 0.0
    %166 = vmatprep.subr.mxu0 0.0
    %167 = vmatpush2.msra.mxu0 0.0
    %168 = vmatprep.subr.mxu0 0.0
    %169 = vmatpush2.msra.mxu0 0.0
    %170 = vmatprep.subr.mxu0 0.0
    %171 = vmatpush2.msra.mxu0 0.0
    %172 = vmatprep.subr.mxu0 0.0
    %173 = vmatpush2.msra.mxu0 0.0
    %174 = vmatprep.mubr.f32.mxu0 0.0
    %175 = vmatmul.mubr.f32.gmra.mxu0 %v108
    %v176 = vpop.f32.mrf.mxu0
    %v177 = vadd.f32 0.0, %v176
    %v178 = vpop.f32.mrf.mxu0
    %v179 = vadd.f32 0.0, %v178
    %180 = vdwg.mxu0
    %181 = vmatprep.subr.mxu0 0.0
    %182 = vmatpush1.msra.mxu0 0.0
    %183 = vmatprep.subr.mxu0 0.0
    %184 = vmatpush1.msra.mxu0 0.0
    %185 = vmatprep.subr.mxu0 0.0
    %186 = vmatpush1.msra.mxu0 0.0
    %187 = vmatprep.subr.mxu0 0.0
    %188 = vmatpush1.msra.mxu0 0.0
    %189 = vmatprep.subr.mxu0 0.0
    %190 = vmatpush1.msra.mxu0 0.0
    %191 = vmatprep.subr.mxu0 0.0
    %192 = vmatpush1.msra.mxu0 0.0
    %193 = vmatprep.subr.mxu0 0.0
    %194 = vmatpush1.msra.mxu0 0.0
    %195 = vmatprep.subr.mxu0 0.0
    %196 = vmatpush1.msra.mxu0 0.0
    %197 = vmatprep.subr.mxu0 0.0
    %198 = vmatpush1.msra.mxu0 0.0
    %199 = vmatprep.subr.mxu0 0.0
    %200 = vmatpush1.msra.mxu0 0.0
    %201 = vmatprep.subr.mxu0 0.0
    %202 = vmatpush1.msra.mxu0 0.0
    %203 = vmatprep.subr.mxu0 0.0
    %204 = vmatpush1.msra.mxu0 0.0
    %205 = vmatprep.subr.mxu0 0.0
    %206 = vmatpush1.msra.mxu0 0.0
    %207 = vmatprep.subr.mxu0 0.0
    %208 = vmatpush1.msra.mxu0 0.0
    %209 = vmatprep.subr.mxu0 0.0
    %210 = vmatpush1.msra.mxu0 0.0
    %211 = vmatprep.subr.mxu0 %v103
    %212 = vmatpush1.msra.mxu0 %v102
    %213 = vmatprep.subr.mxu0 0.0
    %214 = vmatpush2.msra.mxu0 0.0
    %215 = vmatprep.subr.mxu0 0.0
    %216 = vmatpush2.msra.mxu0 0.0
    %217 = vmatprep.subr.mxu0 0.0
    %218 = vmatpush2.msra.mxu0 0.0
    %219 = vmatprep.subr.mxu0 0.0
    %220 = vmatpush2.msra.mxu0 0.0
    %221 = vmatprep.subr.mxu0 0.0
    %222 = vmatpush2.msra.mxu0 0.0
    %223 = vmatprep.subr.mxu0 0.0
    %224 = vmatpush2.msra.mxu0 0.0
    %225 = vmatprep.subr.mxu0 0.0
    %226 = vmatpush2.msra.mxu0 0.0
    %227 = vmatprep.subr.mxu0 0.0
    %228 = vmatpush2.msra.mxu0 0.0
    %229 = vmatprep.subr.mxu0 0.0
    %230 = vmatpush2.msra.mxu0 0.0
    %231 = vmatprep.subr.mxu0 0.0
    %232 = vmatpush2.msra.mxu0 0.0
    %233 = vmatprep.subr.mxu0 0.0
    %234 = vmatpush2.msra.mxu0 0.0
    %235 = vmatprep.subr.mxu0 0.0
    %236 = vmatpush2.msra.mxu0 0.0
    %237 = vmatprep.subr.mxu0 0.0
    %238 = vmatpush2.msra.mxu0 0.0
    %239 = vmatprep.subr.mxu0 0.0
    %240 = vmatpush2.msra.mxu0 0.0
    %241 = vmatprep.subr.mxu0 0.0
    %242 = vmatpush2.msra.mxu0 0.0
    %243 = vmatprep.subr.mxu0 0.0
    %244 = vmatpush2.msra.mxu0 0.0
    %245 = vmatprep.mubr.f32.mxu0 0.0
    %246 = vmatmul.mubr.f32.gmra.mxu0 %v108
    %v247 = vpop.f32.mrf.mxu0
    %v248 = vadd.f32 0.0, %v247
    %v249 = vpop.f32.mrf.mxu0
    %v250 = vadd.f32 0.0, %v249
    %251 = vdwg.mxu0
    %v253 = vsel %vm106, %v63, 0
    %255 = vmatprep.subr.mxu0 0.0
    %256 = vmatpush1.msra.mxu0 0.0
    %257 = vmatprep.subr.mxu0 0.0
    %258 = vmatpush1.msra.mxu0 0.0
    %259 = vmatprep.subr.mxu0 0.0
    %260 = vmatpush1.msra.mxu0 0.0
    %261 = vmatprep.subr.mxu0 0.0
    %262 = vmatpush1.msra.mxu0 0.0
    %263 = vmatprep.subr.mxu0 0.0
    %264 = vmatpush1.msra.mxu0 0.0
    %265 = vmatprep.subr.mxu0 0.0
    %266 = vmatpush1.msra.mxu0 0.0
    %267 = vmatprep.subr.mxu0 0.0
    %268 = vmatpush1.msra.mxu0 0.0
    %269 = vmatprep.subr.mxu0 0.0
    %270 = vmatpush1.msra.mxu0 0.0
    %271 = vmatprep.subr.mxu0 0.0
    %272 = vmatpush1.msra.mxu0 0.0
    %273 = vmatprep.subr.mxu0 0.0
    %274 = vmatpush1.msra.mxu0 0.0
    %275 = vmatprep.subr.mxu0 0.0
    %276 = vmatpush1.msra.mxu0 0.0
    %277 = vmatprep.subr.mxu0 0.0
    %278 = vmatpush1.msra.mxu0 0.0
    %279 = vmatprep.subr.mxu0 0.0
    %280 = vmatpush1.msra.mxu0 0.0
    %281 = vmatprep.subr.mxu0 0.0
    %282 = vmatpush1.msra.mxu0 0.0
    %283 = vmatprep.subr.mxu0 0.0
    %284 = vmatpush1.msra.mxu0 0.0
    %285 = vmatprep.subr.mxu0 %v60
    %286 = vmatpush1.msra.mxu0 %v59
    %287 = vmatprep.subr.mxu0 0.0
    %288 = vmatpush2.msra.mxu0 0.0
    %289 = vmatprep.subr.mxu0 0.0
    %290 = vmatpush2.msra.mxu0 0.0
    %291 = vmatprep.subr.mxu0 0.0
    %292 = vmatpush2.msra.mxu0 0.0
    %293 = vmatprep.subr.mxu0 0.0
    %294 = vmatpush2.msra.mxu0 0.0
    %295 = vmatprep.subr.mxu0 0.0
    %296 = vmatpush2.msra.mxu0 0.0
    %297 = vmatprep.subr.mxu0 0.0
    %298 = vmatpush2.msra.mxu0 0.0
    %299 = vmatprep.subr.mxu0 0.0
    %300 = vmatpush2.msra.mxu0 0.0
    %301 = vmatprep.subr.mxu0 0.0
    %302 = vmatpush2.msra.mxu0 0.0
    %303 = vmatprep.subr.mxu0 0.0
    %304 = vmatpush2.msra.mxu0 0.0
    %305 = vmatprep.subr.mxu0 0.0
    %306 = vmatpush2.msra.mxu0 0.0
    %307 = vmatprep.subr.mxu0 0.0
    %308 = vmatpush2.msra.mxu0 0.0
    %309 = vmatprep.subr.mxu0 0.0
    %310 = vmatpush2.msra.mxu0 0.0
    %311 = vmatprep.subr.mxu0 0.0
    %312 = vmatpush2.msra.mxu0 0.0
    %313 = vmatprep.subr.mxu0 0.0
    %314 = vmatpush2.msra.mxu0 0.0
    %315 = vmatprep.subr.mxu0 0.0
    %316 = vmatpush2.msra.mxu0 0.0
    %317 = vmatprep.subr.mxu0 0.0
    %318 = vmatpush2.msra.mxu0 0.0
    %319 = vmatprep.mubr.f32.mxu0 0.0
    %320 = vmatmul.mubr.f32.gmra.mxu0 %v253
    %v321 = vpop.f32.mrf.mxu0
    %v322 = vadd.f32 %v177, %v321
    %v323 = vpop.f32.mrf.mxu0
    %v324 = vadd.f32 %v179, %v323
    %325 = vdwg.mxu0
    %326 = vmatprep.subr.mxu0 0.0
    %327 = vmatpush1.msra.mxu0 0.0
    %328 = vmatprep.subr.mxu0 0.0
    %329 = vmatpush1.msra.mxu0 0.0
    %330 = vmatprep.subr.mxu0 0.0
    %331 = vmatpush1.msra.mxu0 0.0
    %332 = vmatprep.subr.mxu0 0.0
    %333 = vmatpush1.msra.mxu0 0.0
    %334 = vmatprep.subr.mxu0 0.0
    %335 = vmatpush1.msra.mxu0 0.0
    %336 = vmatprep.subr.mxu0 0.0
    %337 = vmatpush1.msra.mxu0 0.0
    %338 = vmatprep.subr.mxu0 0.0
    %339 = vmatpush1.msra.mxu0 0.0
    %340 = vmatprep.subr.mxu0 0.0
    %341 = vmatpush1.msra.mxu0 0.0
    %342 = vmatprep.subr.mxu0 0.0
    %343 = vmatpush1.msra.mxu0 0.0
    %344 = vmatprep.subr.mxu0 0.0
    %345 = vmatpush1.msra.mxu0 0.0
    %346 = vmatprep.subr.mxu0 0.0
    %347 = vmatpush1.msra.mxu0 0.0
    %348 = vmatprep.subr.mxu0 0.0
    %349 = vmatpush1.msra.mxu0 0.0
    %350 = vmatprep.subr.mxu0 0.0
    %351 = vmatpush1.msra.mxu0 0.0
    %352 = vmatprep.subr.mxu0 0.0
    %353 = vmatpush1.msra.mxu0 0.0
    %354 = vmatprep.subr.mxu0 0.0
    %355 = vmatpush1.msra.mxu0 0.0
    %356 = vmatprep.subr.mxu0 %v62
    %357 = vmatpush1.msra.mxu0 %v61
    %358 = vmatprep.subr.mxu0 0.0
    %359 = vmatpush2.msra.mxu0 0.0
    %360 = vmatprep.subr.mxu0 0.0
    %361 = vmatpush2.msra.mxu0 0.0
    %362 = vmatprep.subr.mxu0 0.0
    %363 = vmatpush2.msra.mxu0 0.0
    %364 = vmatprep.subr.mxu0 0.0
    %365 = vmatpush2.msra.mxu0 0.0
    %366 = vmatprep.subr.mxu0 0.0
    %367 = vmatpush2.msra.mxu0 0.0
    %368 = vmatprep.subr.mxu0 0.0
    %369 = vmatpush2.msra.mxu0 0.0
    %370 = vmatprep.subr.mxu0 0.0
    %371 = vmatpush2.msra.mxu0 0.0
    %372 = vmatprep.subr.mxu0 0.0
    %373 = vmatpush2.msra.mxu0 0.0
    %374 = vmatprep.subr.mxu0 0.0
    %375 = vmatpush2.msra.mxu0 0.0
    %376 = vmatprep.subr.mxu0 0.0
    %377 = vmatpush2.msra.mxu0 0.0
    %378 = vmatprep.subr.mxu0 0.0
    %379 = vmatpush2.msra.mxu0 0.0
    %380 = vmatprep.subr.mxu0 0.0
    %381 = vmatpush2.msra.mxu0 0.0
    %382 = vmatprep.subr.mxu0 0.0
    %383 = vmatpush2.msra.mxu0 0.0
    %384 = vmatprep.subr.mxu0 0.0
    %385 = vmatpush2.msra.mxu0 0.0
    %386 = vmatprep.subr.mxu0 0.0
    %387 = vmatpush2.msra.mxu0 0.0
    %388 = vmatprep.subr.mxu0 0.0
    %389 = vmatpush2.msra.mxu0 0.0
    %390 = vmatprep.mubr.f32.mxu0 0.0
    %391 = vmatmul.mubr.f32.gmra.mxu0 %v253
    %v392 = vpop.f32.mrf.mxu0
    %v393 = vadd.f32 %v248, %v392
    %v394 = vpop.f32.mrf.mxu0
    %v395 = vadd.f32 %v250, %v394
    %396 = vdwg.mxu0
    %397 = vrot.lane.b32.xlu0 %v18, 16
    %v398 = vpop.permute.xlu0 %397
    %399 = vrot.lane.b32.xlu0 %v19, 16
    %v400 = vpop.permute.xlu0 %399
    %401 = vrot.lane.b32.xlu0 %v20, 16
    %v402 = vpop.permute.xlu0 %401
    %403 = vrot.lane.b32.xlu0 %v21, 16
    %v404 = vpop.permute.xlu0 %403
    %vm405 = vcmp.lt.s32.totalorder %v31, 16
    %v406 = vsel %vm405, %v402, %v404
    %v407 = vsel %vm405, %v400, %v402
    %v408 = vsel %vm405, %v398, %v400
    %v409 = vsel %vm405, %v404, %v398
    %s410 = scalar_lea.vmem %s3, 8
    %v411 = vld [vmem:[%s410] sm:$0xf]
    %v413 = vlaneseq
    %v414 = vshrl.u32 %v413, 7
    %v415 = vsub.s32 0, %v414
    %v416 = vrot.slane %v411, %v415
    %v417 = vlaneseq
    %v418 = vshrl.u32 %v417, 7
    %v419 = vsub.s32 1, %v418
    %v420 = vrot.slane %v411, %v419
    %v421 = vlaneseq
    %v422 = vshrl.u32 %v421, 7
    %v423 = vsub.s32 2, %v422
    %v424 = vrot.slane %v411, %v423
    %v425 = vlaneseq
    %v426 = vshrl.u32 %v425, 7
    %v427 = vsub.s32 3, %v426
    %v428 = vrot.slane %v411, %v427
    %v433 = vmul.f32 %v409, %v416
    %v434 = vmul.f32 %v408, %v420
    %v435 = vmul.f32 %v407, %v424
    %v436 = vmul.f32 %v406, %v428
    %s437 = scalar_lea.vmem %s1, 16
    %v438 = vld [vmem:[%s437] sm:$0xff]
    %v440 = vsel %vm106, %v438, 0
    %442 = vmatprep.subr.mxu0 0.0
    %443 = vmatpush1.msra.mxu0 0.0
    %444 = vmatprep.subr.mxu0 0.0
    %445 = vmatpush1.msra.mxu0 0.0
    %446 = vmatprep.subr.mxu0 0.0
    %447 = vmatpush1.msra.mxu0 0.0
    %448 = vmatprep.subr.mxu0 0.0
    %449 = vmatpush1.msra.mxu0 0.0
    %450 = vmatprep.subr.mxu0 0.0
    %451 = vmatpush1.msra.mxu0 0.0
    %452 = vmatprep.subr.mxu0 0.0
    %453 = vmatpush1.msra.mxu0 0.0
    %454 = vmatprep.subr.mxu0 0.0
    %455 = vmatpush1.msra.mxu0 0.0
    %456 = vmatprep.subr.mxu0 0.0
    %457 = vmatpush1.msra.mxu0 0.0
    %458 = vmatprep.subr.mxu0 0.0
    %459 = vmatpush1.msra.mxu0 0.0
    %460 = vmatprep.subr.mxu0 0.0
    %461 = vmatpush1.msra.mxu0 0.0
    %462 = vmatprep.subr.mxu0 0.0
    %463 = vmatpush1.msra.mxu0 0.0
    %464 = vmatprep.subr.mxu0 0.0
    %465 = vmatpush1.msra.mxu0 0.0
    %466 = vmatprep.subr.mxu0 0.0
    %467 = vmatpush1.msra.mxu0 0.0
    %468 = vmatprep.subr.mxu0 0.0
    %469 = vmatpush1.msra.mxu0 0.0
    %470 = vmatprep.subr.mxu0 0.0
    %471 = vmatpush1.msra.mxu0 0.0
    %472 = vmatprep.subr.mxu0 %v434
    %473 = vmatpush1.msra.mxu0 %v433
    %474 = vmatprep.subr.mxu0 0.0
    %475 = vmatpush2.msra.mxu0 0.0
    %476 = vmatprep.subr.mxu0 0.0
    %477 = vmatpush2.msra.mxu0 0.0
    %478 = vmatprep.subr.mxu0 0.0
    %479 = vmatpush2.msra.mxu0 0.0
    %480 = vmatprep.subr.mxu0 0.0
    %481 = vmatpush2.msra.mxu0 0.0
    %482 = vmatprep.subr.mxu0 0.0
    %483 = vmatpush2.msra.mxu0 0.0
    %484 = vmatprep.subr.mxu0 0.0
    %485 = vmatpush2.msra.mxu0 0.0
    %486 = vmatprep.subr.mxu0 0.0
    %487 = vmatpush2.msra.mxu0 0.0
    %488 = vmatprep.subr.mxu0 0.0
    %489 = vmatpush2.msra.mxu0 0.0
    %490 = vmatprep.subr.mxu0 0.0
    %491 = vmatpush2.msra.mxu0 0.0
    %492 = vmatprep.subr.mxu0 0.0
    %493 = vmatpush2.msra.mxu0 0.0
    %494 = vmatprep.subr.mxu0 0.0
    %495 = vmatpush2.msra.mxu0 0.0
    %496 = vmatprep.subr.mxu0 0.0
    %497 = vmatpush2.msra.mxu0 0.0
    %498 = vmatprep.subr.mxu0 0.0
    %499 = vmatpush2.msra.mxu0 0.0
    %500 = vmatprep.subr.mxu0 0.0
    %501 = vmatpush2.msra.mxu0 0.0
    %502 = vmatprep.subr.mxu0 0.0
    %503 = vmatpush2.msra.mxu0 0.0
    %504 = vmatprep.subr.mxu0 0.0
    %505 = vmatpush2.msra.mxu0 0.0
    %506 = vmatprep.mubr.f32.mxu0 0.0
    %507 = vmatmul.mubr.f32.gmra.mxu0 %v440
    %v508 = vpop.f32.mrf.mxu0
    %v509 = vadd.f32 0.0, %v508
    %v510 = vpop.f32.mrf.mxu0
    %v511 = vadd.f32 0.0, %v510
    %512 = vdwg.mxu0
    %513 = vmatprep.subr.mxu0 0.0
    %514 = vmatpush1.msra.mxu0 0.0
    %515 = vmatprep.subr.mxu0 0.0
    %516 = vmatpush1.msra.mxu0 0.0
    %517 = vmatprep.subr.mxu0 0.0
    %518 = vmatpush1.msra.mxu0 0.0
    %519 = vmatprep.subr.mxu0 0.0
    %520 = vmatpush1.msra.mxu0 0.0
    %521 = vmatprep.subr.mxu0 0.0
    %522 = vmatpush1.msra.mxu0 0.0
    %523 = vmatprep.subr.mxu0 0.0
    %524 = vmatpush1.msra.mxu0 0.0
    %525 = vmatprep.subr.mxu0 0.0
    %526 = vmatpush1.msra.mxu0 0.0
    %527 = vmatprep.subr.mxu0 0.0
    %528 = vmatpush1.msra.mxu0 0.0
    %529 = vmatprep.subr.mxu0 0.0
    %530 = vmatpush1.msra.mxu0 0.0
    %531 = vmatprep.subr.mxu0 0.0
    %532 = vmatpush1.msra.mxu0 0.0
    %533 = vmatprep.subr.mxu0 0.0
    %534 = vmatpush1.msra.mxu0 0.0
    %535 = vmatprep.subr.mxu0 0.0
    %536 = vmatpush1.msra.mxu0 0.0
    %537 = vmatprep.subr.mxu0 0.0
    %538 = vmatpush1.msra.mxu0 0.0
    %539 = vmatprep.subr.mxu0 0.0
    %540 = vmatpush1.msra.mxu0 0.0
    %541 = vmatprep.subr.mxu0 0.0
    %542 = vmatpush1.msra.mxu0 0.0
    %543 = vmatprep.subr.mxu0 %v436
    %544 = vmatpush1.msra.mxu0 %v435
    %545 = vmatprep.subr.mxu0 0.0
    %546 = vmatpush2.msra.mxu0 0.0
    %547 = vmatprep.subr.mxu0 0.0
    %548 = vmatpush2.msra.mxu0 0.0
    %549 = vmatprep.subr.mxu0 0.0
    %550 = vmatpush2.msra.mxu0 0.0
    %551 = vmatprep.subr.mxu0 0.0
    %552 = vmatpush2.msra.mxu0 0.0
    %553 = vmatprep.subr.mxu0 0.0
    %554 = vmatpush2.msra.mxu0 0.0
    %555 = vmatprep.subr.mxu0 0.0
    %556 = vmatpush2.msra.mxu0 0.0
    %557 = vmatprep.subr.mxu0 0.0
    %558 = vmatpush2.msra.mxu0 0.0
    %559 = vmatprep.subr.mxu0 0.0
    %560 = vmatpush2.msra.mxu0 0.0
    %561 = vmatprep.subr.mxu0 0.0
    %562 = vmatpush2.msra.mxu0 0.0
    %563 = vmatprep.subr.mxu0 0.0
    %564 = vmatpush2.msra.mxu0 0.0
    %565 = vmatprep.subr.mxu0 0.0
    %566 = vmatpush2.msra.mxu0 0.0
    %567 = vmatprep.subr.mxu0 0.0
    %568 = vmatpush2.msra.mxu0 0.0
    %569 = vmatprep.subr.mxu0 0.0
    %570 = vmatpush2.msra.mxu0 0.0
    %571 = vmatprep.subr.mxu0 0.0
    %572 = vmatpush2.msra.mxu0 0.0
    %573 = vmatprep.subr.mxu0 0.0
    %574 = vmatpush2.msra.mxu0 0.0
    %575 = vmatprep.subr.mxu0 0.0
    %576 = vmatpush2.msra.mxu0 0.0
    %577 = vmatprep.mubr.f32.mxu0 0.0
    %578 = vmatmul.mubr.f32.gmra.mxu0 %v440
    %v579 = vpop.f32.mrf.mxu0
    %v580 = vadd.f32 0.0, %v579
    %v581 = vpop.f32.mrf.mxu0
    %v582 = vadd.f32 0.0, %v581
    %583 = vdwg.mxu0
    %v584 = vadd.f32 %v322, %v509
    %v585 = vadd.f32 %v324, %v511
    %v586 = vadd.f32 %v393, %v580
    %v587 = vadd.f32 %v395, %v582
    %588 = vrot.lane.b32.xlu0 %v18, 32
    %v589 = vpop.permute.xlu0 %588
    %590 = vrot.lane.b32.xlu0 %v19, 32
    %v591 = vpop.permute.xlu0 %590
    %592 = vrot.lane.b32.xlu0 %v20, 32
    %v593 = vpop.permute.xlu0 %592
    %594 = vrot.lane.b32.xlu0 %v21, 32
    %v595 = vpop.permute.xlu0 %594
    %vm596 = vcmp.lt.s32.totalorder %v31, 32
    %v597 = vsel %vm596, %v593, %v595
    %v598 = vsel %vm596, %v591, %v593
    %v599 = vsel %vm596, %v589, %v591
    %v600 = vsel %vm596, %v595, %v589
    %s601 = scalar_lea.vmem %s3, 12
    %v602 = vld [vmem:[%s601] sm:$0xf]
    %v604 = vlaneseq
    %v605 = vshrl.u32 %v604, 7
    %v606 = vsub.s32 0, %v605
    %v607 = vrot.slane %v602, %v606
    %v608 = vlaneseq
    %v609 = vshrl.u32 %v608, 7
    %v610 = vsub.s32 1, %v609
    %v611 = vrot.slane %v602, %v610
    %v612 = vlaneseq
    %v613 = vshrl.u32 %v612, 7
    %v614 = vsub.s32 2, %v613
    %v615 = vrot.slane %v602, %v614
    %v616 = vlaneseq
    %v617 = vshrl.u32 %v616, 7
    %v618 = vsub.s32 3, %v617
    %v619 = vrot.slane %v602, %v618
    %v624 = vmul.f32 %v600, %v607
    %v625 = vmul.f32 %v599, %v611
    %v626 = vmul.f32 %v598, %v615
    %v627 = vmul.f32 %v597, %v619
    %s628 = scalar_lea.vmem %s1, 24
    %v629 = vld [vmem:[%s628] sm:$0xff]
    %v631 = vsel %vm106, %v629, 0
    %633 = vmatprep.subr.mxu0 0.0
    %634 = vmatpush1.msra.mxu0 0.0
    %635 = vmatprep.subr.mxu0 0.0
    %636 = vmatpush1.msra.mxu0 0.0
    %637 = vmatprep.subr.mxu0 0.0
    %638 = vmatpush1.msra.mxu0 0.0
    %639 = vmatprep.subr.mxu0 0.0
    %640 = vmatpush1.msra.mxu0 0.0
    %641 = vmatprep.subr.mxu0 0.0
    %642 = vmatpush1.msra.mxu0 0.0
    %643 = vmatprep.subr.mxu0 0.0
    %644 = vmatpush1.msra.mxu0 0.0
    %645 = vmatprep.subr.mxu0 0.0
    %646 = vmatpush1.msra.mxu0 0.0
    %647 = vmatprep.subr.mxu0 0.0
    %648 = vmatpush1.msra.mxu0 0.0
    %649 = vmatprep.subr.mxu0 0.0
    %650 = vmatpush1.msra.mxu0 0.0
    %651 = vmatprep.subr.mxu0 0.0
    %652 = vmatpush1.msra.mxu0 0.0
    %653 = vmatprep.subr.mxu0 0.0
    %654 = vmatpush1.msra.mxu0 0.0
    %655 = vmatprep.subr.mxu0 0.0
    %656 = vmatpush1.msra.mxu0 0.0
    %657 = vmatprep.subr.mxu0 0.0
    %658 = vmatpush1.msra.mxu0 0.0
    %659 = vmatprep.subr.mxu0 0.0
    %660 = vmatpush1.msra.mxu0 0.0
    %661 = vmatprep.subr.mxu0 0.0
    %662 = vmatpush1.msra.mxu0 0.0
    %663 = vmatprep.subr.mxu0 %v625
    %664 = vmatpush1.msra.mxu0 %v624
    %665 = vmatprep.subr.mxu0 0.0
    %666 = vmatpush2.msra.mxu0 0.0
    %667 = vmatprep.subr.mxu0 0.0
    %668 = vmatpush2.msra.mxu0 0.0
    %669 = vmatprep.subr.mxu0 0.0
    %670 = vmatpush2.msra.mxu0 0.0
    %671 = vmatprep.subr.mxu0 0.0
    %672 = vmatpush2.msra.mxu0 0.0
    %673 = vmatprep.subr.mxu0 0.0
    %674 = vmatpush2.msra.mxu0 0.0
    %675 = vmatprep.subr.mxu0 0.0
    %676 = vmatpush2.msra.mxu0 0.0
    %677 = vmatprep.subr.mxu0 0.0
    %678 = vmatpush2.msra.mxu0 0.0
    %679 = vmatprep.subr.mxu0 0.0
    %680 = vmatpush2.msra.mxu0 0.0
    %681 = vmatprep.subr.mxu0 0.0
    %682 = vmatpush2.msra.mxu0 0.0
    %683 = vmatprep.subr.mxu0 0.0
    %684 = vmatpush2.msra.mxu0 0.0
    %685 = vmatprep.subr.mxu0 0.0
    %686 = vmatpush2.msra.mxu0 0.0
    %687 = vmatprep.subr.mxu0 0.0
    %688 = vmatpush2.msra.mxu0 0.0
    %689 = vmatprep.subr.mxu0 0.0
    %690 = vmatpush2.msra.mxu0 0.0
    %691 = vmatprep.subr.mxu0 0.0
    %692 = vmatpush2.msra.mxu0 0.0
    %693 = vmatprep.subr.mxu0 0.0
    %694 = vmatpush2.msra.mxu0 0.0
    %695 = vmatprep.subr.mxu0 0.0
    %696 = vmatpush2.msra.mxu0 0.0
    %697 = vmatprep.mubr.f32.mxu0 0.0
    %698 = vmatmul.mubr.f32.gmra.mxu0 %v631
    %v699 = vpop.f32.mrf.mxu0
    %v700 = vadd.f32 0.0, %v699
    %v701 = vpop.f32.mrf.mxu0
    %v702 = vadd.f32 0.0, %v701
    %703 = vdwg.mxu0
    %704 = vmatprep.subr.mxu0 0.0
    %705 = vmatpush1.msra.mxu0 0.0
    %706 = vmatprep.subr.mxu0 0.0
    %707 = vmatpush1.msra.mxu0 0.0
    %708 = vmatprep.subr.mxu0 0.0
    %709 = vmatpush1.msra.mxu0 0.0
    %710 = vmatprep.subr.mxu0 0.0
    %711 = vmatpush1.msra.mxu0 0.0
    %712 = vmatprep.subr.mxu0 0.0
    %713 = vmatpush1.msra.mxu0 0.0
    %714 = vmatprep.subr.mxu0 0.0
    %715 = vmatpush1.msra.mxu0 0.0
    %716 = vmatprep.subr.mxu0 0.0
    %717 = vmatpush1.msra.mxu0 0.0
    %718 = vmatprep.subr.mxu0 0.0
    %719 = vmatpush1.msra.mxu0 0.0
    %720 = vmatprep.subr.mxu0 0.0
    %721 = vmatpush1.msra.mxu0 0.0
    %722 = vmatprep.subr.mxu0 0.0
    %723 = vmatpush1.msra.mxu0 0.0
    %724 = vmatprep.subr.mxu0 0.0
    %725 = vmatpush1.msra.mxu0 0.0
    %726 = vmatprep.subr.mxu0 0.0
    %727 = vmatpush1.msra.mxu0 0.0
    %728 = vmatprep.subr.mxu0 0.0
    %729 = vmatpush1.msra.mxu0 0.0
    %730 = vmatprep.subr.mxu0 0.0
    %731 = vmatpush1.msra.mxu0 0.0
    %732 = vmatprep.subr.mxu0 0.0
    %733 = vmatpush1.msra.mxu0 0.0
    %734 = vmatprep.subr.mxu0 %v627
    %735 = vmatpush1.msra.mxu0 %v626
    %736 = vmatprep.subr.mxu0 0.0
    %737 = vmatpush2.msra.mxu0 0.0
    %738 = vmatprep.subr.mxu0 0.0
    %739 = vmatpush2.msra.mxu0 0.0
    %740 = vmatprep.subr.mxu0 0.0
    %741 = vmatpush2.msra.mxu0 0.0
    %742 = vmatprep.subr.mxu0 0.0
    %743 = vmatpush2.msra.mxu0 0.0
    %744 = vmatprep.subr.mxu0 0.0
    %745 = vmatpush2.msra.mxu0 0.0
    %746 = vmatprep.subr.mxu0 0.0
    %747 = vmatpush2.msra.mxu0 0.0
    %748 = vmatprep.subr.mxu0 0.0
    %749 = vmatpush2.msra.mxu0 0.0
    %750 = vmatprep.subr.mxu0 0.0
    %751 = vmatpush2.msra.mxu0 0.0
    %752 = vmatprep.subr.mxu0 0.0
    %753 = vmatpush2.msra.mxu0 0.0
    %754 = vmatprep.subr.mxu0 0.0
    %755 = vmatpush2.msra.mxu0 0.0
    %756 = vmatprep.subr.mxu0 0.0
    %757 = vmatpush2.msra.mxu0 0.0
    %758 = vmatprep.subr.mxu0 0.0
    %759 = vmatpush2.msra.mxu0 0.0
    %760 = vmatprep.subr.mxu0 0.0
    %761 = vmatpush2.msra.mxu0 0.0
    %762 = vmatprep.subr.mxu0 0.0
    %763 = vmatpush2.msra.mxu0 0.0
    %764 = vmatprep.subr.mxu0 0.0
    %765 = vmatpush2.msra.mxu0 0.0
    %766 = vmatprep.subr.mxu0 0.0
    %767 = vmatpush2.msra.mxu0 0.0
    %768 = vmatprep.mubr.f32.mxu0 0.0
    %769 = vmatmul.mubr.f32.gmra.mxu0 %v631
    %v770 = vpop.f32.mrf.mxu0
    %v771 = vadd.f32 0.0, %v770
    %v772 = vpop.f32.mrf.mxu0
    %v773 = vadd.f32 0.0, %v772
    %774 = vdwg.mxu0
    %v775 = vadd.f32 %v584, %v700
    %v776 = vadd.f32 %v585, %v702
    %v777 = vadd.f32 %v586, %v771
    %v778 = vadd.f32 %v587, %v773
    %779 = vrot.lane.b32.xlu0 %v18, 15
    %v780 = vpop.permute.xlu0 %779
    %781 = vrot.lane.b32.xlu0 %v19, 15
    %v782 = vpop.permute.xlu0 %781
    %783 = vrot.lane.b32.xlu0 %v20, 15
    %v784 = vpop.permute.xlu0 %783
    %785 = vrot.lane.b32.xlu0 %v21, 15
    %v786 = vpop.permute.xlu0 %785
    %vm787 = vcmp.lt.s32.totalorder %v31, 15
    %v788 = vsel %vm787, %v784, %v786
    %v789 = vsel %vm787, %v782, %v784
    %v790 = vsel %vm787, %v780, %v782
    %v791 = vsel %vm787, %v786, %v780
    %s792 = scalar_lea.vmem %s3, 16
    %v793 = vld [vmem:[%s792] sm:$0xf]
    %v795 = vlaneseq
    %v796 = vshrl.u32 %v795, 7
    %v797 = vsub.s32 0, %v796
    %v798 = vrot.slane %v793, %v797
    %v799 = vlaneseq
    %v800 = vshrl.u32 %v799, 7
    %v801 = vsub.s32 1, %v800
    %v802 = vrot.slane %v793, %v801
    %v803 = vlaneseq
    %v804 = vshrl.u32 %v803, 7
    %v805 = vsub.s32 2, %v804
    %v806 = vrot.slane %v793, %v805
    %v807 = vlaneseq
    %v808 = vshrl.u32 %v807, 7
    %v809 = vsub.s32 3, %v808
    %v810 = vrot.slane %v793, %v809
    %v815 = vmul.f32 %v791, %v798
    %v816 = vmul.f32 %v790, %v802
    %v817 = vmul.f32 %v789, %v806
    %v818 = vmul.f32 %v788, %v810
    %s819 = scalar_lea.vmem %s1, 32
    %v820 = vld [vmem:[%s819] sm:$0xff]
    %v822 = vsel %vm106, %v820, 0
    %824 = vmatprep.subr.mxu0 0.0
    %825 = vmatpush1.msra.mxu0 0.0
    %826 = vmatprep.subr.mxu0 0.0
    %827 = vmatpush1.msra.mxu0 0.0
    %828 = vmatprep.subr.mxu0 0.0
    %829 = vmatpush1.msra.mxu0 0.0
    %830 = vmatprep.subr.mxu0 0.0
    %831 = vmatpush1.msra.mxu0 0.0
    %832 = vmatprep.subr.mxu0 0.0
    %833 = vmatpush1.msra.mxu0 0.0
    %834 = vmatprep.subr.mxu0 0.0
    %835 = vmatpush1.msra.mxu0 0.0
    %836 = vmatprep.subr.mxu0 0.0
    %837 = vmatpush1.msra.mxu0 0.0
    %838 = vmatprep.subr.mxu0 0.0
    %839 = vmatpush1.msra.mxu0 0.0
    %840 = vmatprep.subr.mxu0 0.0
    %841 = vmatpush1.msra.mxu0 0.0
    %842 = vmatprep.subr.mxu0 0.0
    %843 = vmatpush1.msra.mxu0 0.0
    %844 = vmatprep.subr.mxu0 0.0
    %845 = vmatpush1.msra.mxu0 0.0
    %846 = vmatprep.subr.mxu0 0.0
    %847 = vmatpush1.msra.mxu0 0.0
    %848 = vmatprep.subr.mxu0 0.0
    %849 = vmatpush1.msra.mxu0 0.0
    %850 = vmatprep.subr.mxu0 0.0
    %851 = vmatpush1.msra.mxu0 0.0
    %852 = vmatprep.subr.mxu0 0.0
    %853 = vmatpush1.msra.mxu0 0.0
    %854 = vmatprep.subr.mxu0 %v816
    %855 = vmatpush1.msra.mxu0 %v815
    %856 = vmatprep.subr.mxu0 0.0
    %857 = vmatpush2.msra.mxu0 0.0
    %858 = vmatprep.subr.mxu0 0.0
    %859 = vmatpush2.msra.mxu0 0.0
    %860 = vmatprep.subr.mxu0 0.0
    %861 = vmatpush2.msra.mxu0 0.0
    %862 = vmatprep.subr.mxu0 0.0
    %863 = vmatpush2.msra.mxu0 0.0
    %864 = vmatprep.subr.mxu0 0.0
    %865 = vmatpush2.msra.mxu0 0.0
    %866 = vmatprep.subr.mxu0 0.0
    %867 = vmatpush2.msra.mxu0 0.0
    %868 = vmatprep.subr.mxu0 0.0
    %869 = vmatpush2.msra.mxu0 0.0
    %870 = vmatprep.subr.mxu0 0.0
    %871 = vmatpush2.msra.mxu0 0.0
    %872 = vmatprep.subr.mxu0 0.0
    %873 = vmatpush2.msra.mxu0 0.0
    %874 = vmatprep.subr.mxu0 0.0
    %875 = vmatpush2.msra.mxu0 0.0
    %876 = vmatprep.subr.mxu0 0.0
    %877 = vmatpush2.msra.mxu0 0.0
    %878 = vmatprep.subr.mxu0 0.0
    %879 = vmatpush2.msra.mxu0 0.0
    %880 = vmatprep.subr.mxu0 0.0
    %881 = vmatpush2.msra.mxu0 0.0
    %882 = vmatprep.subr.mxu0 0.0
    %883 = vmatpush2.msra.mxu0 0.0
    %884 = vmatprep.subr.mxu0 0.0
    %885 = vmatpush2.msra.mxu0 0.0
    %886 = vmatprep.subr.mxu0 0.0
    %887 = vmatpush2.msra.mxu0 0.0
    %888 = vmatprep.mubr.f32.mxu0 0.0
    %889 = vmatmul.mubr.f32.gmra.mxu0 %v822
    %v890 = vpop.f32.mrf.mxu0
    %v891 = vadd.f32 0.0, %v890
    %v892 = vpop.f32.mrf.mxu0
    %v893 = vadd.f32 0.0, %v892
    %894 = vdwg.mxu0
    %895 = vmatprep.subr.mxu0 0.0
    %896 = vmatpush1.msra.mxu0 0.0
    %897 = vmatprep.subr.mxu0 0.0
    %898 = vmatpush1.msra.mxu0 0.0
    %899 = vmatprep.subr.mxu0 0.0
    %900 = vmatpush1.msra.mxu0 0.0
    %901 = vmatprep.subr.mxu0 0.0
    %902 = vmatpush1.msra.mxu0 0.0
    %903 = vmatprep.subr.mxu0 0.0
    %904 = vmatpush1.msra.mxu0 0.0
    %905 = vmatprep.subr.mxu0 0.0
    %906 = vmatpush1.msra.mxu0 0.0
    %907 = vmatprep.subr.mxu0 0.0
    %908 = vmatpush1.msra.mxu0 0.0
    %909 = vmatprep.subr.mxu0 0.0
    %910 = vmatpush1.msra.mxu0 0.0
    %911 = vmatprep.subr.mxu0 0.0
    %912 = vmatpush1.msra.mxu0 0.0
    %913 = vmatprep.subr.mxu0 0.0
    %914 = vmatpush1.msra.mxu0 0.0
    %915 = vmatprep.subr.mxu0 0.0
    %916 = vmatpush1.msra.mxu0 0.0
    %917 = vmatprep.subr.mxu0 0.0
    %918 = vmatpush1.msra.mxu0 0.0
    %919 = vmatprep.subr.mxu0 0.0
    %920 = vmatpush1.msra.mxu0 0.0
    %921 = vmatprep.subr.mxu0 0.0
    %922 = vmatpush1.msra.mxu0 0.0
    %923 = vmatprep.subr.mxu0 0.0
    %924 = vmatpush1.msra.mxu0 0.0
    %925 = vmatprep.subr.mxu0 %v818
    %926 = vmatpush1.msra.mxu0 %v817
    %927 = vmatprep.subr.mxu0 0.0
    %928 = vmatpush2.msra.mxu0 0.0
    %929 = vmatprep.subr.mxu0 0.0
    %930 = vmatpush2.msra.mxu0 0.0
    %931 = vmatprep.subr.mxu0 0.0
    %932 = vmatpush2.msra.mxu0 0.0
    %933 = vmatprep.subr.mxu0 0.0
    %934 = vmatpush2.msra.mxu0 0.0
    %935 = vmatprep.subr.mxu0 0.0
    %936 = vmatpush2.msra.mxu0 0.0
    %937 = vmatprep.subr.mxu0 0.0
    %938 = vmatpush2.msra.mxu0 0.0
    %939 = vmatprep.subr.mxu0 0.0
    %940 = vmatpush2.msra.mxu0 0.0
    %941 = vmatprep.subr.mxu0 0.0
    %942 = vmatpush2.msra.mxu0 0.0
    %943 = vmatprep.subr.mxu0 0.0
    %944 = vmatpush2.msra.mxu0 0.0
    %945 = vmatprep.subr.mxu0 0.0
    %946 = vmatpush2.msra.mxu0 0.0
    %947 = vmatprep.subr.mxu0 0.0
    %948 = vmatpush2.msra.mxu0 0.0
    %949 = vmatprep.subr.mxu0 0.0
    %950 = vmatpush2.msra.mxu0 0.0
    %951 = vmatprep.subr.mxu0 0.0
    %952 = vmatpush2.msra.mxu0 0.0
    %953 = vmatprep.subr.mxu0 0.0
    %954 = vmatpush2.msra.mxu0 0.0
    %955 = vmatprep.subr.mxu0 0.0
    %956 = vmatpush2.msra.mxu0 0.0
    %957 = vmatprep.subr.mxu0 0.0
    %958 = vmatpush2.msra.mxu0 0.0
    %959 = vmatprep.mubr.f32.mxu0 0.0
    %960 = vmatmul.mubr.f32.gmra.mxu0 %v822
    %v961 = vpop.f32.mrf.mxu0
    %v962 = vadd.f32 0.0, %v961
    %v963 = vpop.f32.mrf.mxu0
    %v964 = vadd.f32 0.0, %v963
    %965 = vdwg.mxu0
    %v966 = vadd.f32 %v775, %v891
    %v967 = vadd.f32 %v776, %v893
    %v968 = vadd.f32 %v777, %v962
    %v969 = vadd.f32 %v778, %v964
    %970 = vrot.lane.b32.xlu0 %v18, 30
    %v971 = vpop.permute.xlu0 %970
    %972 = vrot.lane.b32.xlu0 %v19, 30
    %v973 = vpop.permute.xlu0 %972
    %974 = vrot.lane.b32.xlu0 %v20, 30
    %v975 = vpop.permute.xlu0 %974
    %976 = vrot.lane.b32.xlu0 %v21, 30
    %v977 = vpop.permute.xlu0 %976
    %vm978 = vcmp.lt.s32.totalorder %v31, 30
    %v979 = vsel %vm978, %v975, %v977
    %v980 = vsel %vm978, %v973, %v975
    %v981 = vsel %vm978, %v971, %v973
    %v982 = vsel %vm978, %v977, %v971
    %s983 = scalar_lea.vmem %s3, 20
    %v984 = vld [vmem:[%s983] sm:$0xf]
    %v986 = vlaneseq
    %v987 = vshrl.u32 %v986, 7
    %v988 = vsub.s32 0, %v987
    %v989 = vrot.slane %v984, %v988
    %v990 = vlaneseq
    %v991 = vshrl.u32 %v990, 7
    %v992 = vsub.s32 1, %v991
    %v993 = vrot.slane %v984, %v992
    %v994 = vlaneseq
    %v995 = vshrl.u32 %v994, 7
    %v996 = vsub.s32 2, %v995
    %v997 = vrot.slane %v984, %v996
    %v998 = vlaneseq
    %v999 = vshrl.u32 %v998, 7
    %v1000 = vsub.s32 3, %v999
    %v1001 = vrot.slane %v984, %v1000
    %v1006 = vmul.f32 %v982, %v989
    %v1007 = vmul.f32 %v981, %v993
    %v1008 = vmul.f32 %v980, %v997
    %v1009 = vmul.f32 %v979, %v1001
    %s1010 = scalar_lea.vmem %s1, 40
    %v1011 = vld [vmem:[%s1010] sm:$0xff]
    %v1013 = vsel %vm106, %v1011, 0
    %1015 = vmatprep.subr.mxu0 0.0
    %1016 = vmatpush1.msra.mxu0 0.0
    %1017 = vmatprep.subr.mxu0 0.0
    %1018 = vmatpush1.msra.mxu0 0.0
    %1019 = vmatprep.subr.mxu0 0.0
    %1020 = vmatpush1.msra.mxu0 0.0
    %1021 = vmatprep.subr.mxu0 0.0
    %1022 = vmatpush1.msra.mxu0 0.0
    %1023 = vmatprep.subr.mxu0 0.0
    %1024 = vmatpush1.msra.mxu0 0.0
    %1025 = vmatprep.subr.mxu0 0.0
    %1026 = vmatpush1.msra.mxu0 0.0
    %1027 = vmatprep.subr.mxu0 0.0
    %1028 = vmatpush1.msra.mxu0 0.0
    %1029 = vmatprep.subr.mxu0 0.0
    %1030 = vmatpush1.msra.mxu0 0.0
    %1031 = vmatprep.subr.mxu0 0.0
    %1032 = vmatpush1.msra.mxu0 0.0
    %1033 = vmatprep.subr.mxu0 0.0
    %1034 = vmatpush1.msra.mxu0 0.0
    %1035 = vmatprep.subr.mxu0 0.0
    %1036 = vmatpush1.msra.mxu0 0.0
    %1037 = vmatprep.subr.mxu0 0.0
    %1038 = vmatpush1.msra.mxu0 0.0
    %1039 = vmatprep.subr.mxu0 0.0
    %1040 = vmatpush1.msra.mxu0 0.0
    %1041 = vmatprep.subr.mxu0 0.0
    %1042 = vmatpush1.msra.mxu0 0.0
    %1043 = vmatprep.subr.mxu0 0.0
    %1044 = vmatpush1.msra.mxu0 0.0
    %1045 = vmatprep.subr.mxu0 %v1007
    %1046 = vmatpush1.msra.mxu0 %v1006
    %1047 = vmatprep.subr.mxu0 0.0
    %1048 = vmatpush2.msra.mxu0 0.0
    %1049 = vmatprep.subr.mxu0 0.0
    %1050 = vmatpush2.msra.mxu0 0.0
    %1051 = vmatprep.subr.mxu0 0.0
    %1052 = vmatpush2.msra.mxu0 0.0
    %1053 = vmatprep.subr.mxu0 0.0
    %1054 = vmatpush2.msra.mxu0 0.0
    %1055 = vmatprep.subr.mxu0 0.0
    %1056 = vmatpush2.msra.mxu0 0.0
    %1057 = vmatprep.subr.mxu0 0.0
    %1058 = vmatpush2.msra.mxu0 0.0
    %1059 = vmatprep.subr.mxu0 0.0
    %1060 = vmatpush2.msra.mxu0 0.0
    %1061 = vmatprep.subr.mxu0 0.0
    %1062 = vmatpush2.msra.mxu0 0.0
    %1063 = vmatprep.subr.mxu0 0.0
    %1064 = vmatpush2.msra.mxu0 0.0
    %1065 = vmatprep.subr.mxu0 0.0
    %1066 = vmatpush2.msra.mxu0 0.0
    %1067 = vmatprep.subr.mxu0 0.0
    %1068 = vmatpush2.msra.mxu0 0.0
    %1069 = vmatprep.subr.mxu0 0.0
    %1070 = vmatpush2.msra.mxu0 0.0
    %1071 = vmatprep.subr.mxu0 0.0
    %1072 = vmatpush2.msra.mxu0 0.0
    %1073 = vmatprep.subr.mxu0 0.0
    %1074 = vmatpush2.msra.mxu0 0.0
    %1075 = vmatprep.subr.mxu0 0.0
    %1076 = vmatpush2.msra.mxu0 0.0
    %1077 = vmatprep.subr.mxu0 0.0
    %1078 = vmatpush2.msra.mxu0 0.0
    %1079 = vmatprep.mubr.f32.mxu0 0.0
    %1080 = vmatmul.mubr.f32.gmra.mxu0 %v1013
    %v1081 = vpop.f32.mrf.mxu0
    %v1082 = vadd.f32 0.0, %v1081
    %v1083 = vpop.f32.mrf.mxu0
    %v1084 = vadd.f32 0.0, %v1083
    %1085 = vdwg.mxu0
    %1086 = vmatprep.subr.mxu0 0.0
    %1087 = vmatpush1.msra.mxu0 0.0
    %1088 = vmatprep.subr.mxu0 0.0
    %1089 = vmatpush1.msra.mxu0 0.0
    %1090 = vmatprep.subr.mxu0 0.0
    %1091 = vmatpush1.msra.mxu0 0.0
    %1092 = vmatprep.subr.mxu0 0.0
    %1093 = vmatpush1.msra.mxu0 0.0
    %1094 = vmatprep.subr.mxu0 0.0
    %1095 = vmatpush1.msra.mxu0 0.0
    %1096 = vmatprep.subr.mxu0 0.0
    %1097 = vmatpush1.msra.mxu0 0.0
    %1098 = vmatprep.subr.mxu0 0.0
    %1099 = vmatpush1.msra.mxu0 0.0
    %1100 = vmatprep.subr.mxu0 0.0
    %1101 = vmatpush1.msra.mxu0 0.0
    %1102 = vmatprep.subr.mxu0 0.0
    %1103 = vmatpush1.msra.mxu0 0.0
    %1104 = vmatprep.subr.mxu0 0.0
    %1105 = vmatpush1.msra.mxu0 0.0
    %1106 = vmatprep.subr.mxu0 0.0
    %1107 = vmatpush1.msra.mxu0 0.0
    %1108 = vmatprep.subr.mxu0 0.0
    %1109 = vmatpush1.msra.mxu0 0.0
    %1110 = vmatprep.subr.mxu0 0.0
    %1111 = vmatpush1.msra.mxu0 0.0
    %1112 = vmatprep.subr.mxu0 0.0
    %1113 = vmatpush1.msra.mxu0 0.0
    %1114 = vmatprep.subr.mxu0 0.0
    %1115 = vmatpush1.msra.mxu0 0.0
    %1116 = vmatprep.subr.mxu0 %v1009
    %1117 = vmatpush1.msra.mxu0 %v1008
    %1118 = vmatprep.subr.mxu0 0.0
    %1119 = vmatpush2.msra.mxu0 0.0
    %1120 = vmatprep.subr.mxu0 0.0
    %1121 = vmatpush2.msra.mxu0 0.0
    %1122 = vmatprep.subr.mxu0 0.0
    %1123 = vmatpush2.msra.mxu0 0.0
    %1124 = vmatprep.subr.mxu0 0.0
    %1125 = vmatpush2.msra.mxu0 0.0
    %1126 = vmatprep.subr.mxu0 0.0
    %1127 = vmatpush2.msra.mxu0 0.0
    %1128 = vmatprep.subr.mxu0 0.0
    %1129 = vmatpush2.msra.mxu0 0.0
    %1130 = vmatprep.subr.mxu0 0.0
    %1131 = vmatpush2.msra.mxu0 0.0
    %1132 = vmatprep.subr.mxu0 0.0
    %1133 = vmatpush2.msra.mxu0 0.0
    %1134 = vmatprep.subr.mxu0 0.0
    %1135 = vmatpush2.msra.mxu0 0.0
    %1136 = vmatprep.subr.mxu0 0.0
    %1137 = vmatpush2.msra.mxu0 0.0
    %1138 = vmatprep.subr.mxu0 0.0
    %1139 = vmatpush2.msra.mxu0 0.0
    %1140 = vmatprep.subr.mxu0 0.0
    %1141 = vmatpush2.msra.mxu0 0.0
    %1142 = vmatprep.subr.mxu0 0.0
    %1143 = vmatpush2.msra.mxu0 0.0
    %1144 = vmatprep.subr.mxu0 0.0
    %1145 = vmatpush2.msra.mxu0 0.0
    %1146 = vmatprep.subr.mxu0 0.0
    %1147 = vmatpush2.msra.mxu0 0.0
    %1148 = vmatprep.subr.mxu0 0.0
    %1149 = vmatpush2.msra.mxu0 0.0
    %1150 = vmatprep.mubr.f32.mxu0 0.0
    %1151 = vmatmul.mubr.f32.gmra.mxu0 %v1013
    %v1152 = vpop.f32.mrf.mxu0
    %v1153 = vadd.f32 0.0, %v1152
    %v1154 = vpop.f32.mrf.mxu0
    %v1155 = vadd.f32 0.0, %v1154
    %1156 = vdwg.mxu0
    %v1157 = vadd.f32 %v966, %v1082
    %v1158 = vadd.f32 %v967, %v1084
    %v1159 = vadd.f32 %v968, %v1153
    %v1160 = vadd.f32 %v969, %v1155
    %1161 = vrot.lane.b32.xlu0 %v18, 1
    %v1162 = vpop.permute.xlu0 %1161
    %1163 = vrot.lane.b32.xlu0 %v19, 1
    %v1164 = vpop.permute.xlu0 %1163
    %1165 = vrot.lane.b32.xlu0 %v20, 1
    %v1166 = vpop.permute.xlu0 %1165
    %1167 = vrot.lane.b32.xlu0 %v21, 1
    %v1168 = vpop.permute.xlu0 %1167
    %vm1169 = vcmp.lt.s32.totalorder %v31, 1
    %v1170 = vsel %vm1169, %v1166, %v1168
    %v1171 = vsel %vm1169, %v1164, %v1166
    %v1172 = vsel %vm1169, %v1162, %v1164
    %v1173 = vsel %vm1169, %v1168, %v1162
    %s1174 = scalar_lea.vmem %s3, 24
    %v1175 = vld [vmem:[%s1174] sm:$0xf]
    %v1177 = vlaneseq
    %v1178 = vshrl.u32 %v1177, 7
    %v1179 = vsub.s32 0, %v1178
    %v1180 = vrot.slane %v1175, %v1179
    %v1181 = vlaneseq
    %v1182 = vshrl.u32 %v1181, 7
    %v1183 = vsub.s32 1, %v1182
    %v1184 = vrot.slane %v1175, %v1183
    %v1185 = vlaneseq
    %v1186 = vshrl.u32 %v1185, 7
    %v1187 = vsub.s32 2, %v1186
    %v1188 = vrot.slane %v1175, %v1187
    %v1189 = vlaneseq
    %v1190 = vshrl.u32 %v1189, 7
    %v1191 = vsub.s32 3, %v1190
    %v1192 = vrot.slane %v1175, %v1191
    %v1197 = vmul.f32 %v1173, %v1180
    %v1198 = vmul.f32 %v1172, %v1184
    %v1199 = vmul.f32 %v1171, %v1188
    %v1200 = vmul.f32 %v1170, %v1192
    %s1201 = scalar_lea.vmem %s1, 48
    %v1202 = vld [vmem:[%s1201] sm:$0xff]
    %v1204 = vsel %vm106, %v1202, 0
    %1206 = vmatprep.subr.mxu0 0.0
    %1207 = vmatpush1.msra.mxu0 0.0
    %1208 = vmatprep.subr.mxu0 0.0
    %1209 = vmatpush1.msra.mxu0 0.0
    %1210 = vmatprep.subr.mxu0 0.0
    %1211 = vmatpush1.msra.mxu0 0.0
    %1212 = vmatprep.subr.mxu0 0.0
    %1213 = vmatpush1.msra.mxu0 0.0
    %1214 = vmatprep.subr.mxu0 0.0
    %1215 = vmatpush1.msra.mxu0 0.0
    %1216 = vmatprep.subr.mxu0 0.0
    %1217 = vmatpush1.msra.mxu0 0.0
    %1218 = vmatprep.subr.mxu0 0.0
    %1219 = vmatpush1.msra.mxu0 0.0
    %1220 = vmatprep.subr.mxu0 0.0
    %1221 = vmatpush1.msra.mxu0 0.0
    %1222 = vmatprep.subr.mxu0 0.0
    %1223 = vmatpush1.msra.mxu0 0.0
    %1224 = vmatprep.subr.mxu0 0.0
    %1225 = vmatpush1.msra.mxu0 0.0
    %1226 = vmatprep.subr.mxu0 0.0
    %1227 = vmatpush1.msra.mxu0 0.0
    %1228 = vmatprep.subr.mxu0 0.0
    %1229 = vmatpush1.msra.mxu0 0.0
    %1230 = vmatprep.subr.mxu0 0.0
    %1231 = vmatpush1.msra.mxu0 0.0
    %1232 = vmatprep.subr.mxu0 0.0
    %1233 = vmatpush1.msra.mxu0 0.0
    %1234 = vmatprep.subr.mxu0 0.0
    %1235 = vmatpush1.msra.mxu0 0.0
    %1236 = vmatprep.subr.mxu0 %v1198
    %1237 = vmatpush1.msra.mxu0 %v1197
    %1238 = vmatprep.subr.mxu0 0.0
    %1239 = vmatpush2.msra.mxu0 0.0
    %1240 = vmatprep.subr.mxu0 0.0
    %1241 = vmatpush2.msra.mxu0 0.0
    %1242 = vmatprep.subr.mxu0 0.0
    %1243 = vmatpush2.msra.mxu0 0.0
    %1244 = vmatprep.subr.mxu0 0.0
    %1245 = vmatpush2.msra.mxu0 0.0
    %1246 = vmatprep.subr.mxu0 0.0
    %1247 = vmatpush2.msra.mxu0 0.0
    %1248 = vmatprep.subr.mxu0 0.0
    %1249 = vmatpush2.msra.mxu0 0.0
    %1250 = vmatprep.subr.mxu0 0.0
    %1251 = vmatpush2.msra.mxu0 0.0
    %1252 = vmatprep.subr.mxu0 0.0
    %1253 = vmatpush2.msra.mxu0 0.0
    %1254 = vmatprep.subr.mxu0 0.0
    %1255 = vmatpush2.msra.mxu0 0.0
    %1256 = vmatprep.subr.mxu0 0.0
    %1257 = vmatpush2.msra.mxu0 0.0
    %1258 = vmatprep.subr.mxu0 0.0
    %1259 = vmatpush2.msra.mxu0 0.0
    %1260 = vmatprep.subr.mxu0 0.0
    %1261 = vmatpush2.msra.mxu0 0.0
    %1262 = vmatprep.subr.mxu0 0.0
    %1263 = vmatpush2.msra.mxu0 0.0
    %1264 = vmatprep.subr.mxu0 0.0
    %1265 = vmatpush2.msra.mxu0 0.0
    %1266 = vmatprep.subr.mxu0 0.0
    %1267 = vmatpush2.msra.mxu0 0.0
    %1268 = vmatprep.subr.mxu0 0.0
    %1269 = vmatpush2.msra.mxu0 0.0
    %1270 = vmatprep.mubr.f32.mxu0 0.0
    %1271 = vmatmul.mubr.f32.gmra.mxu0 %v1204
    %v1272 = vpop.f32.mrf.mxu0
    %v1273 = vadd.f32 0.0, %v1272
    %v1274 = vpop.f32.mrf.mxu0
    %v1275 = vadd.f32 0.0, %v1274
    %1276 = vdwg.mxu0
    %1277 = vmatprep.subr.mxu0 0.0
    %1278 = vmatpush1.msra.mxu0 0.0
    %1279 = vmatprep.subr.mxu0 0.0
    %1280 = vmatpush1.msra.mxu0 0.0
    %1281 = vmatprep.subr.mxu0 0.0
    %1282 = vmatpush1.msra.mxu0 0.0
    %1283 = vmatprep.subr.mxu0 0.0
    %1284 = vmatpush1.msra.mxu0 0.0
    %1285 = vmatprep.subr.mxu0 0.0
    %1286 = vmatpush1.msra.mxu0 0.0
    %1287 = vmatprep.subr.mxu0 0.0
    %1288 = vmatpush1.msra.mxu0 0.0
    %1289 = vmatprep.subr.mxu0 0.0
    %1290 = vmatpush1.msra.mxu0 0.0
    %1291 = vmatprep.subr.mxu0 0.0
    %1292 = vmatpush1.msra.mxu0 0.0
    %1293 = vmatprep.subr.mxu0 0.0
    %1294 = vmatpush1.msra.mxu0 0.0
    %1295 = vmatprep.subr.mxu0 0.0
    %1296 = vmatpush1.msra.mxu0 0.0
    %1297 = vmatprep.subr.mxu0 0.0
    %1298 = vmatpush1.msra.mxu0 0.0
    %1299 = vmatprep.subr.mxu0 0.0
    %1300 = vmatpush1.msra.mxu0 0.0
    %1301 = vmatprep.subr.mxu0 0.0
    %1302 = vmatpush1.msra.mxu0 0.0
    %1303 = vmatprep.subr.mxu0 0.0
    %1304 = vmatpush1.msra.mxu0 0.0
    %1305 = vmatprep.subr.mxu0 0.0
    %1306 = vmatpush1.msra.mxu0 0.0
    %1307 = vmatprep.subr.mxu0 %v1200
    %1308 = vmatpush1.msra.mxu0 %v1199
    %1309 = vmatprep.subr.mxu0 0.0
    %1310 = vmatpush2.msra.mxu0 0.0
    %1311 = vmatprep.subr.mxu0 0.0
    %1312 = vmatpush2.msra.mxu0 0.0
    %1313 = vmatprep.subr.mxu0 0.0
    %1314 = vmatpush2.msra.mxu0 0.0
    %1315 = vmatprep.subr.mxu0 0.0
    %1316 = vmatpush2.msra.mxu0 0.0
    %1317 = vmatprep.subr.mxu0 0.0
    %1318 = vmatpush2.msra.mxu0 0.0
    %1319 = vmatprep.subr.mxu0 0.0
    %1320 = vmatpush2.msra.mxu0 0.0
    %1321 = vmatprep.subr.mxu0 0.0
    %1322 = vmatpush2.msra.mxu0 0.0
    %1323 = vmatprep.subr.mxu0 0.0
    %1324 = vmatpush2.msra.mxu0 0.0
    %1325 = vmatprep.subr.mxu0 0.0
    %1326 = vmatpush2.msra.mxu0 0.0
    %1327 = vmatprep.subr.mxu0 0.0
    %1328 = vmatpush2.msra.mxu0 0.0
    %1329 = vmatprep.subr.mxu0 0.0
    %1330 = vmatpush2.msra.mxu0 0.0
    %1331 = vmatprep.subr.mxu0 0.0
    %1332 = vmatpush2.msra.mxu0 0.0
    %1333 = vmatprep.subr.mxu0 0.0
    %1334 = vmatpush2.msra.mxu0 0.0
    %1335 = vmatprep.subr.mxu0 0.0
    %1336 = vmatpush2.msra.mxu0 0.0
    %1337 = vmatprep.subr.mxu0 0.0
    %1338 = vmatpush2.msra.mxu0 0.0
    %1339 = vmatprep.subr.mxu0 0.0
    %1340 = vmatpush2.msra.mxu0 0.0
    %1341 = vmatprep.mubr.f32.mxu0 0.0
    %1342 = vmatmul.mubr.f32.gmra.mxu0 %v1204
    %v1343 = vpop.f32.mrf.mxu0
    %v1344 = vadd.f32 0.0, %v1343
    %v1345 = vpop.f32.mrf.mxu0
    %v1346 = vadd.f32 0.0, %v1345
    %1347 = vdwg.mxu0
    %v1348 = vadd.f32 %v1157, %v1273
    %v1349 = vadd.f32 %v1158, %v1275
    %v1350 = vadd.f32 %v1159, %v1344
    %v1351 = vadd.f32 %v1160, %v1346
    %1352 = vrot.lane.b32.xlu0 %v18, 2
    %v1353 = vpop.permute.xlu0 %1352
    %1354 = vrot.lane.b32.xlu0 %v19, 2
    %v1355 = vpop.permute.xlu0 %1354
    %1356 = vrot.lane.b32.xlu0 %v20, 2
    %v1357 = vpop.permute.xlu0 %1356
    %1358 = vrot.lane.b32.xlu0 %v21, 2
    %v1359 = vpop.permute.xlu0 %1358
    %vm1360 = vcmp.lt.s32.totalorder %v31, 2
    %v1361 = vsel %vm1360, %v1357, %v1359
    %v1362 = vsel %vm1360, %v1355, %v1357
    %v1363 = vsel %vm1360, %v1353, %v1355
    %v1364 = vsel %vm1360, %v1359, %v1353
    %s1365 = scalar_lea.vmem %s3, 28
    %v1366 = vld [vmem:[%s1365] sm:$0xf]
    %v1368 = vlaneseq
    %v1369 = vshrl.u32 %v1368, 7
    %v1370 = vsub.s32 0, %v1369
    %v1371 = vrot.slane %v1366, %v1370
    %v1372 = vlaneseq
    %v1373 = vshrl.u32 %v1372, 7
    %v1374 = vsub.s32 1, %v1373
    %v1375 = vrot.slane %v1366, %v1374
    %v1376 = vlaneseq
    %v1377 = vshrl.u32 %v1376, 7
    %v1378 = vsub.s32 2, %v1377
    %v1379 = vrot.slane %v1366, %v1378
    %v1380 = vlaneseq
    %v1381 = vshrl.u32 %v1380, 7
    %v1382 = vsub.s32 3, %v1381
    %v1383 = vrot.slane %v1366, %v1382
    %v1388 = vmul.f32 %v1364, %v1371
    %v1389 = vmul.f32 %v1363, %v1375
    %v1390 = vmul.f32 %v1362, %v1379
    %v1391 = vmul.f32 %v1361, %v1383
    %s1392 = scalar_lea.vmem %s1, 56
    %v1393 = vld [vmem:[%s1392] sm:$0xff]
    %v1395 = vsel %vm106, %v1393, 0
    %1397 = vmatprep.subr.mxu0 0.0
    %1398 = vmatpush1.msra.mxu0 0.0
    %1399 = vmatprep.subr.mxu0 0.0
    %1400 = vmatpush1.msra.mxu0 0.0
    %1401 = vmatprep.subr.mxu0 0.0
    %1402 = vmatpush1.msra.mxu0 0.0
    %1403 = vmatprep.subr.mxu0 0.0
    %1404 = vmatpush1.msra.mxu0 0.0
    %1405 = vmatprep.subr.mxu0 0.0
    %1406 = vmatpush1.msra.mxu0 0.0
    %1407 = vmatprep.subr.mxu0 0.0
    %1408 = vmatpush1.msra.mxu0 0.0
    %1409 = vmatprep.subr.mxu0 0.0
    %1410 = vmatpush1.msra.mxu0 0.0
    %1411 = vmatprep.subr.mxu0 0.0
    %1412 = vmatpush1.msra.mxu0 0.0
    %1413 = vmatprep.subr.mxu0 0.0
    %1414 = vmatpush1.msra.mxu0 0.0
    %1415 = vmatprep.subr.mxu0 0.0
    %1416 = vmatpush1.msra.mxu0 0.0
    %1417 = vmatprep.subr.mxu0 0.0
    %1418 = vmatpush1.msra.mxu0 0.0
    %1419 = vmatprep.subr.mxu0 0.0
    %1420 = vmatpush1.msra.mxu0 0.0
    %1421 = vmatprep.subr.mxu0 0.0
    %1422 = vmatpush1.msra.mxu0 0.0
    %1423 = vmatprep.subr.mxu0 0.0
    %1424 = vmatpush1.msra.mxu0 0.0
    %1425 = vmatprep.subr.mxu0 0.0
    %1426 = vmatpush1.msra.mxu0 0.0
    %1427 = vmatprep.subr.mxu0 %v1389
    %1428 = vmatpush1.msra.mxu0 %v1388
    %1429 = vmatprep.subr.mxu0 0.0
    %1430 = vmatpush2.msra.mxu0 0.0
    %1431 = vmatprep.subr.mxu0 0.0
    %1432 = vmatpush2.msra.mxu0 0.0
    %1433 = vmatprep.subr.mxu0 0.0
    %1434 = vmatpush2.msra.mxu0 0.0
    %1435 = vmatprep.subr.mxu0 0.0
    %1436 = vmatpush2.msra.mxu0 0.0
    %1437 = vmatprep.subr.mxu0 0.0
    %1438 = vmatpush2.msra.mxu0 0.0
    %1439 = vmatprep.subr.mxu0 0.0
    %1440 = vmatpush2.msra.mxu0 0.0
    %1441 = vmatprep.subr.mxu0 0.0
    %1442 = vmatpush2.msra.mxu0 0.0
    %1443 = vmatprep.subr.mxu0 0.0
    %1444 = vmatpush2.msra.mxu0 0.0
    %1445 = vmatprep.subr.mxu0 0.0
    %1446 = vmatpush2.msra.mxu0 0.0
    %1447 = vmatprep.subr.mxu0 0.0
    %1448 = vmatpush2.msra.mxu0 0.0
    %1449 = vmatprep.subr.mxu0 0.0
    %1450 = vmatpush2.msra.mxu0 0.0
    %1451 = vmatprep.subr.mxu0 0.0
    %1452 = vmatpush2.msra.mxu0 0.0
    %1453 = vmatprep.subr.mxu0 0.0
    %1454 = vmatpush2.msra.mxu0 0.0
    %1455 = vmatprep.subr.mxu0 0.0
    %1456 = vmatpush2.msra.mxu0 0.0
    %1457 = vmatprep.subr.mxu0 0.0
    %1458 = vmatpush2.msra.mxu0 0.0
    %1459 = vmatprep.subr.mxu0 0.0
    %1460 = vmatpush2.msra.mxu0 0.0
    %1461 = vmatprep.mubr.f32.mxu0 0.0
    %1462 = vmatmul.mubr.f32.gmra.mxu0 %v1395
    %v1463 = vpop.f32.mrf.mxu0
    %v1464 = vadd.f32 0.0, %v1463
    %v1465 = vpop.f32.mrf.mxu0
    %v1466 = vadd.f32 0.0, %v1465
    %1467 = vdwg.mxu0
    %1468 = vmatprep.subr.mxu0 0.0
    %1469 = vmatpush1.msra.mxu0 0.0
    %1470 = vmatprep.subr.mxu0 0.0
    %1471 = vmatpush1.msra.mxu0 0.0
    %1472 = vmatprep.subr.mxu0 0.0
    %1473 = vmatpush1.msra.mxu0 0.0
    %1474 = vmatprep.subr.mxu0 0.0
    %1475 = vmatpush1.msra.mxu0 0.0
    %1476 = vmatprep.subr.mxu0 0.0
    %1477 = vmatpush1.msra.mxu0 0.0
    %1478 = vmatprep.subr.mxu0 0.0
    %1479 = vmatpush1.msra.mxu0 0.0
    %1480 = vmatprep.subr.mxu0 0.0
    %1481 = vmatpush1.msra.mxu0 0.0
    %1482 = vmatprep.subr.mxu0 0.0
    %1483 = vmatpush1.msra.mxu0 0.0
    %1484 = vmatprep.subr.mxu0 0.0
    %1485 = vmatpush1.msra.mxu0 0.0
    %1486 = vmatprep.subr.mxu0 0.0
    %1487 = vmatpush1.msra.mxu0 0.0
    %1488 = vmatprep.subr.mxu0 0.0
    %1489 = vmatpush1.msra.mxu0 0.0
    %1490 = vmatprep.subr.mxu0 0.0
    %1491 = vmatpush1.msra.mxu0 0.0
    %1492 = vmatprep.subr.mxu0 0.0
    %1493 = vmatpush1.msra.mxu0 0.0
    %1494 = vmatprep.subr.mxu0 0.0
    %1495 = vmatpush1.msra.mxu0 0.0
    %1496 = vmatprep.subr.mxu0 0.0
    %1497 = vmatpush1.msra.mxu0 0.0
    %1498 = vmatprep.subr.mxu0 %v1391
    %1499 = vmatpush1.msra.mxu0 %v1390
    %1500 = vmatprep.subr.mxu0 0.0
    %1501 = vmatpush2.msra.mxu0 0.0
    %1502 = vmatprep.subr.mxu0 0.0
    %1503 = vmatpush2.msra.mxu0 0.0
    %1504 = vmatprep.subr.mxu0 0.0
    %1505 = vmatpush2.msra.mxu0 0.0
    %1506 = vmatprep.subr.mxu0 0.0
    %1507 = vmatpush2.msra.mxu0 0.0
    %1508 = vmatprep.subr.mxu0 0.0
    %1509 = vmatpush2.msra.mxu0 0.0
    %1510 = vmatprep.subr.mxu0 0.0
    %1511 = vmatpush2.msra.mxu0 0.0
    %1512 = vmatprep.subr.mxu0 0.0
    %1513 = vmatpush2.msra.mxu0 0.0
    %1514 = vmatprep.subr.mxu0 0.0
    %1515 = vmatpush2.msra.mxu0 0.0
    %1516 = vmatprep.subr.mxu0 0.0
    %1517 = vmatpush2.msra.mxu0 0.0
    %1518 = vmatprep.subr.mxu0 0.0
    %1519 = vmatpush2.msra.mxu0 0.0
    %1520 = vmatprep.subr.mxu0 0.0
    %1521 = vmatpush2.msra.mxu0 0.0
    %1522 = vmatprep.subr.mxu0 0.0
    %1523 = vmatpush2.msra.mxu0 0.0
    %1524 = vmatprep.subr.mxu0 0.0
    %1525 = vmatpush2.msra.mxu0 0.0
    %1526 = vmatprep.subr.mxu0 0.0
    %1527 = vmatpush2.msra.mxu0 0.0
    %1528 = vmatprep.subr.mxu0 0.0
    %1529 = vmatpush2.msra.mxu0 0.0
    %1530 = vmatprep.subr.mxu0 0.0
    %1531 = vmatpush2.msra.mxu0 0.0
    %1532 = vmatprep.mubr.f32.mxu0 0.0
    %1533 = vmatmul.mubr.f32.gmra.mxu0 %v1395
    %v1534 = vpop.f32.mrf.mxu0
    %v1535 = vadd.f32 0.0, %v1534
    %v1536 = vpop.f32.mrf.mxu0
    %v1537 = vadd.f32 0.0, %v1536
    %1538 = vdwg.mxu0
    %v1539 = vadd.f32 %v1348, %v1464
    %v1540 = vadd.f32 %v1349, %v1466
    %v1541 = vadd.f32 %v1350, %v1535
    %v1542 = vadd.f32 %v1351, %v1537
    %s1543 = scalar_lea.vmem %s1, 64
    %v1544 = vld [vmem:[%s1543] sm:$0xff]
    %v1546 = vsel %vm106, %v1544, 0
    %1548 = vmatprep.subr.mxu0 0.0
    %1549 = vmatpush1.msra.mxu0 0.0
    %1550 = vmatprep.subr.mxu0 0.0
    %1551 = vmatpush1.msra.mxu0 0.0
    %1552 = vmatprep.subr.mxu0 0.0
    %1553 = vmatpush1.msra.mxu0 0.0
    %1554 = vmatprep.subr.mxu0 0.0
    %1555 = vmatpush1.msra.mxu0 0.0
    %1556 = vmatprep.subr.mxu0 0.0
    %1557 = vmatpush1.msra.mxu0 0.0
    %1558 = vmatprep.subr.mxu0 0.0
    %1559 = vmatpush1.msra.mxu0 0.0
    %1560 = vmatprep.subr.mxu0 0.0
    %1561 = vmatpush1.msra.mxu0 0.0
    %1562 = vmatprep.subr.mxu0 0.0
    %1563 = vmatpush1.msra.mxu0 0.0
    %1564 = vmatprep.subr.mxu0 0.0
    %1565 = vmatpush1.msra.mxu0 0.0
    %1566 = vmatprep.subr.mxu0 0.0
    %1567 = vmatpush1.msra.mxu0 0.0
    %1568 = vmatprep.subr.mxu0 0.0
    %1569 = vmatpush1.msra.mxu0 0.0
    %1570 = vmatprep.subr.mxu0 0.0
    %1571 = vmatpush1.msra.mxu0 0.0
    %1572 = vmatprep.subr.mxu0 0.0
    %1573 = vmatpush1.msra.mxu0 0.0
    %1574 = vmatprep.subr.mxu0 0.0
    %1575 = vmatpush1.msra.mxu0 0.0
    %1576 = vmatprep.subr.mxu0 0.0
    %1577 = vmatpush1.msra.mxu0 0.0
    %1578 = vmatprep.subr.mxu0 %v19
    %1579 = vmatpush1.msra.mxu0 %v18
    %1580 = vmatprep.subr.mxu0 0.0
    %1581 = vmatpush2.msra.mxu0 0.0
    %1582 = vmatprep.subr.mxu0 0.0
    %1583 = vmatpush2.msra.mxu0 0.0
    %1584 = vmatprep.subr.mxu0 0.0
    %1585 = vmatpush2.msra.mxu0 0.0
    %1586 = vmatprep.subr.mxu0 0.0
    %1587 = vmatpush2.msra.mxu0 0.0
    %1588 = vmatprep.subr.mxu0 0.0
    %1589 = vmatpush2.msra.mxu0 0.0
    %1590 = vmatprep.subr.mxu0 0.0
    %1591 = vmatpush2.msra.mxu0 0.0
    %1592 = vmatprep.subr.mxu0 0.0
    %1593 = vmatpush2.msra.mxu0 0.0
    %1594 = vmatprep.subr.mxu0 0.0
    %1595 = vmatpush2.msra.mxu0 0.0
    %1596 = vmatprep.subr.mxu0 0.0
    %1597 = vmatpush2.msra.mxu0 0.0
    %1598 = vmatprep.subr.mxu0 0.0
    %1599 = vmatpush2.msra.mxu0 0.0
    %1600 = vmatprep.subr.mxu0 0.0
    %1601 = vmatpush2.msra.mxu0 0.0
    %1602 = vmatprep.subr.mxu0 0.0
    %1603 = vmatpush2.msra.mxu0 0.0
    %1604 = vmatprep.subr.mxu0 0.0
    %1605 = vmatpush2.msra.mxu0 0.0
    %1606 = vmatprep.subr.mxu0 0.0
    %1607 = vmatpush2.msra.mxu0 0.0
    %1608 = vmatprep.subr.mxu0 0.0
    %1609 = vmatpush2.msra.mxu0 0.0
    %1610 = vmatprep.subr.mxu0 0.0
    %1611 = vmatpush2.msra.mxu0 0.0
    %1612 = vmatprep.mubr.f32.mxu0 0.0
    %1613 = vmatmul.mubr.f32.gmra.mxu0 %v1546
    %v1614 = vpop.f32.mrf.mxu0
    %v1615 = vadd.f32 0.0, %v1614
    %v1616 = vpop.f32.mrf.mxu0
    %v1617 = vadd.f32 0.0, %v1616
    %1618 = vdwg.mxu0
    %1619 = vmatprep.subr.mxu0 0.0
    %1620 = vmatpush1.msra.mxu0 0.0
    %1621 = vmatprep.subr.mxu0 0.0
    %1622 = vmatpush1.msra.mxu0 0.0
    %1623 = vmatprep.subr.mxu0 0.0
    %1624 = vmatpush1.msra.mxu0 0.0
    %1625 = vmatprep.subr.mxu0 0.0
    %1626 = vmatpush1.msra.mxu0 0.0
    %1627 = vmatprep.subr.mxu0 0.0
    %1628 = vmatpush1.msra.mxu0 0.0
    %1629 = vmatprep.subr.mxu0 0.0
    %1630 = vmatpush1.msra.mxu0 0.0
    %1631 = vmatprep.subr.mxu0 0.0
    %1632 = vmatpush1.msra.mxu0 0.0
    %1633 = vmatprep.subr.mxu0 0.0
    %1634 = vmatpush1.msra.mxu0 0.0
    %1635 = vmatprep.subr.mxu0 0.0
    %1636 = vmatpush1.msra.mxu0 0.0
    %1637 = vmatprep.subr.mxu0 0.0
    %1638 = vmatpush1.msra.mxu0 0.0
    %1639 = vmatprep.subr.mxu0 0.0
    %1640 = vmatpush1.msra.mxu0 0.0
    %1641 = vmatprep.subr.mxu0 0.0
    %1642 = vmatpush1.msra.mxu0 0.0
    %1643 = vmatprep.subr.mxu0 0.0
    %1644 = vmatpush1.msra.mxu0 0.0
    %1645 = vmatprep.subr.mxu0 0.0
    %1646 = vmatpush1.msra.mxu0 0.0
    %1647 = vmatprep.subr.mxu0 0.0
    %1648 = vmatpush1.msra.mxu0 0.0
    %1649 = vmatprep.subr.mxu0 %v21
    %1650 = vmatpush1.msra.mxu0 %v20
    %1651 = vmatprep.subr.mxu0 0.0
    %1652 = vmatpush2.msra.mxu0 0.0
    %1653 = vmatprep.subr.mxu0 0.0
    %1654 = vmatpush2.msra.mxu0 0.0
    %1655 = vmatprep.subr.mxu0 0.0
    %1656 = vmatpush2.msra.mxu0 0.0
    %1657 = vmatprep.subr.mxu0 0.0
    %1658 = vmatpush2.msra.mxu0 0.0
    %1659 = vmatprep.subr.mxu0 0.0
    %1660 = vmatpush2.msra.mxu0 0.0
    %1661 = vmatprep.subr.mxu0 0.0
    %1662 = vmatpush2.msra.mxu0 0.0
    %1663 = vmatprep.subr.mxu0 0.0
    %1664 = vmatpush2.msra.mxu0 0.0
    %1665 = vmatprep.subr.mxu0 0.0
    %1666 = vmatpush2.msra.mxu0 0.0
    %1667 = vmatprep.subr.mxu0 0.0
    %1668 = vmatpush2.msra.mxu0 0.0
    %1669 = vmatprep.subr.mxu0 0.0
    %1670 = vmatpush2.msra.mxu0 0.0
    %1671 = vmatprep.subr.mxu0 0.0
    %1672 = vmatpush2.msra.mxu0 0.0
    %1673 = vmatprep.subr.mxu0 0.0
    %1674 = vmatpush2.msra.mxu0 0.0
    %1675 = vmatprep.subr.mxu0 0.0
    %1676 = vmatpush2.msra.mxu0 0.0
    %1677 = vmatprep.subr.mxu0 0.0
    %1678 = vmatpush2.msra.mxu0 0.0
    %1679 = vmatprep.subr.mxu0 0.0
    %1680 = vmatpush2.msra.mxu0 0.0
    %1681 = vmatprep.subr.mxu0 0.0
    %1682 = vmatpush2.msra.mxu0 0.0
    %1683 = vmatprep.mubr.f32.mxu0 0.0
    %1684 = vmatmul.mubr.f32.gmra.mxu0 %v1546
    %v1685 = vpop.f32.mrf.mxu0
    %v1686 = vadd.f32 0.0, %v1685
    %v1687 = vpop.f32.mrf.mxu0
    %v1688 = vadd.f32 0.0, %v1687
    %1689 = vdwg.mxu0
    %v1690 = vadd.f32 %v1539, %v1615
    %v1691 = vadd.f32 %v1540, %v1617
    %v1692 = vadd.f32 %v1541, %v1686
    %v1693 = vadd.f32 %v1542, %v1688
    %s1694 = scalar_lea.vmem %s1, 72
    %v1695 = vld [vmem:[%s1694] sm:$0xff]
    %v1697 = vsel %vm106, %v1695, 0
    %1699 = vmatprep.subr.mxu0 0.0
    %1700 = vmatpush1.msra.mxu0 0.0
    %1701 = vmatprep.subr.mxu0 0.0
    %1702 = vmatpush1.msra.mxu0 0.0
    %1703 = vmatprep.subr.mxu0 0.0
    %1704 = vmatpush1.msra.mxu0 0.0
    %1705 = vmatprep.subr.mxu0 0.0
    %1706 = vmatpush1.msra.mxu0 0.0
    %1707 = vmatprep.subr.mxu0 0.0
    %1708 = vmatpush1.msra.mxu0 0.0
    %1709 = vmatprep.subr.mxu0 0.0
    %1710 = vmatpush1.msra.mxu0 0.0
    %1711 = vmatprep.subr.mxu0 0.0
    %1712 = vmatpush1.msra.mxu0 0.0
    %1713 = vmatprep.subr.mxu0 0.0
    %1714 = vmatpush1.msra.mxu0 0.0
    %1715 = vmatprep.subr.mxu0 0.0
    %1716 = vmatpush1.msra.mxu0 0.0
    %1717 = vmatprep.subr.mxu0 0.0
    %1718 = vmatpush1.msra.mxu0 0.0
    %1719 = vmatprep.subr.mxu0 0.0
    %1720 = vmatpush1.msra.mxu0 0.0
    %1721 = vmatprep.subr.mxu0 0.0
    %1722 = vmatpush1.msra.mxu0 0.0
    %1723 = vmatprep.subr.mxu0 0.0
    %1724 = vmatpush1.msra.mxu0 0.0
    %1725 = vmatprep.subr.mxu0 0.0
    %1726 = vmatpush1.msra.mxu0 0.0
    %1727 = vmatprep.subr.mxu0 0.0
    %1728 = vmatpush1.msra.mxu0 0.0
    %1729 = vmatprep.subr.mxu0 %v19
    %1730 = vmatpush1.msra.mxu0 %v18
    %1731 = vmatprep.subr.mxu0 0.0
    %1732 = vmatpush2.msra.mxu0 0.0
    %1733 = vmatprep.subr.mxu0 0.0
    %1734 = vmatpush2.msra.mxu0 0.0
    %1735 = vmatprep.subr.mxu0 0.0
    %1736 = vmatpush2.msra.mxu0 0.0
    %1737 = vmatprep.subr.mxu0 0.0
    %1738 = vmatpush2.msra.mxu0 0.0
    %1739 = vmatprep.subr.mxu0 0.0
    %1740 = vmatpush2.msra.mxu0 0.0
    %1741 = vmatprep.subr.mxu0 0.0
    %1742 = vmatpush2.msra.mxu0 0.0
    %1743 = vmatprep.subr.mxu0 0.0
    %1744 = vmatpush2.msra.mxu0 0.0
    %1745 = vmatprep.subr.mxu0 0.0
    %1746 = vmatpush2.msra.mxu0 0.0
    %1747 = vmatprep.subr.mxu0 0.0
    %1748 = vmatpush2.msra.mxu0 0.0
    %1749 = vmatprep.subr.mxu0 0.0
    %1750 = vmatpush2.msra.mxu0 0.0
    %1751 = vmatprep.subr.mxu0 0.0
    %1752 = vmatpush2.msra.mxu0 0.0
    %1753 = vmatprep.subr.mxu0 0.0
    %1754 = vmatpush2.msra.mxu0 0.0
    %1755 = vmatprep.subr.mxu0 0.0
    %1756 = vmatpush2.msra.mxu0 0.0
    %1757 = vmatprep.subr.mxu0 0.0
    %1758 = vmatpush2.msra.mxu0 0.0
    %1759 = vmatprep.subr.mxu0 0.0
    %1760 = vmatpush2.msra.mxu0 0.0
    %1761 = vmatprep.subr.mxu0 0.0
    %1762 = vmatpush2.msra.mxu0 0.0
    %1763 = vmatprep.mubr.f32.mxu0 0.0
    %1764 = vmatmul.mubr.f32.gmra.mxu0 %v1697
    %v1765 = vpop.f32.mrf.mxu0
    %v1766 = vadd.f32 0.0, %v1765
    %v1767 = vpop.f32.mrf.mxu0
    %v1768 = vadd.f32 0.0, %v1767
    %1769 = vdwg.mxu0
    %1770 = vmatprep.subr.mxu0 0.0
    %1771 = vmatpush1.msra.mxu0 0.0
    %1772 = vmatprep.subr.mxu0 0.0
    %1773 = vmatpush1.msra.mxu0 0.0
    %1774 = vmatprep.subr.mxu0 0.0
    %1775 = vmatpush1.msra.mxu0 0.0
    %1776 = vmatprep.subr.mxu0 0.0
    %1777 = vmatpush1.msra.mxu0 0.0
    %1778 = vmatprep.subr.mxu0 0.0
    %1779 = vmatpush1.msra.mxu0 0.0
    %1780 = vmatprep.subr.mxu0 0.0
    %1781 = vmatpush1.msra.mxu0 0.0
    %1782 = vmatprep.subr.mxu0 0.0
    %1783 = vmatpush1.msra.mxu0 0.0
    %1784 = vmatprep.subr.mxu0 0.0
    %1785 = vmatpush1.msra.mxu0 0.0
    %1786 = vmatprep.subr.mxu0 0.0
    %1787 = vmatpush1.msra.mxu0 0.0
    %1788 = vmatprep.subr.mxu0 0.0
    %1789 = vmatpush1.msra.mxu0 0.0
    %1790 = vmatprep.subr.mxu0 0.0
    %1791 = vmatpush1.msra.mxu0 0.0
    %1792 = vmatprep.subr.mxu0 0.0
    %1793 = vmatpush1.msra.mxu0 0.0
    %1794 = vmatprep.subr.mxu0 0.0
    %1795 = vmatpush1.msra.mxu0 0.0
    %1796 = vmatprep.subr.mxu0 0.0
    %1797 = vmatpush1.msra.mxu0 0.0
    %1798 = vmatprep.subr.mxu0 0.0
    %1799 = vmatpush1.msra.mxu0 0.0
    %1800 = vmatprep.subr.mxu0 %v21
    %1801 = vmatpush1.msra.mxu0 %v20
    %1802 = vmatprep.subr.mxu0 0.0
    %1803 = vmatpush2.msra.mxu0 0.0
    %1804 = vmatprep.subr.mxu0 0.0
    %1805 = vmatpush2.msra.mxu0 0.0
    %1806 = vmatprep.subr.mxu0 0.0
    %1807 = vmatpush2.msra.mxu0 0.0
    %1808 = vmatprep.subr.mxu0 0.0
    %1809 = vmatpush2.msra.mxu0 0.0
    %1810 = vmatprep.subr.mxu0 0.0
    %1811 = vmatpush2.msra.mxu0 0.0
    %1812 = vmatprep.subr.mxu0 0.0
    %1813 = vmatpush2.msra.mxu0 0.0
    %1814 = vmatprep.subr.mxu0 0.0
    %1815 = vmatpush2.msra.mxu0 0.0
    %1816 = vmatprep.subr.mxu0 0.0
    %1817 = vmatpush2.msra.mxu0 0.0
    %1818 = vmatprep.subr.mxu0 0.0
    %1819 = vmatpush2.msra.mxu0 0.0
    %1820 = vmatprep.subr.mxu0 0.0
    %1821 = vmatpush2.msra.mxu0 0.0
    %1822 = vmatprep.subr.mxu0 0.0
    %1823 = vmatpush2.msra.mxu0 0.0
    %1824 = vmatprep.subr.mxu0 0.0
    %1825 = vmatpush2.msra.mxu0 0.0
    %1826 = vmatprep.subr.mxu0 0.0
    %1827 = vmatpush2.msra.mxu0 0.0
    %1828 = vmatprep.subr.mxu0 0.0
    %1829 = vmatpush2.msra.mxu0 0.0
    %1830 = vmatprep.subr.mxu0 0.0
    %1831 = vmatpush2.msra.mxu0 0.0
    %1832 = vmatprep.subr.mxu0 0.0
    %1833 = vmatpush2.msra.mxu0 0.0
    %1834 = vmatprep.mubr.f32.mxu0 0.0
    %1835 = vmatmul.mubr.f32.gmra.mxu0 %v1697
    %v1836 = vpop.f32.mrf.mxu0
    %v1837 = vadd.f32 0.0, %v1836
    %v1838 = vpop.f32.mrf.mxu0
    %v1839 = vadd.f32 0.0, %v1838
    %1840 = vdwg.mxu0
    %v1841 = vadd.f32 %v1690, %v1766
    %v1842 = vadd.f32 %v1691, %v1768
    %v1843 = vadd.f32 %v1692, %v1837
    %v1844 = vadd.f32 %v1693, %v1839
    %1845 = vrot.lane.b32.xlu0 %v18, 127
    %v1846 = vpop.permute.xlu0 %1845
    %1847 = vrot.lane.b32.xlu0 %v19, 127
    %v1848 = vpop.permute.xlu0 %1847
    %1849 = vrot.lane.b32.xlu0 %v20, 127
    %v1850 = vpop.permute.xlu0 %1849
    %1851 = vrot.lane.b32.xlu0 %v21, 127
    %v1852 = vpop.permute.xlu0 %1851
    %vm1853 = vcmp.lt.s32.totalorder %v31, 127
    %v1854 = vsel %vm1853, %v1850, %v1852
    %v1855 = vsel %vm1853, %v1848, %v1850
    %v1856 = vsel %vm1853, %v1846, %v1848
    %v1857 = vsel %vm1853, %v1852, %v1846
    %s1858 = scalar_lea.vmem %s3, 40
    %v1859 = vld [vmem:[%s1858] sm:$0xf]
    %v1861 = vlaneseq
    %v1862 = vshrl.u32 %v1861, 7
    %v1863 = vsub.s32 0, %v1862
    %v1864 = vrot.slane %v1859, %v1863
    %v1865 = vlaneseq
    %v1866 = vshrl.u32 %v1865, 7
    %v1867 = vsub.s32 1, %v1866
    %v1868 = vrot.slane %v1859, %v1867
    %v1869 = vlaneseq
    %v1870 = vshrl.u32 %v1869, 7
    %v1871 = vsub.s32 2, %v1870
    %v1872 = vrot.slane %v1859, %v1871
    %v1873 = vlaneseq
    %v1874 = vshrl.u32 %v1873, 7
    %v1875 = vsub.s32 3, %v1874
    %v1876 = vrot.slane %v1859, %v1875
    %v1881 = vmul.f32 %v1856, %v1864
    %v1882 = vmul.f32 %v1855, %v1868
    %v1883 = vmul.f32 %v1854, %v1872
    %v1884 = vmul.f32 %v1857, %v1876
    %s1885 = scalar_lea.vmem %s1, 80
    %v1886 = vld [vmem:[%s1885] sm:$0xff]
    %v1888 = vsel %vm106, %v1886, 0
    %1890 = vmatprep.subr.mxu0 0.0
    %1891 = vmatpush1.msra.mxu0 0.0
    %1892 = vmatprep.subr.mxu0 0.0
    %1893 = vmatpush1.msra.mxu0 0.0
    %1894 = vmatprep.subr.mxu0 0.0
    %1895 = vmatpush1.msra.mxu0 0.0
    %1896 = vmatprep.subr.mxu0 0.0
    %1897 = vmatpush1.msra.mxu0 0.0
    %1898 = vmatprep.subr.mxu0 0.0
    %1899 = vmatpush1.msra.mxu0 0.0
    %1900 = vmatprep.subr.mxu0 0.0
    %1901 = vmatpush1.msra.mxu0 0.0
    %1902 = vmatprep.subr.mxu0 0.0
    %1903 = vmatpush1.msra.mxu0 0.0
    %1904 = vmatprep.subr.mxu0 0.0
    %1905 = vmatpush1.msra.mxu0 0.0
    %1906 = vmatprep.subr.mxu0 0.0
    %1907 = vmatpush1.msra.mxu0 0.0
    %1908 = vmatprep.subr.mxu0 0.0
    %1909 = vmatpush1.msra.mxu0 0.0
    %1910 = vmatprep.subr.mxu0 0.0
    %1911 = vmatpush1.msra.mxu0 0.0
    %1912 = vmatprep.subr.mxu0 0.0
    %1913 = vmatpush1.msra.mxu0 0.0
    %1914 = vmatprep.subr.mxu0 0.0
    %1915 = vmatpush1.msra.mxu0 0.0
    %1916 = vmatprep.subr.mxu0 0.0
    %1917 = vmatpush1.msra.mxu0 0.0
    %1918 = vmatprep.subr.mxu0 0.0
    %1919 = vmatpush1.msra.mxu0 0.0
    %1920 = vmatprep.subr.mxu0 %v1882
    %1921 = vmatpush1.msra.mxu0 %v1881
    %1922 = vmatprep.subr.mxu0 0.0
    %1923 = vmatpush2.msra.mxu0 0.0
    %1924 = vmatprep.subr.mxu0 0.0
    %1925 = vmatpush2.msra.mxu0 0.0
    %1926 = vmatprep.subr.mxu0 0.0
    %1927 = vmatpush2.msra.mxu0 0.0
    %1928 = vmatprep.subr.mxu0 0.0
    %1929 = vmatpush2.msra.mxu0 0.0
    %1930 = vmatprep.subr.mxu0 0.0
    %1931 = vmatpush2.msra.mxu0 0.0
    %1932 = vmatprep.subr.mxu0 0.0
    %1933 = vmatpush2.msra.mxu0 0.0
    %1934 = vmatprep.subr.mxu0 0.0
    %1935 = vmatpush2.msra.mxu0 0.0
    %1936 = vmatprep.subr.mxu0 0.0
    %1937 = vmatpush2.msra.mxu0 0.0
    %1938 = vmatprep.subr.mxu0 0.0
    %1939 = vmatpush2.msra.mxu0 0.0
    %1940 = vmatprep.subr.mxu0 0.0
    %1941 = vmatpush2.msra.mxu0 0.0
    %1942 = vmatprep.subr.mxu0 0.0
    %1943 = vmatpush2.msra.mxu0 0.0
    %1944 = vmatprep.subr.mxu0 0.0
    %1945 = vmatpush2.msra.mxu0 0.0
    %1946 = vmatprep.subr.mxu0 0.0
    %1947 = vmatpush2.msra.mxu0 0.0
    %1948 = vmatprep.subr.mxu0 0.0
    %1949 = vmatpush2.msra.mxu0 0.0
    %1950 = vmatprep.subr.mxu0 0.0
    %1951 = vmatpush2.msra.mxu0 0.0
    %1952 = vmatprep.subr.mxu0 0.0
    %1953 = vmatpush2.msra.mxu0 0.0
    %1954 = vmatprep.mubr.f32.mxu0 0.0
    %1955 = vmatmul.mubr.f32.gmra.mxu0 %v1888
    %v1956 = vpop.f32.mrf.mxu0
    %v1957 = vadd.f32 0.0, %v1956
    %v1958 = vpop.f32.mrf.mxu0
    %v1959 = vadd.f32 0.0, %v1958
    %1960 = vdwg.mxu0
    %1961 = vmatprep.subr.mxu0 0.0
    %1962 = vmatpush1.msra.mxu0 0.0
    %1963 = vmatprep.subr.mxu0 0.0
    %1964 = vmatpush1.msra.mxu0 0.0
    %1965 = vmatprep.subr.mxu0 0.0
    %1966 = vmatpush1.msra.mxu0 0.0
    %1967 = vmatprep.subr.mxu0 0.0
    %1968 = vmatpush1.msra.mxu0 0.0
    %1969 = vmatprep.subr.mxu0 0.0
    %1970 = vmatpush1.msra.mxu0 0.0
    %1971 = vmatprep.subr.mxu0 0.0
    %1972 = vmatpush1.msra.mxu0 0.0
    %1973 = vmatprep.subr.mxu0 0.0
    %1974 = vmatpush1.msra.mxu0 0.0
    %1975 = vmatprep.subr.mxu0 0.0
    %1976 = vmatpush1.msra.mxu0 0.0
    %1977 = vmatprep.subr.mxu0 0.0
    %1978 = vmatpush1.msra.mxu0 0.0
    %1979 = vmatprep.subr.mxu0 0.0
    %1980 = vmatpush1.msra.mxu0 0.0
    %1981 = vmatprep.subr.mxu0 0.0
    %1982 = vmatpush1.msra.mxu0 0.0
    %1983 = vmatprep.subr.mxu0 0.0
    %1984 = vmatpush1.msra.mxu0 0.0
    %1985 = vmatprep.subr.mxu0 0.0
    %1986 = vmatpush1.msra.mxu0 0.0
    %1987 = vmatprep.subr.mxu0 0.0
    %1988 = vmatpush1.msra.mxu0 0.0
    %1989 = vmatprep.subr.mxu0 0.0
    %1990 = vmatpush1.msra.mxu0 0.0
    %1991 = vmatprep.subr.mxu0 %v1884
    %1992 = vmatpush1.msra.mxu0 %v1883
    %1993 = vmatprep.subr.mxu0 0.0
    %1994 = vmatpush2.msra.mxu0 0.0
    %1995 = vmatprep.subr.mxu0 0.0
    %1996 = vmatpush2.msra.mxu0 0.0
    %1997 = vmatprep.subr.mxu0 0.0
    %1998 = vmatpush2.msra.mxu0 0.0
    %1999 = vmatprep.subr.mxu0 0.0
    %2000 = vmatpush2.msra.mxu0 0.0
    %2001 = vmatprep.subr.mxu0 0.0
    %2002 = vmatpush2.msra.mxu0 0.0
    %2003 = vmatprep.subr.mxu0 0.0
    %2004 = vmatpush2.msra.mxu0 0.0
    %2005 = vmatprep.subr.mxu0 0.0
    %2006 = vmatpush2.msra.mxu0 0.0
    %2007 = vmatprep.subr.mxu0 0.0
    %2008 = vmatpush2.msra.mxu0 0.0
    %2009 = vmatprep.subr.mxu0 0.0
    %2010 = vmatpush2.msra.mxu0 0.0
    %2011 = vmatprep.subr.mxu0 0.0
    %2012 = vmatpush2.msra.mxu0 0.0
    %2013 = vmatprep.subr.mxu0 0.0
    %2014 = vmatpush2.msra.mxu0 0.0
    %2015 = vmatprep.subr.mxu0 0.0
    %2016 = vmatpush2.msra.mxu0 0.0
    %2017 = vmatprep.subr.mxu0 0.0
    %2018 = vmatpush2.msra.mxu0 0.0
    %2019 = vmatprep.subr.mxu0 0.0
    %2020 = vmatpush2.msra.mxu0 0.0
    %2021 = vmatprep.subr.mxu0 0.0
    %2022 = vmatpush2.msra.mxu0 0.0
    %2023 = vmatprep.subr.mxu0 0.0
    %2024 = vmatpush2.msra.mxu0 0.0
    %2025 = vmatprep.mubr.f32.mxu0 0.0
    %2026 = vmatmul.mubr.f32.gmra.mxu0 %v1888
    %v2027 = vpop.f32.mrf.mxu0
    %v2028 = vadd.f32 0.0, %v2027
    %v2029 = vpop.f32.mrf.mxu0
    %v2030 = vadd.f32 0.0, %v2029
    %2031 = vdwg.mxu0
    %v2032 = vadd.f32 %v1841, %v1957
    %v2033 = vadd.f32 %v1842, %v1959
    %v2034 = vadd.f32 %v1843, %v2028
    %v2035 = vadd.f32 %v1844, %v2030
    %2036 = vrot.lane.b32.xlu0 %v18, 126
    %v2037 = vpop.permute.xlu0 %2036
    %2038 = vrot.lane.b32.xlu0 %v19, 126
    %v2039 = vpop.permute.xlu0 %2038
    %2040 = vrot.lane.b32.xlu0 %v20, 126
    %v2041 = vpop.permute.xlu0 %2040
    %2042 = vrot.lane.b32.xlu0 %v21, 126
    %v2043 = vpop.permute.xlu0 %2042
    %vm2044 = vcmp.lt.s32.totalorder %v31, 126
    %v2045 = vsel %vm2044, %v2041, %v2043
    %v2046 = vsel %vm2044, %v2039, %v2041
    %v2047 = vsel %vm2044, %v2037, %v2039
    %v2048 = vsel %vm2044, %v2043, %v2037
    %s2049 = scalar_lea.vmem %s3, 44
    %v2050 = vld [vmem:[%s2049] sm:$0xf]
    %v2052 = vlaneseq
    %v2053 = vshrl.u32 %v2052, 7
    %v2054 = vsub.s32 0, %v2053
    %v2055 = vrot.slane %v2050, %v2054
    %v2056 = vlaneseq
    %v2057 = vshrl.u32 %v2056, 7
    %v2058 = vsub.s32 1, %v2057
    %v2059 = vrot.slane %v2050, %v2058
    %v2060 = vlaneseq
    %v2061 = vshrl.u32 %v2060, 7
    %v2062 = vsub.s32 2, %v2061
    %v2063 = vrot.slane %v2050, %v2062
    %v2064 = vlaneseq
    %v2065 = vshrl.u32 %v2064, 7
    %v2066 = vsub.s32 3, %v2065
    %v2067 = vrot.slane %v2050, %v2066
    %v2072 = vmul.f32 %v2047, %v2055
    %v2073 = vmul.f32 %v2046, %v2059
    %v2074 = vmul.f32 %v2045, %v2063
    %v2075 = vmul.f32 %v2048, %v2067
    %s2076 = scalar_lea.vmem %s1, 88
    %v2077 = vld [vmem:[%s2076] sm:$0xff]
    %v2079 = vsel %vm106, %v2077, 0
    %2081 = vmatprep.subr.mxu0 0.0
    %2082 = vmatpush1.msra.mxu0 0.0
    %2083 = vmatprep.subr.mxu0 0.0
    %2084 = vmatpush1.msra.mxu0 0.0
    %2085 = vmatprep.subr.mxu0 0.0
    %2086 = vmatpush1.msra.mxu0 0.0
    %2087 = vmatprep.subr.mxu0 0.0
    %2088 = vmatpush1.msra.mxu0 0.0
    %2089 = vmatprep.subr.mxu0 0.0
    %2090 = vmatpush1.msra.mxu0 0.0
    %2091 = vmatprep.subr.mxu0 0.0
    %2092 = vmatpush1.msra.mxu0 0.0
    %2093 = vmatprep.subr.mxu0 0.0
    %2094 = vmatpush1.msra.mxu0 0.0
    %2095 = vmatprep.subr.mxu0 0.0
    %2096 = vmatpush1.msra.mxu0 0.0
    %2097 = vmatprep.subr.mxu0 0.0
    %2098 = vmatpush1.msra.mxu0 0.0
    %2099 = vmatprep.subr.mxu0 0.0
    %2100 = vmatpush1.msra.mxu0 0.0
    %2101 = vmatprep.subr.mxu0 0.0
    %2102 = vmatpush1.msra.mxu0 0.0
    %2103 = vmatprep.subr.mxu0 0.0
    %2104 = vmatpush1.msra.mxu0 0.0
    %2105 = vmatprep.subr.mxu0 0.0
    %2106 = vmatpush1.msra.mxu0 0.0
    %2107 = vmatprep.subr.mxu0 0.0
    %2108 = vmatpush1.msra.mxu0 0.0
    %2109 = vmatprep.subr.mxu0 0.0
    %2110 = vmatpush1.msra.mxu0 0.0
    %2111 = vmatprep.subr.mxu0 %v2073
    %2112 = vmatpush1.msra.mxu0 %v2072
    %2113 = vmatprep.subr.mxu0 0.0
    %2114 = vmatpush2.msra.mxu0 0.0
    %2115 = vmatprep.subr.mxu0 0.0
    %2116 = vmatpush2.msra.mxu0 0.0
    %2117 = vmatprep.subr.mxu0 0.0
    %2118 = vmatpush2.msra.mxu0 0.0
    %2119 = vmatprep.subr.mxu0 0.0
    %2120 = vmatpush2.msra.mxu0 0.0
    %2121 = vmatprep.subr.mxu0 0.0
    %2122 = vmatpush2.msra.mxu0 0.0
    %2123 = vmatprep.subr.mxu0 0.0
    %2124 = vmatpush2.msra.mxu0 0.0
    %2125 = vmatprep.subr.mxu0 0.0
    %2126 = vmatpush2.msra.mxu0 0.0
    %2127 = vmatprep.subr.mxu0 0.0
    %2128 = vmatpush2.msra.mxu0 0.0
    %2129 = vmatprep.subr.mxu0 0.0
    %2130 = vmatpush2.msra.mxu0 0.0
    %2131 = vmatprep.subr.mxu0 0.0
    %2132 = vmatpush2.msra.mxu0 0.0
    %2133 = vmatprep.subr.mxu0 0.0
    %2134 = vmatpush2.msra.mxu0 0.0
    %2135 = vmatprep.subr.mxu0 0.0
    %2136 = vmatpush2.msra.mxu0 0.0
    %2137 = vmatprep.subr.mxu0 0.0
    %2138 = vmatpush2.msra.mxu0 0.0
    %2139 = vmatprep.subr.mxu0 0.0
    %2140 = vmatpush2.msra.mxu0 0.0
    %2141 = vmatprep.subr.mxu0 0.0
    %2142 = vmatpush2.msra.mxu0 0.0
    %2143 = vmatprep.subr.mxu0 0.0
    %2144 = vmatpush2.msra.mxu0 0.0
    %2145 = vmatprep.mubr.f32.mxu0 0.0
    %2146 = vmatmul.mubr.f32.gmra.mxu0 %v2079
    %v2147 = vpop.f32.mrf.mxu0
    %v2148 = vadd.f32 0.0, %v2147
    %v2149 = vpop.f32.mrf.mxu0
    %v2150 = vadd.f32 0.0, %v2149
    %2151 = vdwg.mxu0
    %2152 = vmatprep.subr.mxu0 0.0
    %2153 = vmatpush1.msra.mxu0 0.0
    %2154 = vmatprep.subr.mxu0 0.0
    %2155 = vmatpush1.msra.mxu0 0.0
    %2156 = vmatprep.subr.mxu0 0.0
    %2157 = vmatpush1.msra.mxu0 0.0
    %2158 = vmatprep.subr.mxu0 0.0
    %2159 = vmatpush1.msra.mxu0 0.0
    %2160 = vmatprep.subr.mxu0 0.0
    %2161 = vmatpush1.msra.mxu0 0.0
    %2162 = vmatprep.subr.mxu0 0.0
    %2163 = vmatpush1.msra.mxu0 0.0
    %2164 = vmatprep.subr.mxu0 0.0
    %2165 = vmatpush1.msra.mxu0 0.0
    %2166 = vmatprep.subr.mxu0 0.0
    %2167 = vmatpush1.msra.mxu0 0.0
    %2168 = vmatprep.subr.mxu0 0.0
    %2169 = vmatpush1.msra.mxu0 0.0
    %2170 = vmatprep.subr.mxu0 0.0
    %2171 = vmatpush1.msra.mxu0 0.0
    %2172 = vmatprep.subr.mxu0 0.0
    %2173 = vmatpush1.msra.mxu0 0.0
    %2174 = vmatprep.subr.mxu0 0.0
    %2175 = vmatpush1.msra.mxu0 0.0
    %2176 = vmatprep.subr.mxu0 0.0
    %2177 = vmatpush1.msra.mxu0 0.0
    %2178 = vmatprep.subr.mxu0 0.0
    %2179 = vmatpush1.msra.mxu0 0.0
    %2180 = vmatprep.subr.mxu0 0.0
    %2181 = vmatpush1.msra.mxu0 0.0
    %2182 = vmatprep.subr.mxu0 %v2075
    %2183 = vmatpush1.msra.mxu0 %v2074
    %2184 = vmatprep.subr.mxu0 0.0
    %2185 = vmatpush2.msra.mxu0 0.0
    %2186 = vmatprep.subr.mxu0 0.0
    %2187 = vmatpush2.msra.mxu0 0.0
    %2188 = vmatprep.subr.mxu0 0.0
    %2189 = vmatpush2.msra.mxu0 0.0
    %2190 = vmatprep.subr.mxu0 0.0
    %2191 = vmatpush2.msra.mxu0 0.0
    %2192 = vmatprep.subr.mxu0 0.0
    %2193 = vmatpush2.msra.mxu0 0.0
    %2194 = vmatprep.subr.mxu0 0.0
    %2195 = vmatpush2.msra.mxu0 0.0
    %2196 = vmatprep.subr.mxu0 0.0
    %2197 = vmatpush2.msra.mxu0 0.0
    %2198 = vmatprep.subr.mxu0 0.0
    %2199 = vmatpush2.msra.mxu0 0.0
    %2200 = vmatprep.subr.mxu0 0.0
    %2201 = vmatpush2.msra.mxu0 0.0
    %2202 = vmatprep.subr.mxu0 0.0
    %2203 = vmatpush2.msra.mxu0 0.0
    %2204 = vmatprep.subr.mxu0 0.0
    %2205 = vmatpush2.msra.mxu0 0.0
    %2206 = vmatprep.subr.mxu0 0.0
    %2207 = vmatpush2.msra.mxu0 0.0
    %2208 = vmatprep.subr.mxu0 0.0
    %2209 = vmatpush2.msra.mxu0 0.0
    %2210 = vmatprep.subr.mxu0 0.0
    %2211 = vmatpush2.msra.mxu0 0.0
    %2212 = vmatprep.subr.mxu0 0.0
    %2213 = vmatpush2.msra.mxu0 0.0
    %2214 = vmatprep.subr.mxu0 0.0
    %2215 = vmatpush2.msra.mxu0 0.0
    %2216 = vmatprep.mubr.f32.mxu0 0.0
    %2217 = vmatmul.mubr.f32.gmra.mxu0 %v2079
    %v2218 = vpop.f32.mrf.mxu0
    %v2219 = vadd.f32 0.0, %v2218
    %v2220 = vpop.f32.mrf.mxu0
    %v2221 = vadd.f32 0.0, %v2220
    %2222 = vdwg.mxu0
    %v2223 = vadd.f32 %v2032, %v2148
    %v2224 = vadd.f32 %v2033, %v2150
    %v2225 = vadd.f32 %v2034, %v2219
    %v2226 = vadd.f32 %v2035, %v2221
    %2227 = vrot.lane.b32.xlu0 %v18, 113
    %v2228 = vpop.permute.xlu0 %2227
    %2229 = vrot.lane.b32.xlu0 %v19, 113
    %v2230 = vpop.permute.xlu0 %2229
    %2231 = vrot.lane.b32.xlu0 %v20, 113
    %v2232 = vpop.permute.xlu0 %2231
    %2233 = vrot.lane.b32.xlu0 %v21, 113
    %v2234 = vpop.permute.xlu0 %2233
    %vm2235 = vcmp.lt.s32.totalorder %v31, 113
    %v2236 = vsel %vm2235, %v2232, %v2234
    %v2237 = vsel %vm2235, %v2230, %v2232
    %v2238 = vsel %vm2235, %v2228, %v2230
    %v2239 = vsel %vm2235, %v2234, %v2228
    %s2240 = scalar_lea.vmem %s3, 48
    %v2241 = vld [vmem:[%s2240] sm:$0xf]
    %v2243 = vlaneseq
    %v2244 = vshrl.u32 %v2243, 7
    %v2245 = vsub.s32 0, %v2244
    %v2246 = vrot.slane %v2241, %v2245
    %v2247 = vlaneseq
    %v2248 = vshrl.u32 %v2247, 7
    %v2249 = vsub.s32 1, %v2248
    %v2250 = vrot.slane %v2241, %v2249
    %v2251 = vlaneseq
    %v2252 = vshrl.u32 %v2251, 7
    %v2253 = vsub.s32 2, %v2252
    %v2254 = vrot.slane %v2241, %v2253
    %v2255 = vlaneseq
    %v2256 = vshrl.u32 %v2255, 7
    %v2257 = vsub.s32 3, %v2256
    %v2258 = vrot.slane %v2241, %v2257
    %v2263 = vmul.f32 %v2238, %v2246
    %v2264 = vmul.f32 %v2237, %v2250
    %v2265 = vmul.f32 %v2236, %v2254
    %v2266 = vmul.f32 %v2239, %v2258
    %s2267 = scalar_lea.vmem %s1, 96
    %v2268 = vld [vmem:[%s2267] sm:$0xff]
    %v2270 = vsel %vm106, %v2268, 0
    %2272 = vmatprep.subr.mxu0 0.0
    %2273 = vmatpush1.msra.mxu0 0.0
    %2274 = vmatprep.subr.mxu0 0.0
    %2275 = vmatpush1.msra.mxu0 0.0
    %2276 = vmatprep.subr.mxu0 0.0
    %2277 = vmatpush1.msra.mxu0 0.0
    %2278 = vmatprep.subr.mxu0 0.0
    %2279 = vmatpush1.msra.mxu0 0.0
    %2280 = vmatprep.subr.mxu0 0.0
    %2281 = vmatpush1.msra.mxu0 0.0
    %2282 = vmatprep.subr.mxu0 0.0
    %2283 = vmatpush1.msra.mxu0 0.0
    %2284 = vmatprep.subr.mxu0 0.0
    %2285 = vmatpush1.msra.mxu0 0.0
    %2286 = vmatprep.subr.mxu0 0.0
    %2287 = vmatpush1.msra.mxu0 0.0
    %2288 = vmatprep.subr.mxu0 0.0
    %2289 = vmatpush1.msra.mxu0 0.0
    %2290 = vmatprep.subr.mxu0 0.0
    %2291 = vmatpush1.msra.mxu0 0.0
    %2292 = vmatprep.subr.mxu0 0.0
    %2293 = vmatpush1.msra.mxu0 0.0
    %2294 = vmatprep.subr.mxu0 0.0
    %2295 = vmatpush1.msra.mxu0 0.0
    %2296 = vmatprep.subr.mxu0 0.0
    %2297 = vmatpush1.msra.mxu0 0.0
    %2298 = vmatprep.subr.mxu0 0.0
    %2299 = vmatpush1.msra.mxu0 0.0
    %2300 = vmatprep.subr.mxu0 0.0
    %2301 = vmatpush1.msra.mxu0 0.0
    %2302 = vmatprep.subr.mxu0 %v2264
    %2303 = vmatpush1.msra.mxu0 %v2263
    %2304 = vmatprep.subr.mxu0 0.0
    %2305 = vmatpush2.msra.mxu0 0.0
    %2306 = vmatprep.subr.mxu0 0.0
    %2307 = vmatpush2.msra.mxu0 0.0
    %2308 = vmatprep.subr.mxu0 0.0
    %2309 = vmatpush2.msra.mxu0 0.0
    %2310 = vmatprep.subr.mxu0 0.0
    %2311 = vmatpush2.msra.mxu0 0.0
    %2312 = vmatprep.subr.mxu0 0.0
    %2313 = vmatpush2.msra.mxu0 0.0
    %2314 = vmatprep.subr.mxu0 0.0
    %2315 = vmatpush2.msra.mxu0 0.0
    %2316 = vmatprep.subr.mxu0 0.0
    %2317 = vmatpush2.msra.mxu0 0.0
    %2318 = vmatprep.subr.mxu0 0.0
    %2319 = vmatpush2.msra.mxu0 0.0
    %2320 = vmatprep.subr.mxu0 0.0
    %2321 = vmatpush2.msra.mxu0 0.0
    %2322 = vmatprep.subr.mxu0 0.0
    %2323 = vmatpush2.msra.mxu0 0.0
    %2324 = vmatprep.subr.mxu0 0.0
    %2325 = vmatpush2.msra.mxu0 0.0
    %2326 = vmatprep.subr.mxu0 0.0
    %2327 = vmatpush2.msra.mxu0 0.0
    %2328 = vmatprep.subr.mxu0 0.0
    %2329 = vmatpush2.msra.mxu0 0.0
    %2330 = vmatprep.subr.mxu0 0.0
    %2331 = vmatpush2.msra.mxu0 0.0
    %2332 = vmatprep.subr.mxu0 0.0
    %2333 = vmatpush2.msra.mxu0 0.0
    %2334 = vmatprep.subr.mxu0 0.0
    %2335 = vmatpush2.msra.mxu0 0.0
    %2336 = vmatprep.mubr.f32.mxu0 0.0
    %2337 = vmatmul.mubr.f32.gmra.mxu0 %v2270
    %v2338 = vpop.f32.mrf.mxu0
    %v2339 = vadd.f32 0.0, %v2338
    %v2340 = vpop.f32.mrf.mxu0
    %v2341 = vadd.f32 0.0, %v2340
    %2342 = vdwg.mxu0
    %2343 = vmatprep.subr.mxu0 0.0
    %2344 = vmatpush1.msra.mxu0 0.0
    %2345 = vmatprep.subr.mxu0 0.0
    %2346 = vmatpush1.msra.mxu0 0.0
    %2347 = vmatprep.subr.mxu0 0.0
    %2348 = vmatpush1.msra.mxu0 0.0
    %2349 = vmatprep.subr.mxu0 0.0
    %2350 = vmatpush1.msra.mxu0 0.0
    %2351 = vmatprep.subr.mxu0 0.0
    %2352 = vmatpush1.msra.mxu0 0.0
    %2353 = vmatprep.subr.mxu0 0.0
    %2354 = vmatpush1.msra.mxu0 0.0
    %2355 = vmatprep.subr.mxu0 0.0
    %2356 = vmatpush1.msra.mxu0 0.0
    %2357 = vmatprep.subr.mxu0 0.0
    %2358 = vmatpush1.msra.mxu0 0.0
    %2359 = vmatprep.subr.mxu0 0.0
    %2360 = vmatpush1.msra.mxu0 0.0
    %2361 = vmatprep.subr.mxu0 0.0
    %2362 = vmatpush1.msra.mxu0 0.0
    %2363 = vmatprep.subr.mxu0 0.0
    %2364 = vmatpush1.msra.mxu0 0.0
    %2365 = vmatprep.subr.mxu0 0.0
    %2366 = vmatpush1.msra.mxu0 0.0
    %2367 = vmatprep.subr.mxu0 0.0
    %2368 = vmatpush1.msra.mxu0 0.0
    %2369 = vmatprep.subr.mxu0 0.0
    %2370 = vmatpush1.msra.mxu0 0.0
    %2371 = vmatprep.subr.mxu0 0.0
    %2372 = vmatpush1.msra.mxu0 0.0
    %2373 = vmatprep.subr.mxu0 %v2266
    %2374 = vmatpush1.msra.mxu0 %v2265
    %2375 = vmatprep.subr.mxu0 0.0
    %2376 = vmatpush2.msra.mxu0 0.0
    %2377 = vmatprep.subr.mxu0 0.0
    %2378 = vmatpush2.msra.mxu0 0.0
    %2379 = vmatprep.subr.mxu0 0.0
    %2380 = vmatpush2.msra.mxu0 0.0
    %2381 = vmatprep.subr.mxu0 0.0
    %2382 = vmatpush2.msra.mxu0 0.0
    %2383 = vmatprep.subr.mxu0 0.0
    %2384 = vmatpush2.msra.mxu0 0.0
    %2385 = vmatprep.subr.mxu0 0.0
    %2386 = vmatpush2.msra.mxu0 0.0
    %2387 = vmatprep.subr.mxu0 0.0
    %2388 = vmatpush2.msra.mxu0 0.0
    %2389 = vmatprep.subr.mxu0 0.0
    %2390 = vmatpush2.msra.mxu0 0.0
    %2391 = vmatprep.subr.mxu0 0.0
    %2392 = vmatpush2.msra.mxu0 0.0
    %2393 = vmatprep.subr.mxu0 0.0
    %2394 = vmatpush2.msra.mxu0 0.0
    %2395 = vmatprep.subr.mxu0 0.0
    %2396 = vmatpush2.msra.mxu0 0.0
    %2397 = vmatprep.subr.mxu0 0.0
    %2398 = vmatpush2.msra.mxu0 0.0
    %2399 = vmatprep.subr.mxu0 0.0
    %2400 = vmatpush2.msra.mxu0 0.0
    %2401 = vmatprep.subr.mxu0 0.0
    %2402 = vmatpush2.msra.mxu0 0.0
    %2403 = vmatprep.subr.mxu0 0.0
    %2404 = vmatpush2.msra.mxu0 0.0
    %2405 = vmatprep.subr.mxu0 0.0
    %2406 = vmatpush2.msra.mxu0 0.0
    %2407 = vmatprep.mubr.f32.mxu0 0.0
    %2408 = vmatmul.mubr.f32.gmra.mxu0 %v2270
    %v2409 = vpop.f32.mrf.mxu0
    %v2410 = vadd.f32 0.0, %v2409
    %v2411 = vpop.f32.mrf.mxu0
    %v2412 = vadd.f32 0.0, %v2411
    %2413 = vdwg.mxu0
    %v2414 = vadd.f32 %v2223, %v2339
    %v2415 = vadd.f32 %v2224, %v2341
    %v2416 = vadd.f32 %v2225, %v2410
    %v2417 = vadd.f32 %v2226, %v2412
    %2418 = vrot.lane.b32.xlu0 %v18, 98
    %v2419 = vpop.permute.xlu0 %2418
    %2420 = vrot.lane.b32.xlu0 %v19, 98
    %v2421 = vpop.permute.xlu0 %2420
    %2422 = vrot.lane.b32.xlu0 %v20, 98
    %v2423 = vpop.permute.xlu0 %2422
    %2424 = vrot.lane.b32.xlu0 %v21, 98
    %v2425 = vpop.permute.xlu0 %2424
    %vm2426 = vcmp.lt.s32.totalorder %v31, 98
    %v2427 = vsel %vm2426, %v2423, %v2425
    %v2428 = vsel %vm2426, %v2421, %v2423
    %v2429 = vsel %vm2426, %v2419, %v2421
    %v2430 = vsel %vm2426, %v2425, %v2419
    %s2431 = scalar_lea.vmem %s3, 52
    %v2432 = vld [vmem:[%s2431] sm:$0xf]
    %v2434 = vlaneseq
    %v2435 = vshrl.u32 %v2434, 7
    %v2436 = vsub.s32 0, %v2435
    %v2437 = vrot.slane %v2432, %v2436
    %v2438 = vlaneseq
    %v2439 = vshrl.u32 %v2438, 7
    %v2440 = vsub.s32 1, %v2439
    %v2441 = vrot.slane %v2432, %v2440
    %v2442 = vlaneseq
    %v2443 = vshrl.u32 %v2442, 7
    %v2444 = vsub.s32 2, %v2443
    %v2445 = vrot.slane %v2432, %v2444
    %v2446 = vlaneseq
    %v2447 = vshrl.u32 %v2446, 7
    %v2448 = vsub.s32 3, %v2447
    %v2449 = vrot.slane %v2432, %v2448
    %v2454 = vmul.f32 %v2429, %v2437
    %v2455 = vmul.f32 %v2428, %v2441
    %v2456 = vmul.f32 %v2427, %v2445
    %v2457 = vmul.f32 %v2430, %v2449
    %s2458 = scalar_lea.vmem %s1, 104
    %v2459 = vld [vmem:[%s2458] sm:$0xff]
    %v2461 = vsel %vm106, %v2459, 0
    %2463 = vmatprep.subr.mxu0 0.0
    %2464 = vmatpush1.msra.mxu0 0.0
    %2465 = vmatprep.subr.mxu0 0.0
    %2466 = vmatpush1.msra.mxu0 0.0
    %2467 = vmatprep.subr.mxu0 0.0
    %2468 = vmatpush1.msra.mxu0 0.0
    %2469 = vmatprep.subr.mxu0 0.0
    %2470 = vmatpush1.msra.mxu0 0.0
    %2471 = vmatprep.subr.mxu0 0.0
    %2472 = vmatpush1.msra.mxu0 0.0
    %2473 = vmatprep.subr.mxu0 0.0
    %2474 = vmatpush1.msra.mxu0 0.0
    %2475 = vmatprep.subr.mxu0 0.0
    %2476 = vmatpush1.msra.mxu0 0.0
    %2477 = vmatprep.subr.mxu0 0.0
    %2478 = vmatpush1.msra.mxu0 0.0
    %2479 = vmatprep.subr.mxu0 0.0
    %2480 = vmatpush1.msra.mxu0 0.0
    %2481 = vmatprep.subr.mxu0 0.0
    %2482 = vmatpush1.msra.mxu0 0.0
    %2483 = vmatprep.subr.mxu0 0.0
    %2484 = vmatpush1.msra.mxu0 0.0
    %2485 = vmatprep.subr.mxu0 0.0
    %2486 = vmatpush1.msra.mxu0 0.0
    %2487 = vmatprep.subr.mxu0 0.0
    %2488 = vmatpush1.msra.mxu0 0.0
    %2489 = vmatprep.subr.mxu0 0.0
    %2490 = vmatpush1.msra.mxu0 0.0
    %2491 = vmatprep.subr.mxu0 0.0
    %2492 = vmatpush1.msra.mxu0 0.0
    %2493 = vmatprep.subr.mxu0 %v2455
    %2494 = vmatpush1.msra.mxu0 %v2454
    %2495 = vmatprep.subr.mxu0 0.0
    %2496 = vmatpush2.msra.mxu0 0.0
    %2497 = vmatprep.subr.mxu0 0.0
    %2498 = vmatpush2.msra.mxu0 0.0
    %2499 = vmatprep.subr.mxu0 0.0
    %2500 = vmatpush2.msra.mxu0 0.0
    %2501 = vmatprep.subr.mxu0 0.0
    %2502 = vmatpush2.msra.mxu0 0.0
    %2503 = vmatprep.subr.mxu0 0.0
    %2504 = vmatpush2.msra.mxu0 0.0
    %2505 = vmatprep.subr.mxu0 0.0
    %2506 = vmatpush2.msra.mxu0 0.0
    %2507 = vmatprep.subr.mxu0 0.0
    %2508 = vmatpush2.msra.mxu0 0.0
    %2509 = vmatprep.subr.mxu0 0.0
    %2510 = vmatpush2.msra.mxu0 0.0
    %2511 = vmatprep.subr.mxu0 0.0
    %2512 = vmatpush2.msra.mxu0 0.0
    %2513 = vmatprep.subr.mxu0 0.0
    %2514 = vmatpush2.msra.mxu0 0.0
    %2515 = vmatprep.subr.mxu0 0.0
    %2516 = vmatpush2.msra.mxu0 0.0
    %2517 = vmatprep.subr.mxu0 0.0
    %2518 = vmatpush2.msra.mxu0 0.0
    %2519 = vmatprep.subr.mxu0 0.0
    %2520 = vmatpush2.msra.mxu0 0.0
    %2521 = vmatprep.subr.mxu0 0.0
    %2522 = vmatpush2.msra.mxu0 0.0
    %2523 = vmatprep.subr.mxu0 0.0
    %2524 = vmatpush2.msra.mxu0 0.0
    %2525 = vmatprep.subr.mxu0 0.0
    %2526 = vmatpush2.msra.mxu0 0.0
    %2527 = vmatprep.mubr.f32.mxu0 0.0
    %2528 = vmatmul.mubr.f32.gmra.mxu0 %v2461
    %v2529 = vpop.f32.mrf.mxu0
    %v2530 = vadd.f32 0.0, %v2529
    %v2531 = vpop.f32.mrf.mxu0
    %v2532 = vadd.f32 0.0, %v2531
    %2533 = vdwg.mxu0
    %2534 = vmatprep.subr.mxu0 0.0
    %2535 = vmatpush1.msra.mxu0 0.0
    %2536 = vmatprep.subr.mxu0 0.0
    %2537 = vmatpush1.msra.mxu0 0.0
    %2538 = vmatprep.subr.mxu0 0.0
    %2539 = vmatpush1.msra.mxu0 0.0
    %2540 = vmatprep.subr.mxu0 0.0
    %2541 = vmatpush1.msra.mxu0 0.0
    %2542 = vmatprep.subr.mxu0 0.0
    %2543 = vmatpush1.msra.mxu0 0.0
    %2544 = vmatprep.subr.mxu0 0.0
    %2545 = vmatpush1.msra.mxu0 0.0
    %2546 = vmatprep.subr.mxu0 0.0
    %2547 = vmatpush1.msra.mxu0 0.0
    %2548 = vmatprep.subr.mxu0 0.0
    %2549 = vmatpush1.msra.mxu0 0.0
    %2550 = vmatprep.subr.mxu0 0.0
    %2551 = vmatpush1.msra.mxu0 0.0
    %2552 = vmatprep.subr.mxu0 0.0
    %2553 = vmatpush1.msra.mxu0 0.0
    %2554 = vmatprep.subr.mxu0 0.0
    %2555 = vmatpush1.msra.mxu0 0.0
    %2556 = vmatprep.subr.mxu0 0.0
    %2557 = vmatpush1.msra.mxu0 0.0
    %2558 = vmatprep.subr.mxu0 0.0
    %2559 = vmatpush1.msra.mxu0 0.0
    %2560 = vmatprep.subr.mxu0 0.0
    %2561 = vmatpush1.msra.mxu0 0.0
    %2562 = vmatprep.subr.mxu0 0.0
    %2563 = vmatpush1.msra.mxu0 0.0
    %2564 = vmatprep.subr.mxu0 %v2457
    %2565 = vmatpush1.msra.mxu0 %v2456
    %2566 = vmatprep.subr.mxu0 0.0
    %2567 = vmatpush2.msra.mxu0 0.0
    %2568 = vmatprep.subr.mxu0 0.0
    %2569 = vmatpush2.msra.mxu0 0.0
    %2570 = vmatprep.subr.mxu0 0.0
    %2571 = vmatpush2.msra.mxu0 0.0
    %2572 = vmatprep.subr.mxu0 0.0
    %2573 = vmatpush2.msra.mxu0 0.0
    %2574 = vmatprep.subr.mxu0 0.0
    %2575 = vmatpush2.msra.mxu0 0.0
    %2576 = vmatprep.subr.mxu0 0.0
    %2577 = vmatpush2.msra.mxu0 0.0
    %2578 = vmatprep.subr.mxu0 0.0
    %2579 = vmatpush2.msra.mxu0 0.0
    %2580 = vmatprep.subr.mxu0 0.0
    %2581 = vmatpush2.msra.mxu0 0.0
    %2582 = vmatprep.subr.mxu0 0.0
    %2583 = vmatpush2.msra.mxu0 0.0
    %2584 = vmatprep.subr.mxu0 0.0
    %2585 = vmatpush2.msra.mxu0 0.0
    %2586 = vmatprep.subr.mxu0 0.0
    %2587 = vmatpush2.msra.mxu0 0.0
    %2588 = vmatprep.subr.mxu0 0.0
    %2589 = vmatpush2.msra.mxu0 0.0
    %2590 = vmatprep.subr.mxu0 0.0
    %2591 = vmatpush2.msra.mxu0 0.0
    %2592 = vmatprep.subr.mxu0 0.0
    %2593 = vmatpush2.msra.mxu0 0.0
    %2594 = vmatprep.subr.mxu0 0.0
    %2595 = vmatpush2.msra.mxu0 0.0
    %2596 = vmatprep.subr.mxu0 0.0
    %2597 = vmatpush2.msra.mxu0 0.0
    %2598 = vmatprep.mubr.f32.mxu0 0.0
    %2599 = vmatmul.mubr.f32.gmra.mxu0 %v2461
    %v2600 = vpop.f32.mrf.mxu0
    %v2601 = vadd.f32 0.0, %v2600
    %v2602 = vpop.f32.mrf.mxu0
    %v2603 = vadd.f32 0.0, %v2602
    %2604 = vdwg.mxu0
    %v2605 = vadd.f32 %v2414, %v2530
    %v2606 = vadd.f32 %v2415, %v2532
    %v2607 = vadd.f32 %v2416, %v2601
    %v2608 = vadd.f32 %v2417, %v2603
    %2609 = vrot.lane.b32.xlu0 %v18, 112
    %v2610 = vpop.permute.xlu0 %2609
    %2611 = vrot.lane.b32.xlu0 %v19, 112
    %v2612 = vpop.permute.xlu0 %2611
    %2613 = vrot.lane.b32.xlu0 %v20, 112
    %v2614 = vpop.permute.xlu0 %2613
    %2615 = vrot.lane.b32.xlu0 %v21, 112
    %v2616 = vpop.permute.xlu0 %2615
    %vm2617 = vcmp.lt.s32.totalorder %v31, 112
    %v2618 = vsel %vm2617, %v2614, %v2616
    %v2619 = vsel %vm2617, %v2612, %v2614
    %v2620 = vsel %vm2617, %v2610, %v2612
    %v2621 = vsel %vm2617, %v2616, %v2610
    %s2622 = scalar_lea.vmem %s3, 56
    %v2623 = vld [vmem:[%s2622] sm:$0xf]
    %v2625 = vlaneseq
    %v2626 = vshrl.u32 %v2625, 7
    %v2627 = vsub.s32 0, %v2626
    %v2628 = vrot.slane %v2623, %v2627
    %v2629 = vlaneseq
    %v2630 = vshrl.u32 %v2629, 7
    %v2631 = vsub.s32 1, %v2630
    %v2632 = vrot.slane %v2623, %v2631
    %v2633 = vlaneseq
    %v2634 = vshrl.u32 %v2633, 7
    %v2635 = vsub.s32 2, %v2634
    %v2636 = vrot.slane %v2623, %v2635
    %v2637 = vlaneseq
    %v2638 = vshrl.u32 %v2637, 7
    %v2639 = vsub.s32 3, %v2638
    %v2640 = vrot.slane %v2623, %v2639
    %v2645 = vmul.f32 %v2620, %v2628
    %v2646 = vmul.f32 %v2619, %v2632
    %v2647 = vmul.f32 %v2618, %v2636
    %v2648 = vmul.f32 %v2621, %v2640
    %s2649 = scalar_lea.vmem %s1, 112
    %v2650 = vld [vmem:[%s2649] sm:$0xff]
    %v2652 = vsel %vm106, %v2650, 0
    %2654 = vmatprep.subr.mxu0 0.0
    %2655 = vmatpush1.msra.mxu0 0.0
    %2656 = vmatprep.subr.mxu0 0.0
    %2657 = vmatpush1.msra.mxu0 0.0
    %2658 = vmatprep.subr.mxu0 0.0
    %2659 = vmatpush1.msra.mxu0 0.0
    %2660 = vmatprep.subr.mxu0 0.0
    %2661 = vmatpush1.msra.mxu0 0.0
    %2662 = vmatprep.subr.mxu0 0.0
    %2663 = vmatpush1.msra.mxu0 0.0
    %2664 = vmatprep.subr.mxu0 0.0
    %2665 = vmatpush1.msra.mxu0 0.0
    %2666 = vmatprep.subr.mxu0 0.0
    %2667 = vmatpush1.msra.mxu0 0.0
    %2668 = vmatprep.subr.mxu0 0.0
    %2669 = vmatpush1.msra.mxu0 0.0
    %2670 = vmatprep.subr.mxu0 0.0
    %2671 = vmatpush1.msra.mxu0 0.0
    %2672 = vmatprep.subr.mxu0 0.0
    %2673 = vmatpush1.msra.mxu0 0.0
    %2674 = vmatprep.subr.mxu0 0.0
    %2675 = vmatpush1.msra.mxu0 0.0
    %2676 = vmatprep.subr.mxu0 0.0
    %2677 = vmatpush1.msra.mxu0 0.0
    %2678 = vmatprep.subr.mxu0 0.0
    %2679 = vmatpush1.msra.mxu0 0.0
    %2680 = vmatprep.subr.mxu0 0.0
    %2681 = vmatpush1.msra.mxu0 0.0
    %2682 = vmatprep.subr.mxu0 0.0
    %2683 = vmatpush1.msra.mxu0 0.0
    %2684 = vmatprep.subr.mxu0 %v2646
    %2685 = vmatpush1.msra.mxu0 %v2645
    %2686 = vmatprep.subr.mxu0 0.0
    %2687 = vmatpush2.msra.mxu0 0.0
    %2688 = vmatprep.subr.mxu0 0.0
    %2689 = vmatpush2.msra.mxu0 0.0
    %2690 = vmatprep.subr.mxu0 0.0
    %2691 = vmatpush2.msra.mxu0 0.0
    %2692 = vmatprep.subr.mxu0 0.0
    %2693 = vmatpush2.msra.mxu0 0.0
    %2694 = vmatprep.subr.mxu0 0.0
    %2695 = vmatpush2.msra.mxu0 0.0
    %2696 = vmatprep.subr.mxu0 0.0
    %2697 = vmatpush2.msra.mxu0 0.0
    %2698 = vmatprep.subr.mxu0 0.0
    %2699 = vmatpush2.msra.mxu0 0.0
    %2700 = vmatprep.subr.mxu0 0.0
    %2701 = vmatpush2.msra.mxu0 0.0
    %2702 = vmatprep.subr.mxu0 0.0
    %2703 = vmatpush2.msra.mxu0 0.0
    %2704 = vmatprep.subr.mxu0 0.0
    %2705 = vmatpush2.msra.mxu0 0.0
    %2706 = vmatprep.subr.mxu0 0.0
    %2707 = vmatpush2.msra.mxu0 0.0
    %2708 = vmatprep.subr.mxu0 0.0
    %2709 = vmatpush2.msra.mxu0 0.0
    %2710 = vmatprep.subr.mxu0 0.0
    %2711 = vmatpush2.msra.mxu0 0.0
    %2712 = vmatprep.subr.mxu0 0.0
    %2713 = vmatpush2.msra.mxu0 0.0
    %2714 = vmatprep.subr.mxu0 0.0
    %2715 = vmatpush2.msra.mxu0 0.0
    %2716 = vmatprep.subr.mxu0 0.0
    %2717 = vmatpush2.msra.mxu0 0.0
    %2718 = vmatprep.mubr.f32.mxu0 0.0
    %2719 = vmatmul.mubr.f32.gmra.mxu0 %v2652
    %v2720 = vpop.f32.mrf.mxu0
    %v2721 = vadd.f32 0.0, %v2720
    %v2722 = vpop.f32.mrf.mxu0
    %v2723 = vadd.f32 0.0, %v2722
    %2724 = vdwg.mxu0
    %2725 = vmatprep.subr.mxu0 0.0
    %2726 = vmatpush1.msra.mxu0 0.0
    %2727 = vmatprep.subr.mxu0 0.0
    %2728 = vmatpush1.msra.mxu0 0.0
    %2729 = vmatprep.subr.mxu0 0.0
    %2730 = vmatpush1.msra.mxu0 0.0
    %2731 = vmatprep.subr.mxu0 0.0
    %2732 = vmatpush1.msra.mxu0 0.0
    %2733 = vmatprep.subr.mxu0 0.0
    %2734 = vmatpush1.msra.mxu0 0.0
    %2735 = vmatprep.subr.mxu0 0.0
    %2736 = vmatpush1.msra.mxu0 0.0
    %2737 = vmatprep.subr.mxu0 0.0
    %2738 = vmatpush1.msra.mxu0 0.0
    %2739 = vmatprep.subr.mxu0 0.0
    %2740 = vmatpush1.msra.mxu0 0.0
    %2741 = vmatprep.subr.mxu0 0.0
    %2742 = vmatpush1.msra.mxu0 0.0
    %2743 = vmatprep.subr.mxu0 0.0
    %2744 = vmatpush1.msra.mxu0 0.0
    %2745 = vmatprep.subr.mxu0 0.0
    %2746 = vmatpush1.msra.mxu0 0.0
    %2747 = vmatprep.subr.mxu0 0.0
    %2748 = vmatpush1.msra.mxu0 0.0
    %2749 = vmatprep.subr.mxu0 0.0
    %2750 = vmatpush1.msra.mxu0 0.0
    %2751 = vmatprep.subr.mxu0 0.0
    %2752 = vmatpush1.msra.mxu0 0.0
    %2753 = vmatprep.subr.mxu0 0.0
    %2754 = vmatpush1.msra.mxu0 0.0
    %2755 = vmatprep.subr.mxu0 %v2648
    %2756 = vmatpush1.msra.mxu0 %v2647
    %2757 = vmatprep.subr.mxu0 0.0
    %2758 = vmatpush2.msra.mxu0 0.0
    %2759 = vmatprep.subr.mxu0 0.0
    %2760 = vmatpush2.msra.mxu0 0.0
    %2761 = vmatprep.subr.mxu0 0.0
    %2762 = vmatpush2.msra.mxu0 0.0
    %2763 = vmatprep.subr.mxu0 0.0
    %2764 = vmatpush2.msra.mxu0 0.0
    %2765 = vmatprep.subr.mxu0 0.0
    %2766 = vmatpush2.msra.mxu0 0.0
    %2767 = vmatprep.subr.mxu0 0.0
    %2768 = vmatpush2.msra.mxu0 0.0
    %2769 = vmatprep.subr.mxu0 0.0
    %2770 = vmatpush2.msra.mxu0 0.0
    %2771 = vmatprep.subr.mxu0 0.0
    %2772 = vmatpush2.msra.mxu0 0.0
    %2773 = vmatprep.subr.mxu0 0.0
    %2774 = vmatpush2.msra.mxu0 0.0
    %2775 = vmatprep.subr.mxu0 0.0
    %2776 = vmatpush2.msra.mxu0 0.0
    %2777 = vmatprep.subr.mxu0 0.0
    %2778 = vmatpush2.msra.mxu0 0.0
    %2779 = vmatprep.subr.mxu0 0.0
    %2780 = vmatpush2.msra.mxu0 0.0
    %2781 = vmatprep.subr.mxu0 0.0
    %2782 = vmatpush2.msra.mxu0 0.0
    %2783 = vmatprep.subr.mxu0 0.0
    %2784 = vmatpush2.msra.mxu0 0.0
    %2785 = vmatprep.subr.mxu0 0.0
    %2786 = vmatpush2.msra.mxu0 0.0
    %2787 = vmatprep.subr.mxu0 0.0
    %2788 = vmatpush2.msra.mxu0 0.0
    %2789 = vmatprep.mubr.f32.mxu0 0.0
    %2790 = vmatmul.mubr.f32.gmra.mxu0 %v2652
    %v2791 = vpop.f32.mrf.mxu0
    %v2792 = vadd.f32 0.0, %v2791
    %v2793 = vpop.f32.mrf.mxu0
    %v2794 = vadd.f32 0.0, %v2793
    %2795 = vdwg.mxu0
    %v2796 = vadd.f32 %v2605, %v2721
    %v2797 = vadd.f32 %v2606, %v2723
    %v2798 = vadd.f32 %v2607, %v2792
    %v2799 = vadd.f32 %v2608, %v2794
    %2800 = vrot.lane.b32.xlu0 %v18, 96
    %v2801 = vpop.permute.xlu0 %2800
    %2802 = vrot.lane.b32.xlu0 %v19, 96
    %v2803 = vpop.permute.xlu0 %2802
    %2804 = vrot.lane.b32.xlu0 %v20, 96
    %v2805 = vpop.permute.xlu0 %2804
    %2806 = vrot.lane.b32.xlu0 %v21, 96
    %v2807 = vpop.permute.xlu0 %2806
    %vm2808 = vcmp.lt.s32.totalorder %v31, 96
    %v2809 = vsel %vm2808, %v2805, %v2807
    %v2810 = vsel %vm2808, %v2803, %v2805
    %v2811 = vsel %vm2808, %v2801, %v2803
    %v2812 = vsel %vm2808, %v2807, %v2801
    %s2813 = scalar_lea.vmem %s3, 60
    %v2814 = vld [vmem:[%s2813] sm:$0xf]
    %v2816 = vlaneseq
    %v2817 = vshrl.u32 %v2816, 7
    %v2818 = vsub.s32 0, %v2817
    %v2819 = vrot.slane %v2814, %v2818
    %v2820 = vlaneseq
    %v2821 = vshrl.u32 %v2820, 7
    %v2822 = vsub.s32 1, %v2821
    %v2823 = vrot.slane %v2814, %v2822
    %v2824 = vlaneseq
    %v2825 = vshrl.u32 %v2824, 7
    %v2826 = vsub.s32 2, %v2825
    %v2827 = vrot.slane %v2814, %v2826
    %v2828 = vlaneseq
    %v2829 = vshrl.u32 %v2828, 7
    %v2830 = vsub.s32 3, %v2829
    %v2831 = vrot.slane %v2814, %v2830
    %v2836 = vmul.f32 %v2811, %v2819
    %v2837 = vmul.f32 %v2810, %v2823
    %v2838 = vmul.f32 %v2809, %v2827
    %v2839 = vmul.f32 %v2812, %v2831
    %s2840 = scalar_lea.vmem %s1, 120
    %v2841 = vld [vmem:[%s2840] sm:$0xff]
    %v2843 = vsel %vm106, %v2841, 0
    %2845 = vmatprep.subr.mxu0 0.0
    %2846 = vmatpush1.msra.mxu0 0.0
    %2847 = vmatprep.subr.mxu0 0.0
    %2848 = vmatpush1.msra.mxu0 0.0
    %2849 = vmatprep.subr.mxu0 0.0
    %2850 = vmatpush1.msra.mxu0 0.0
    %2851 = vmatprep.subr.mxu0 0.0
    %2852 = vmatpush1.msra.mxu0 0.0
    %2853 = vmatprep.subr.mxu0 0.0
    %2854 = vmatpush1.msra.mxu0 0.0
    %2855 = vmatprep.subr.mxu0 0.0
    %2856 = vmatpush1.msra.mxu0 0.0
    %2857 = vmatprep.subr.mxu0 0.0
    %2858 = vmatpush1.msra.mxu0 0.0
    %2859 = vmatprep.subr.mxu0 0.0
    %2860 = vmatpush1.msra.mxu0 0.0
    %2861 = vmatprep.subr.mxu0 0.0
    %2862 = vmatpush1.msra.mxu0 0.0
    %2863 = vmatprep.subr.mxu0 0.0
    %2864 = vmatpush1.msra.mxu0 0.0
    %2865 = vmatprep.subr.mxu0 0.0
    %2866 = vmatpush1.msra.mxu0 0.0
    %2867 = vmatprep.subr.mxu0 0.0
    %2868 = vmatpush1.msra.mxu0 0.0
    %2869 = vmatprep.subr.mxu0 0.0
    %2870 = vmatpush1.msra.mxu0 0.0
    %2871 = vmatprep.subr.mxu0 0.0
    %2872 = vmatpush1.msra.mxu0 0.0
    %2873 = vmatprep.subr.mxu0 0.0
    %2874 = vmatpush1.msra.mxu0 0.0
    %2875 = vmatprep.subr.mxu0 %v2837
    %2876 = vmatpush1.msra.mxu0 %v2836
    %2877 = vmatprep.subr.mxu0 0.0
    %2878 = vmatpush2.msra.mxu0 0.0
    %2879 = vmatprep.subr.mxu0 0.0
    %2880 = vmatpush2.msra.mxu0 0.0
    %2881 = vmatprep.subr.mxu0 0.0
    %2882 = vmatpush2.msra.mxu0 0.0
    %2883 = vmatprep.subr.mxu0 0.0
    %2884 = vmatpush2.msra.mxu0 0.0
    %2885 = vmatprep.subr.mxu0 0.0
    %2886 = vmatpush2.msra.mxu0 0.0
    %2887 = vmatprep.subr.mxu0 0.0
    %2888 = vmatpush2.msra.mxu0 0.0
    %2889 = vmatprep.subr.mxu0 0.0
    %2890 = vmatpush2.msra.mxu0 0.0
    %2891 = vmatprep.subr.mxu0 0.0
    %2892 = vmatpush2.msra.mxu0 0.0
    %2893 = vmatprep.subr.mxu0 0.0
    %2894 = vmatpush2.msra.mxu0 0.0
    %2895 = vmatprep.subr.mxu0 0.0
    %2896 = vmatpush2.msra.mxu0 0.0
    %2897 = vmatprep.subr.mxu0 0.0
    %2898 = vmatpush2.msra.mxu0 0.0
    %2899 = vmatprep.subr.mxu0 0.0
    %2900 = vmatpush2.msra.mxu0 0.0
    %2901 = vmatprep.subr.mxu0 0.0
    %2902 = vmatpush2.msra.mxu0 0.0
    %2903 = vmatprep.subr.mxu0 0.0
    %2904 = vmatpush2.msra.mxu0 0.0
    %2905 = vmatprep.subr.mxu0 0.0
    %2906 = vmatpush2.msra.mxu0 0.0
    %2907 = vmatprep.subr.mxu0 0.0
    %2908 = vmatpush2.msra.mxu0 0.0
    %2909 = vmatprep.mubr.f32.mxu0 0.0
    %2910 = vmatmul.mubr.f32.gmra.mxu0 %v2843
    %v2911 = vpop.f32.mrf.mxu0
    %v2912 = vadd.f32 0.0, %v2911
    %v2913 = vpop.f32.mrf.mxu0
    %v2914 = vadd.f32 0.0, %v2913
    %2915 = vdwg.mxu0
    %2916 = vmatprep.subr.mxu0 0.0
    %2917 = vmatpush1.msra.mxu0 0.0
    %2918 = vmatprep.subr.mxu0 0.0
    %2919 = vmatpush1.msra.mxu0 0.0
    %2920 = vmatprep.subr.mxu0 0.0
    %2921 = vmatpush1.msra.mxu0 0.0
    %2922 = vmatprep.subr.mxu0 0.0
    %2923 = vmatpush1.msra.mxu0 0.0
    %2924 = vmatprep.subr.mxu0 0.0
    %2925 = vmatpush1.msra.mxu0 0.0
    %2926 = vmatprep.subr.mxu0 0.0
    %2927 = vmatpush1.msra.mxu0 0.0
    %2928 = vmatprep.subr.mxu0 0.0
    %2929 = vmatpush1.msra.mxu0 0.0
    %2930 = vmatprep.subr.mxu0 0.0
    %2931 = vmatpush1.msra.mxu0 0.0
    %2932 = vmatprep.subr.mxu0 0.0
    %2933 = vmatpush1.msra.mxu0 0.0
    %2934 = vmatprep.subr.mxu0 0.0
    %2935 = vmatpush1.msra.mxu0 0.0
    %2936 = vmatprep.subr.mxu0 0.0
    %2937 = vmatpush1.msra.mxu0 0.0
    %2938 = vmatprep.subr.mxu0 0.0
    %2939 = vmatpush1.msra.mxu0 0.0
    %2940 = vmatprep.subr.mxu0 0.0
    %2941 = vmatpush1.msra.mxu0 0.0
    %2942 = vmatprep.subr.mxu0 0.0
    %2943 = vmatpush1.msra.mxu0 0.0
    %2944 = vmatprep.subr.mxu0 0.0
    %2945 = vmatpush1.msra.mxu0 0.0
    %2946 = vmatprep.subr.mxu0 %v2839
    %2947 = vmatpush1.msra.mxu0 %v2838
    %2948 = vmatprep.subr.mxu0 0.0
    %2949 = vmatpush2.msra.mxu0 0.0
    %2950 = vmatprep.subr.mxu0 0.0
    %2951 = vmatpush2.msra.mxu0 0.0
    %2952 = vmatprep.subr.mxu0 0.0
    %2953 = vmatpush2.msra.mxu0 0.0
    %2954 = vmatprep.subr.mxu0 0.0
    %2955 = vmatpush2.msra.mxu0 0.0
    %2956 = vmatprep.subr.mxu0 0.0
    %2957 = vmatpush2.msra.mxu0 0.0
    %2958 = vmatprep.subr.mxu0 0.0
    %2959 = vmatpush2.msra.mxu0 0.0
    %2960 = vmatprep.subr.mxu0 0.0
    %2961 = vmatpush2.msra.mxu0 0.0
    %2962 = vmatprep.subr.mxu0 0.0
    %2963 = vmatpush2.msra.mxu0 0.0
    %2964 = vmatprep.subr.mxu0 0.0
    %2965 = vmatpush2.msra.mxu0 0.0
    %2966 = vmatprep.subr.mxu0 0.0
    %2967 = vmatpush2.msra.mxu0 0.0
    %2968 = vmatprep.subr.mxu0 0.0
    %2969 = vmatpush2.msra.mxu0 0.0
    %2970 = vmatprep.subr.mxu0 0.0
    %2971 = vmatpush2.msra.mxu0 0.0
    %2972 = vmatprep.subr.mxu0 0.0
    %2973 = vmatpush2.msra.mxu0 0.0
    %2974 = vmatprep.subr.mxu0 0.0
    %2975 = vmatpush2.msra.mxu0 0.0
    %2976 = vmatprep.subr.mxu0 0.0
    %2977 = vmatpush2.msra.mxu0 0.0
    %2978 = vmatprep.subr.mxu0 0.0
    %2979 = vmatpush2.msra.mxu0 0.0
    %2980 = vmatprep.mubr.f32.mxu0 0.0
    %2981 = vmatmul.mubr.f32.gmra.mxu0 %v2843
    %v2982 = vpop.f32.mrf.mxu0
    %v2983 = vadd.f32 0.0, %v2982
    %v2984 = vpop.f32.mrf.mxu0
    %v2985 = vadd.f32 0.0, %v2984
    %2986 = vdwg.mxu0
    %v2987 = vadd.f32 %v2796, %v2912
    %v2988 = vadd.f32 %v2797, %v2914
    %v2989 = vadd.f32 %v2798, %v2983
    %v2990 = vadd.f32 %v2799, %v2985
    %2991 = vrot.lane.b32.xlu0 %v18, 111
    %v2992 = vpop.permute.xlu0 %2991
    %2993 = vrot.lane.b32.xlu0 %v19, 111
    %v2994 = vpop.permute.xlu0 %2993
    %2995 = vrot.lane.b32.xlu0 %v20, 111
    %v2996 = vpop.permute.xlu0 %2995
    %2997 = vrot.lane.b32.xlu0 %v21, 111
    %v2998 = vpop.permute.xlu0 %2997
    %vm2999 = vcmp.lt.s32.totalorder %v31, 111
    %v3000 = vsel %vm2999, %v2996, %v2998
    %v3001 = vsel %vm2999, %v2994, %v2996
    %v3002 = vsel %vm2999, %v2992, %v2994
    %v3003 = vsel %vm2999, %v2998, %v2992
    %s3004 = scalar_lea.vmem %s3, 64
    %v3005 = vld [vmem:[%s3004] sm:$0xf]
    %v3007 = vlaneseq
    %v3008 = vshrl.u32 %v3007, 7
    %v3009 = vsub.s32 0, %v3008
    %v3010 = vrot.slane %v3005, %v3009
    %v3011 = vlaneseq
    %v3012 = vshrl.u32 %v3011, 7
    %v3013 = vsub.s32 1, %v3012
    %v3014 = vrot.slane %v3005, %v3013
    %v3015 = vlaneseq
    %v3016 = vshrl.u32 %v3015, 7
    %v3017 = vsub.s32 2, %v3016
    %v3018 = vrot.slane %v3005, %v3017
    %v3019 = vlaneseq
    %v3020 = vshrl.u32 %v3019, 7
    %v3021 = vsub.s32 3, %v3020
    %v3022 = vrot.slane %v3005, %v3021
    %v3027 = vmul.f32 %v3002, %v3010
    %v3028 = vmul.f32 %v3001, %v3014
    %v3029 = vmul.f32 %v3000, %v3018
    %v3030 = vmul.f32 %v3003, %v3022
    %s3031 = scalar_lea.vmem %s1, 128
    %v3032 = vld [vmem:[%s3031] sm:$0xff]
    %v3034 = vsel %vm106, %v3032, 0
    %3036 = vmatprep.subr.mxu0 0.0
    %3037 = vmatpush1.msra.mxu0 0.0
    %3038 = vmatprep.subr.mxu0 0.0
    %3039 = vmatpush1.msra.mxu0 0.0
    %3040 = vmatprep.subr.mxu0 0.0
    %3041 = vmatpush1.msra.mxu0 0.0
    %3042 = vmatprep.subr.mxu0 0.0
    %3043 = vmatpush1.msra.mxu0 0.0
    %3044 = vmatprep.subr.mxu0 0.0
    %3045 = vmatpush1.msra.mxu0 0.0
    %3046 = vmatprep.subr.mxu0 0.0
    %3047 = vmatpush1.msra.mxu0 0.0
    %3048 = vmatprep.subr.mxu0 0.0
    %3049 = vmatpush1.msra.mxu0 0.0
    %3050 = vmatprep.subr.mxu0 0.0
    %3051 = vmatpush1.msra.mxu0 0.0
    %3052 = vmatprep.subr.mxu0 0.0
    %3053 = vmatpush1.msra.mxu0 0.0
    %3054 = vmatprep.subr.mxu0 0.0
    %3055 = vmatpush1.msra.mxu0 0.0
    %3056 = vmatprep.subr.mxu0 0.0
    %3057 = vmatpush1.msra.mxu0 0.0
    %3058 = vmatprep.subr.mxu0 0.0
    %3059 = vmatpush1.msra.mxu0 0.0
    %3060 = vmatprep.subr.mxu0 0.0
    %3061 = vmatpush1.msra.mxu0 0.0
    %3062 = vmatprep.subr.mxu0 0.0
    %3063 = vmatpush1.msra.mxu0 0.0
    %3064 = vmatprep.subr.mxu0 0.0
    %3065 = vmatpush1.msra.mxu0 0.0
    %3066 = vmatprep.subr.mxu0 %v3028
    %3067 = vmatpush1.msra.mxu0 %v3027
    %3068 = vmatprep.subr.mxu0 0.0
    %3069 = vmatpush2.msra.mxu0 0.0
    %3070 = vmatprep.subr.mxu0 0.0
    %3071 = vmatpush2.msra.mxu0 0.0
    %3072 = vmatprep.subr.mxu0 0.0
    %3073 = vmatpush2.msra.mxu0 0.0
    %3074 = vmatprep.subr.mxu0 0.0
    %3075 = vmatpush2.msra.mxu0 0.0
    %3076 = vmatprep.subr.mxu0 0.0
    %3077 = vmatpush2.msra.mxu0 0.0
    %3078 = vmatprep.subr.mxu0 0.0
    %3079 = vmatpush2.msra.mxu0 0.0
    %3080 = vmatprep.subr.mxu0 0.0
    %3081 = vmatpush2.msra.mxu0 0.0
    %3082 = vmatprep.subr.mxu0 0.0
    %3083 = vmatpush2.msra.mxu0 0.0
    %3084 = vmatprep.subr.mxu0 0.0
    %3085 = vmatpush2.msra.mxu0 0.0
    %3086 = vmatprep.subr.mxu0 0.0
    %3087 = vmatpush2.msra.mxu0 0.0
    %3088 = vmatprep.subr.mxu0 0.0
    %3089 = vmatpush2.msra.mxu0 0.0
    %3090 = vmatprep.subr.mxu0 0.0
    %3091 = vmatpush2.msra.mxu0 0.0
    %3092 = vmatprep.subr.mxu0 0.0
    %3093 = vmatpush2.msra.mxu0 0.0
    %3094 = vmatprep.subr.mxu0 0.0
    %3095 = vmatpush2.msra.mxu0 0.0
    %3096 = vmatprep.subr.mxu0 0.0
    %3097 = vmatpush2.msra.mxu0 0.0
    %3098 = vmatprep.subr.mxu0 0.0
    %3099 = vmatpush2.msra.mxu0 0.0
    %3100 = vmatprep.mubr.f32.mxu0 0.0
    %3101 = vmatmul.mubr.f32.gmra.mxu0 %v3034
    %v3102 = vpop.f32.mrf.mxu0
    %v3103 = vadd.f32 0.0, %v3102
    %v3104 = vpop.f32.mrf.mxu0
    %v3105 = vadd.f32 0.0, %v3104
    %3106 = vdwg.mxu0
    %3107 = vmatprep.subr.mxu0 0.0
    %3108 = vmatpush1.msra.mxu0 0.0
    %3109 = vmatprep.subr.mxu0 0.0
    %3110 = vmatpush1.msra.mxu0 0.0
    %3111 = vmatprep.subr.mxu0 0.0
    %3112 = vmatpush1.msra.mxu0 0.0
    %3113 = vmatprep.subr.mxu0 0.0
    %3114 = vmatpush1.msra.mxu0 0.0
    %3115 = vmatprep.subr.mxu0 0.0
    %3116 = vmatpush1.msra.mxu0 0.0
    %3117 = vmatprep.subr.mxu0 0.0
    %3118 = vmatpush1.msra.mxu0 0.0
    %3119 = vmatprep.subr.mxu0 0.0
    %3120 = vmatpush1.msra.mxu0 0.0
    %3121 = vmatprep.subr.mxu0 0.0
    %3122 = vmatpush1.msra.mxu0 0.0
    %3123 = vmatprep.subr.mxu0 0.0
    %3124 = vmatpush1.msra.mxu0 0.0
    %3125 = vmatprep.subr.mxu0 0.0
    %3126 = vmatpush1.msra.mxu0 0.0
    %3127 = vmatprep.subr.mxu0 0.0
    %3128 = vmatpush1.msra.mxu0 0.0
    %3129 = vmatprep.subr.mxu0 0.0
    %3130 = vmatpush1.msra.mxu0 0.0
    %3131 = vmatprep.subr.mxu0 0.0
    %3132 = vmatpush1.msra.mxu0 0.0
    %3133 = vmatprep.subr.mxu0 0.0
    %3134 = vmatpush1.msra.mxu0 0.0
    %3135 = vmatprep.subr.mxu0 0.0
    %3136 = vmatpush1.msra.mxu0 0.0
    %3137 = vmatprep.subr.mxu0 %v3030
    %3138 = vmatpush1.msra.mxu0 %v3029
    %3139 = vmatprep.subr.mxu0 0.0
    %3140 = vmatpush2.msra.mxu0 0.0
    %3141 = vmatprep.subr.mxu0 0.0
    %3142 = vmatpush2.msra.mxu0 0.0
    %3143 = vmatprep.subr.mxu0 0.0
    %3144 = vmatpush2.msra.mxu0 0.0
    %3145 = vmatprep.subr.mxu0 0.0
    %3146 = vmatpush2.msra.mxu0 0.0
    %3147 = vmatprep.subr.mxu0 0.0
    %3148 = vmatpush2.msra.mxu0 0.0
    %3149 = vmatprep.subr.mxu0 0.0
    %3150 = vmatpush2.msra.mxu0 0.0
    %3151 = vmatprep.subr.mxu0 0.0
    %3152 = vmatpush2.msra.mxu0 0.0
    %3153 = vmatprep.subr.mxu0 0.0
    %3154 = vmatpush2.msra.mxu0 0.0
    %3155 = vmatprep.subr.mxu0 0.0
    %3156 = vmatpush2.msra.mxu0 0.0
    %3157 = vmatprep.subr.mxu0 0.0
    %3158 = vmatpush2.msra.mxu0 0.0
    %3159 = vmatprep.subr.mxu0 0.0
    %3160 = vmatpush2.msra.mxu0 0.0
    %3161 = vmatprep.subr.mxu0 0.0
    %3162 = vmatpush2.msra.mxu0 0.0
    %3163 = vmatprep.subr.mxu0 0.0
    %3164 = vmatpush2.msra.mxu0 0.0
    %3165 = vmatprep.subr.mxu0 0.0
    %3166 = vmatpush2.msra.mxu0 0.0
    %3167 = vmatprep.subr.mxu0 0.0
    %3168 = vmatpush2.msra.mxu0 0.0
    %3169 = vmatprep.subr.mxu0 0.0
    %3170 = vmatpush2.msra.mxu0 0.0
    %3171 = vmatprep.mubr.f32.mxu0 0.0
    %3172 = vmatmul.mubr.f32.gmra.mxu0 %v3034
    %v3173 = vpop.f32.mrf.mxu0
    %v3174 = vadd.f32 0.0, %v3173
    %v3175 = vpop.f32.mrf.mxu0
    %v3176 = vadd.f32 0.0, %v3175
    %3177 = vdwg.mxu0
    %v3178 = vadd.f32 %v2987, %v3103
    %v3179 = vadd.f32 %v2988, %v3105
    %v3180 = vadd.f32 %v2989, %v3174
    %v3181 = vadd.f32 %v2990, %v3176
    %3182 = vrot.lane.b32.xlu0 %v18, 94
    %v3183 = vpop.permute.xlu0 %3182
    %3184 = vrot.lane.b32.xlu0 %v19, 94
    %v3185 = vpop.permute.xlu0 %3184
    %3186 = vrot.lane.b32.xlu0 %v20, 94
    %v3187 = vpop.permute.xlu0 %3186
    %3188 = vrot.lane.b32.xlu0 %v21, 94
    %v3189 = vpop.permute.xlu0 %3188
    %vm3190 = vcmp.lt.s32.totalorder %v31, 94
    %v3191 = vsel %vm3190, %v3187, %v3189
    %v3192 = vsel %vm3190, %v3185, %v3187
    %v3193 = vsel %vm3190, %v3183, %v3185
    %v3194 = vsel %vm3190, %v3189, %v3183
    %s3195 = scalar_lea.vmem %s3, 68
    %v3196 = vld [vmem:[%s3195] sm:$0xf]
    %v3198 = vlaneseq
    %v3199 = vshrl.u32 %v3198, 7
    %v3200 = vsub.s32 0, %v3199
    %v3201 = vrot.slane %v3196, %v3200
    %v3202 = vlaneseq
    %v3203 = vshrl.u32 %v3202, 7
    %v3204 = vsub.s32 1, %v3203
    %v3205 = vrot.slane %v3196, %v3204
    %v3206 = vlaneseq
    %v3207 = vshrl.u32 %v3206, 7
    %v3208 = vsub.s32 2, %v3207
    %v3209 = vrot.slane %v3196, %v3208
    %v3210 = vlaneseq
    %v3211 = vshrl.u32 %v3210, 7
    %v3212 = vsub.s32 3, %v3211
    %v3213 = vrot.slane %v3196, %v3212
    %v3218 = vmul.f32 %v3193, %v3201
    %v3219 = vmul.f32 %v3192, %v3205
    %v3220 = vmul.f32 %v3191, %v3209
    %v3221 = vmul.f32 %v3194, %v3213
    %s3222 = scalar_lea.vmem %s1, 136
    %v3223 = vld [vmem:[%s3222] sm:$0xff]
    %v3225 = vsel %vm106, %v3223, 0
    %3227 = vmatprep.subr.mxu0 0.0
    %3228 = vmatpush1.msra.mxu0 0.0
    %3229 = vmatprep.subr.mxu0 0.0
    %3230 = vmatpush1.msra.mxu0 0.0
    %3231 = vmatprep.subr.mxu0 0.0
    %3232 = vmatpush1.msra.mxu0 0.0
    %3233 = vmatprep.subr.mxu0 0.0
    %3234 = vmatpush1.msra.mxu0 0.0
    %3235 = vmatprep.subr.mxu0 0.0
    %3236 = vmatpush1.msra.mxu0 0.0
    %3237 = vmatprep.subr.mxu0 0.0
    %3238 = vmatpush1.msra.mxu0 0.0
    %3239 = vmatprep.subr.mxu0 0.0
    %3240 = vmatpush1.msra.mxu0 0.0
    %3241 = vmatprep.subr.mxu0 0.0
    %3242 = vmatpush1.msra.mxu0 0.0
    %3243 = vmatprep.subr.mxu0 0.0
    %3244 = vmatpush1.msra.mxu0 0.0
    %3245 = vmatprep.subr.mxu0 0.0
    %3246 = vmatpush1.msra.mxu0 0.0
    %3247 = vmatprep.subr.mxu0 0.0
    %3248 = vmatpush1.msra.mxu0 0.0
    %3249 = vmatprep.subr.mxu0 0.0
    %3250 = vmatpush1.msra.mxu0 0.0
    %3251 = vmatprep.subr.mxu0 0.0
    %3252 = vmatpush1.msra.mxu0 0.0
    %3253 = vmatprep.subr.mxu0 0.0
    %3254 = vmatpush1.msra.mxu0 0.0
    %3255 = vmatprep.subr.mxu0 0.0
    %3256 = vmatpush1.msra.mxu0 0.0
    %3257 = vmatprep.subr.mxu0 %v3219
    %3258 = vmatpush1.msra.mxu0 %v3218
    %3259 = vmatprep.subr.mxu0 0.0
    %3260 = vmatpush2.msra.mxu0 0.0
    %3261 = vmatprep.subr.mxu0 0.0
    %3262 = vmatpush2.msra.mxu0 0.0
    %3263 = vmatprep.subr.mxu0 0.0
    %3264 = vmatpush2.msra.mxu0 0.0
    %3265 = vmatprep.subr.mxu0 0.0
    %3266 = vmatpush2.msra.mxu0 0.0
    %3267 = vmatprep.subr.mxu0 0.0
    %3268 = vmatpush2.msra.mxu0 0.0
    %3269 = vmatprep.subr.mxu0 0.0
    %3270 = vmatpush2.msra.mxu0 0.0
    %3271 = vmatprep.subr.mxu0 0.0
    %3272 = vmatpush2.msra.mxu0 0.0
    %3273 = vmatprep.subr.mxu0 0.0
    %3274 = vmatpush2.msra.mxu0 0.0
    %3275 = vmatprep.subr.mxu0 0.0
    %3276 = vmatpush2.msra.mxu0 0.0
    %3277 = vmatprep.subr.mxu0 0.0
    %3278 = vmatpush2.msra.mxu0 0.0
    %3279 = vmatprep.subr.mxu0 0.0
    %3280 = vmatpush2.msra.mxu0 0.0
    %3281 = vmatprep.subr.mxu0 0.0
    %3282 = vmatpush2.msra.mxu0 0.0
    %3283 = vmatprep.subr.mxu0 0.0
    %3284 = vmatpush2.msra.mxu0 0.0
    %3285 = vmatprep.subr.mxu0 0.0
    %3286 = vmatpush2.msra.mxu0 0.0
    %3287 = vmatprep.subr.mxu0 0.0
    %3288 = vmatpush2.msra.mxu0 0.0
    %3289 = vmatprep.subr.mxu0 0.0
    %3290 = vmatpush2.msra.mxu0 0.0
    %3291 = vmatprep.mubr.f32.mxu0 0.0
    %3292 = vmatmul.mubr.f32.gmra.mxu0 %v3225
    %v3293 = vpop.f32.mrf.mxu0
    %v3294 = vadd.f32 0.0, %v3293
    %v3295 = vpop.f32.mrf.mxu0
    %v3296 = vadd.f32 0.0, %v3295
    %3297 = vdwg.mxu0
    %3298 = vmatprep.subr.mxu0 0.0
    %3299 = vmatpush1.msra.mxu0 0.0
    %3300 = vmatprep.subr.mxu0 0.0
    %3301 = vmatpush1.msra.mxu0 0.0
    %3302 = vmatprep.subr.mxu0 0.0
    %3303 = vmatpush1.msra.mxu0 0.0
    %3304 = vmatprep.subr.mxu0 0.0
    %3305 = vmatpush1.msra.mxu0 0.0
    %3306 = vmatprep.subr.mxu0 0.0
    %3307 = vmatpush1.msra.mxu0 0.0
    %3308 = vmatprep.subr.mxu0 0.0
    %3309 = vmatpush1.msra.mxu0 0.0
    %3310 = vmatprep.subr.mxu0 0.0
    %3311 = vmatpush1.msra.mxu0 0.0
    %3312 = vmatprep.subr.mxu0 0.0
    %3313 = vmatpush1.msra.mxu0 0.0
    %3314 = vmatprep.subr.mxu0 0.0
    %3315 = vmatpush1.msra.mxu0 0.0
    %3316 = vmatprep.subr.mxu0 0.0
    %3317 = vmatpush1.msra.mxu0 0.0
    %3318 = vmatprep.subr.mxu0 0.0
    %3319 = vmatpush1.msra.mxu0 0.0
    %3320 = vmatprep.subr.mxu0 0.0
    %3321 = vmatpush1.msra.mxu0 0.0
    %3322 = vmatprep.subr.mxu0 0.0
    %3323 = vmatpush1.msra.mxu0 0.0
    %3324 = vmatprep.subr.mxu0 0.0
    %3325 = vmatpush1.msra.mxu0 0.0
    %3326 = vmatprep.subr.mxu0 0.0
    %3327 = vmatpush1.msra.mxu0 0.0
    %3328 = vmatprep.subr.mxu0 %v3221
    %3329 = vmatpush1.msra.mxu0 %v3220
    %3330 = vmatprep.subr.mxu0 0.0
    %3331 = vmatpush2.msra.mxu0 0.0
    %3332 = vmatprep.subr.mxu0 0.0
    %3333 = vmatpush2.msra.mxu0 0.0
    %3334 = vmatprep.subr.mxu0 0.0
    %3335 = vmatpush2.msra.mxu0 0.0
    %3336 = vmatprep.subr.mxu0 0.0
    %3337 = vmatpush2.msra.mxu0 0.0
    %3338 = vmatprep.subr.mxu0 0.0
    %3339 = vmatpush2.msra.mxu0 0.0
    %3340 = vmatprep.subr.mxu0 0.0
    %3341 = vmatpush2.msra.mxu0 0.0
    %3342 = vmatprep.subr.mxu0 0.0
    %3343 = vmatpush2.msra.mxu0 0.0
    %3344 = vmatprep.subr.mxu0 0.0
    %3345 = vmatpush2.msra.mxu0 0.0
    %3346 = vmatprep.subr.mxu0 0.0
    %3347 = vmatpush2.msra.mxu0 0.0
    %3348 = vmatprep.subr.mxu0 0.0
    %3349 = vmatpush2.msra.mxu0 0.0
    %3350 = vmatprep.subr.mxu0 0.0
    %3351 = vmatpush2.msra.mxu0 0.0
    %3352 = vmatprep.subr.mxu0 0.0
    %3353 = vmatpush2.msra.mxu0 0.0
    %3354 = vmatprep.subr.mxu0 0.0
    %3355 = vmatpush2.msra.mxu0 0.0
    %3356 = vmatprep.subr.mxu0 0.0
    %3357 = vmatpush2.msra.mxu0 0.0
    %3358 = vmatprep.subr.mxu0 0.0
    %3359 = vmatpush2.msra.mxu0 0.0
    %3360 = vmatprep.subr.mxu0 0.0
    %3361 = vmatpush2.msra.mxu0 0.0
    %3362 = vmatprep.mubr.f32.mxu0 0.0
    %3363 = vmatmul.mubr.f32.gmra.mxu0 %v3225
    %v3364 = vpop.f32.mrf.mxu0
    %v3365 = vadd.f32 0.0, %v3364
    %v3366 = vpop.f32.mrf.mxu0
    %v3367 = vadd.f32 0.0, %v3366
    %3368 = vdwg.mxu0
    %v3369 = vadd.f32 %v3178, %v3294
    %v3370 = vadd.f32 %v3179, %v3296
    %v3371 = vadd.f32 %v3180, %v3365
    %v3372 = vadd.f32 %v3181, %v3367
    %v3373 = vld [vmem:[%s2] sm:$0xff]
    %3375 = vset.pattern.permute.xlu0 0
    %3376 = vperm.xlu0 %3375, %v3373
    %v3377 = vpop.permute.xlu0 %3376
    %v3379 = vadd.f32 %v3369, %v3377
    %v3380 = vadd.f32 %v3370, %v3377
    %v3381 = vadd.f32 %v3371, %v3377
    %v3382 = vadd.f32 %v3372, %v3377
    %3383 = vst [vmem:[#allocation2] sm:$0xff] %v3379
    %3384 = vst [vmem:[#allocation2 + $0x8] sm:$0xff] %v3380
    %3385 = vst [vmem:[#allocation2 + $0x10] sm:$0xff] %v3381
    %3386 = vst [vmem:[#allocation2 + $0x18] sm:$0xff] %v3382
    // Predicated region
    $region18: #{tpu_custom_call.1} parent=1 // pred_check
      _
    $region19: #{tpu_custom_call.1} parent=1 // pred_check_branch
      %3388 = sbr.rel (0) target = $region21
    $region20: #{tpu_custom_call.1} parent=1 // pred_region
      %s3390 = ssub.s32 512, 512
      %3391 = vsyncadd [#allocation3], %s3390
      %s3393 = sshll.u32 [#allocation2], 4
      %s3394 = int_to_ptr.vmem [resolvable:$true] %s3393
      %3396 = dma.vmem_to_hbm [thread:$0]  %s3394, 512, %s4, [#allocation3]
    $region21: #{tpu_custom_call.1} parent=1 // pred_fallthru
      _
    // Predicated region
    $region22: #{tpu_custom_call.1} parent=1 // pred_check
      _
    $region23: #{tpu_custom_call.1} parent=1 // pred_check_branch
      %3398 = sbr.rel (0) target = $region25
    $region24: #{tpu_custom_call.1} parent=1 // pred_region
      %3399 = dma.done [#allocation3], 512
    $region25: #{tpu_custom_call.1} parent=1 // pred_fallthru
      _
    %3400 = vsyncpa [#allocation3], 1

</llo_original>
